<compile_context>
chip_gen: v7x
topology: tpu7x:2x2x1
jax: 0.10.0
libtpu: 0.0.40
codegen_flags: <defaults>
</compile_context>

<pallas_src>
import functools

import jax
import jax.numpy as jnp
from jax import lax
from jax.experimental import pallas as pl
from jax.experimental.pallas import tpu as pltpu

# MXU operand dtype (weights stored in this dtype; activations cast in-kernel).
# Elementwise math and accumulation stay in float32.
MATMUL_DTYPE = jnp.bfloat16
VMEM_LIMIT = 48 * 1024 * 1024  # <= v7x physical 64 MiB; well under v5e/v6e 128 MiB


def _vmem_spec():
    return pl.BlockSpec(memory_space=pltpu.MemorySpace.VMEM)


def _smem_spec():
    return pl.BlockSpec(memory_space=pltpu.MemorySpace.SMEM)


def _sigmoid(x):
    # 1/(1+exp(-x)): exp is EUP, divide is VPU -- always lowerable.
    return 1.0 / (1.0 + jnp.exp(-x))


def _gelu_exact(x):
    # nn.GELU() default is the exact (erf) formulation.  erf via
    # Abramowitz & Stegun 7.1.26 (|err| < 1.5e-7 ~ f32 eps), built only from
    # exp/abs/where so it lowers on every TPU generation.
    z = x * 0.7071067811865476
    az = jnp.abs(z)
    t = 1.0 / (1.0 + 0.3275911 * az)
    poly = t * (0.254829592 + t * (-0.284496736 + t * (1.421413741
                + t * (-1.453152027 + t * 1.061405429))))
    erf_abs = 1.0 - poly * jnp.exp(-az * az)
    erf = jnp.where(z >= 0.0, erf_abs, -erf_abs)
    return 0.5 * x * (1.0 + erf)


# ---------------------------------------------------------------------------
# Fused BiN normalization + input projection kernel (input (B,T,F), output
# time-major (T,B,H) so no XLA transpose is needed before the GRU stack).
# ---------------------------------------------------------------------------
def bin_proj_kernel(x_ref, l1_ref, b1_ref, l2_ref, b2_ref, y_ref,
                    wt_ref, pb_ref, out_ref):
    # x: (B, T, F); l1/b1: (1, T, 1); l2/b2: (1, 1, F); y: SMEM (2,)
    # wt: (F, H) bf16 (pre-transposed projection weight); pb: (1, H) f32
    x = x_ref[...].astype(jnp.float32)
    B, T, F = x.shape
    xsq = x * x

    # Temporal normalization: per-feature stats over the time axis (axis=1).
    # Single-pass variance (E[x^2]-mean^2), Bessel corrected, std<1e-4 -> 1.
    mean_t = jnp.mean(x, axis=1, keepdims=True)
    var_t = (jnp.mean(xsq, axis=1, keepdims=True) - mean_t * mean_t)
    var_t = var_t * (float(T) / max(T - 1, 1))
    inv_t = jnp.where(var_t < 1e-8, 1.0, lax.rsqrt(jnp.maximum(var_t, 1e-12)))
    x2 = l2_ref[...] * ((x - mean_t) * inv_t) + b2_ref[...]

    # Feature normalization: per-timestep stats over the feature axis (axis=2).
    mean_f = jnp.mean(x, axis=2, keepdims=True)
    var_f = (jnp.mean(xsq, axis=2, keepdims=True) - mean_f * mean_f)
    var_f = var_f * (float(F) / max(F - 1, 1))
    inv_f = jnp.where(var_f < 1e-8, 1.0, lax.rsqrt(jnp.maximum(var_f, 1e-12)))
    x1 = l1_ref[...] * ((x - mean_f) * inv_f) + b1_ref[...]

    xn = y_ref[0] * x1 + y_ref[1] * x2                       # (B, T, F) f32

    # Fused input projection: ONE (B*T, F) GEMM, bias broadcast hoisted.
    pb = pb_ref[...].astype(jnp.float32)                     # (1, H)
    h = jnp.dot(xn.reshape(B * T, F).astype(MATMUL_DTYPE), wt_ref[...],
                preferred_element_type=jnp.float32) + pb     # (B*T, H)
    h = h.reshape(B, T, -1)

    # Emit time-major (T, B, H) directly (kills the XLA transpose / HBM pass).
    for t in range(T):
        out_ref[t] = h[:, t, :].astype(out_ref.dtype)


def bin_proj(x, bin_params, proj_wt, proj_b):
    # x: (B, T, F) -> (T, B, H) time-major
    B, T, F = x.shape
    H = proj_wt.shape[1]
    l1, b1, l2, b2, y = bin_params
    return pl.pallas_call(
        bin_proj_kernel,
        out_shape=jax.ShapeDtypeStruct((T, B, H), jnp.float32),
        in_specs=[_vmem_spec()] * 5 + [_smem_spec()] + [_vmem_spec()] * 2,
        out_specs=_vmem_spec(),
        compiler_params=pltpu.CompilerParams(vmem_limit_bytes=VMEM_LIMIT),
    )(
        x,
        l1.reshape(1, T, 1), b1.reshape(1, T, 1),
        l2.reshape(1, 1, F), b2.reshape(1, 1, F),
        y,
        proj_wt, proj_b.reshape(1, H),
    )


# ---------------------------------------------------------------------------
# Tiled dense (Linear [+ GELU]) kernel: grid over (N tiles, K tiles)
# (used only for the first, weight-streaming head layer; M = batch is tiny)
# ---------------------------------------------------------------------------
def tiled_linear_kernel(x_ref, w_ref, b_ref, o_ref, acc_ref, *, activation):
    k = pl.program_id(1)

    @pl.when(k == 0)
    def _():
        acc_ref[...] = jnp.zeros_like(acc_ref)

    acc_ref[...] += jnp.dot(
        x_ref[...].astype(MATMUL_DTYPE),
        w_ref[...].astype(MATMUL_DTYPE),
        preferred_element_type=jnp.float32,
    )

    @pl.when(k == pl.num_programs(1) - 1)
    def _():
        y = acc_ref[...] + b_ref[...].astype(jnp.float32)
        if activation == "gelu":
            y = _gelu_exact(y)
        o_ref[...] = y.astype(o_ref.dtype)


def _pick_tile(dim, candidates):
    for c in candidates:
        if c <= dim and dim % c == 0:
            return c
    return dim  # fall back to the full dimension (always legal)


def linear(x, w_t, b, activation="none"):
    # x: (M, K) bf16/f32; w_t: (K, N) pre-transposed bf16 weight; b: (N,) f32.
    M, K = x.shape
    N = w_t.shape[1]
    tn = _pick_tile(N, (512, 256, 128))              # lane-dense weight tiles
    tk = _pick_tile(K, (2048, 1024, 512, 256, 128))
    grid = (N // tn, K // tk)

    cost = pl.CostEstimate(
        flops=2 * M * N * K,
        transcendentals=0,
        bytes_accessed=(x.size * x.dtype.itemsize * (N // tn)   # x re-read per n tile
                        + w_t.size * w_t.dtype.itemsize
                        + b.size * 4 + M * N * 4),
    )
    return pl.pallas_call(
        functools.partial(tiled_linear_kernel, activation=activation),
        out_shape=jax.ShapeDtypeStruct((M, N), jnp.float32),
        grid_spec=pltpu.PrefetchScalarGridSpec(
            num_scalar_prefetch=0,
            grid=grid,
            in_specs=[
                pl.BlockSpec((M, tk), lambda n, k: (0, k)),
                pl.BlockSpec((tk, tn), lambda n, k: (k, n)),
                pl.BlockSpec((1, tn), lambda n, k: (0, n)),
            ],
            out_specs=pl.BlockSpec((M, tn), lambda n, k: (0, n)),
            scratch_shapes=[pltpu.VMEM((M, tn), jnp.float32)],
        ),
        compiler_params=pltpu.CompilerParams(
            dimension_semantics=("parallel", "arbitrary"),
            vmem_limit_bytes=VMEM_LIMIT,
        ),
        cost_estimate=cost,
    )(x, w_t, b.reshape(1, N))


# ---------------------------------------------------------------------------
# Fused bidirectional GRU layer kernel (gate GEMM + both-direction recurrence)
#
# Gate column layout everywhere (interleaved): [r_f, r_b, z_f, z_b, n_f, n_b]
#   * w_ih_cat : (D, 6H)  bf16   gx = x @ w_ih_cat + b_ih   (computed in-kernel)
#   * whh_blk  : (2H, 6H) bf16   block-diagonal, rows 0:H <- h_fwd, H:2H <- h_bwd
# One fori_loop step advances fwd at t=s and bwd at t=T-1-s with a single
# h_cat @ whh_blk MXU matmul on the serial critical path.
# ---------------------------------------------------------------------------
def bigru_kernel(x_ref, wih_ref, bih_ref, whh_ref, bhh_ref, out_ref,
                 gx_ref, hf_ref, hb_ref, *, hidden, batch_first_out, unroll):
    T, B, D = x_ref.shape
    H = hidden
    H6 = 6 * H

    # ---- gate-input GEMM fused in-kernel: gx never round-trips HBM --------
    bih = bih_ref[...].astype(jnp.float32)                   # (1, 6H)
    gx = jnp.dot(x_ref[...].reshape(T * B, D).astype(MATMUL_DTYPE),
                 wih_ref[...], preferred_element_type=jnp.float32) + bih
    gx_ref[...] = gx.reshape(T, B, H6)

    # fwd columns are the even H-blocks of the interleaved layout.
    col = lax.broadcasted_iota(jnp.int32, (1, H6), 1)
    fwd_mask = (col % (2 * H)) < H

    whh = whh_ref[...]                                       # (2H, 6H) bf16
    bhh = bhh_ref[...].astype(jnp.float32)                   # (1, 6H)

    def step(s, h_cat):                                      # h_cat: (B, 2H) f32
        t_b = T - 1 - s
        gx_s = gx_ref[s]                                     # (B, 6H)
        gx_tb = gx_ref[t_b]                                  # (B, 6H)
        g_x = jnp.where(fwd_mask, gx_s, gx_tb)               # fwd cols from t=s,
                                                             # bwd cols from t=T-1-s
        gh = jnp.dot(h_cat.astype(MATMUL_DTYPE), whh,
                     preferred_element_type=jnp.float32) + bhh
        rz = _sigmoid(g_x[:, 0:4 * H] + gh[:, 0:4 * H])      # one sigmoid, 4H wide
        r = rz[:, 0:2 * H]
        z = rz[:, 2 * H:4 * H]
        # PyTorch GRU: n = tanh(W_in x + b_in + r * (W_hn h + b_hn))
        n = jnp.tanh(g_x[:, 4 * H:H6] + r * gh[:, 4 * H:H6])
        h_new = (1.0 - z) * n + z * h_cat                    # (B, 2H)
        hf_ref[s] = h_new[:, 0:H]
        hb_ref[t_b] = h_new[:, H:2 * H]
        return h_new

    h0 = jnp.zeros((B, 2 * H), jnp.float32)
    lax.fori_loop(0, T, step, h0, unroll=unroll)

    # Lane-dense writeback after the loop.
    hf = hf_ref[...]                                         # (T, B, H)
    hb = hb_ref[...]                                         # (T, B, H)
    if batch_first_out:
        # Last layer emits (B, T, 2H) directly -> no XLA transpose before flatten.
        for b in range(B):
            out_ref[b] = jnp.concatenate([hf[:, b, :], hb[:, b, :]],
                                         axis=-1).astype(out_ref.dtype)
    else:
        out_ref[...] = jnp.concatenate([hf, hb], axis=-1).astype(out_ref.dtype)


def bigru_layer(x_tm, w_ih_cat, b_ih_cat, whh_blk, bhh_cat, *, batch_first_out):
    # x_tm: (T, B, D) time-major -> (T, B, 2H)   (or (B, T, 2H) if batch_first_out)
    T, B, D = x_tm.shape
    H6 = w_ih_cat.shape[1]
    H = H6 // 6
    unroll = int(max(1, min(T, 8 if B * H <= 4096 else 4)))
    if batch_first_out:
        out_shape = jax.ShapeDtypeStruct((B, T, 2 * H), jnp.float32)
    else:
        out_shape = jax.ShapeDtypeStruct((T, B, 2 * H), jnp.float32)
    return pl.pallas_call(
        functools.partial(bigru_kernel, hidden=H,
                          batch_first_out=batch_first_out, unroll=unroll),
        out_shape=out_shape,
        in_specs=[_vmem_spec()] * 5,
        out_specs=_vmem_spec(),
        scratch_shapes=[
            pltpu.VMEM((T, B, H6), jnp.float32),   # gx (gate inputs, both dirs)
            pltpu.VMEM((T, B, H), jnp.float32),    # forward hidden states
            pltpu.VMEM((T, B, H), jnp.float32),    # backward hidden states
        ],
        compiler_params=pltpu.CompilerParams(vmem_limit_bytes=VMEM_LIMIT),
    )(x_tm, w_ih_cat, b_ih_cat.reshape(1, H6), whh_blk, bhh_cat.reshape(1, H6))


# ---------------------------------------------------------------------------
# Fused small MLP-head tail: chain all tiny head layers in one pallas_call.
# ---------------------------------------------------------------------------
def mlp_tail_kernel(*refs, n_layers):
    x_ref = refs[0]
    out_ref = refs[-1]
    h = x_ref[...].astype(jnp.float32)
    for i in range(n_layers):
        w = refs[1 + 2 * i][...]
        b = refs[2 + 2 * i][...].astype(jnp.float32)
        h = jnp.dot(h.astype(MATMUL_DTYPE), w,
                    preferred_element_type=jnp.float32) + b
        if i < n_layers - 1:
            h = _gelu_exact(h)
    out_ref[...] = h.astype(out_ref.dtype)


def mlp_tail(x, layers):
    Bm = x.shape[0]
    out_dim = layers[-1][1].shape[0]
    args = [x]
    for w_t, b in layers:
        args.append(w_t)
        args.append(b.reshape(1, -1))
    return pl.pallas_call(
        functools.partial(mlp_tail_kernel, n_layers=len(layers)),
        out_shape=jax.ShapeDtypeStruct((Bm, out_dim), jnp.float32),
        in_specs=[_vmem_spec()] * len(args),
        out_specs=_vmem_spec(),
        compiler_params=pltpu.CompilerParams(vmem_limit_bytes=VMEM_LIMIT),
    )(*args)


# ---------------------------------------------------------------------------
# Full model forward
# ---------------------------------------------------------------------------
def grulob_forward(x, params):
    # x: (B, T, F)
    B = x.shape[0]

    # BiN + input projection, emitted time-major (T, B, H).
    h = bin_proj(x, params["bin"], params["proj_wt"], params["proj_b"])

    # Bidirectional GRU stack (time-major internally; last layer emits (B,T,2H)).
    n_layers = len(params["gru"])
    for li, (w_ih, b_ih, whh_blk, bhh) in enumerate(params["gru"]):
        h = bigru_layer(h, w_ih, b_ih, whh_blk, bhh,
                        batch_first_out=(li == n_layers - 1))
        # TODO(synk): inter-layer GRU dropout (p=0.1) is training-only; eval forward omits it.

    # Flatten (matches PyTorch output.reshape(B, -1)) and cast once to bf16.
    flat = h.reshape(B, -1).astype(MATMUL_DTYPE)

    final = params["final"]
    if len(final) > 1:
        # First (large) head layer streams its weight tiles; GELU fused in.
        w_t, b = final[0]
        flat = linear(flat, w_t, b, activation="gelu").astype(MATMUL_DTYPE)
        tail = final[1:]
    else:
        tail = final
    # Remaining tiny layers run as one fused kernel (GELU on all but last).
    return mlp_tail(flat, tail)                               # (B, output_dim)


# ---------------------------------------------------------------------------
# Deterministic parameter init (synthetic — shapes match the PyTorch module;
# dense weights stored pre-transposed / pre-packed and pre-cast to bf16)
# ---------------------------------------------------------------------------
def _interleave_gate_cols(w_f, w_b, H):
    # w_*: (3H, D) PyTorch layout (row gate order [r, z, n]).
    # Returns (D, 6H) with column blocks [r_f, r_b, z_f, z_b, n_f, n_b].
    parts = []
    for g in range(3):
        parts.append(w_f[g * H:(g + 1) * H])
        parts.append(w_b[g * H:(g + 1) * H])
    return jnp.concatenate(parts, axis=0).T


def _interleave_gate_vec(v_f, v_b, H):
    parts = []
    for g in range(3):
        parts.append(v_f[g * H:(g + 1) * H])
        parts.append(v_b[g * H:(g + 1) * H])
    return jnp.concatenate(parts, axis=0)


def _blockdiag_hh(w_hh_f, w_hh_b, H):
    # (3H, H) per direction -> (2H, 6H) interleaved block-diagonal:
    # rows 0:H multiply h_fwd, rows H:2H multiply h_bwd.
    blk = jnp.zeros((2 * H, 6 * H), jnp.float32)
    for g in range(3):
        blk = blk.at[0:H, (2 * g) * H:(2 * g + 1) * H].set(
            w_hh_f[g * H:(g + 1) * H].T)
        blk = blk.at[H:2 * H, (2 * g + 1) * H:(2 * g + 2) * H].set(
            w_hh_b[g * H:(g + 1) * H].T)
    return blk


def init_params(key, hidden_dim, num_layers, seq_size, num_features, output_dim):
    keys = iter(jax.random.split(key, 256))

    def nrm(shape, scale=0.1):
        return (scale * jax.random.normal(next(keys), shape)).astype(jnp.float32)

    H = hidden_dim
    params = {}

    # BiN: l1/B1 per-timestep, l2/B2 per-feature, y1=y2=0.5
    params["bin"] = (
        1.0 + nrm((seq_size,)),
        jnp.zeros((seq_size,), jnp.float32),
        1.0 + nrm((num_features,)),
        jnp.zeros((num_features,), jnp.float32),
        jnp.array([0.5, 0.5], jnp.float32),
    )

    # input_proj: Linear(num_features, hidden_dim) -> stored as (F, H) bf16
    params["proj_wt"] = nrm((hidden_dim, num_features)).T.astype(MATMUL_DTYPE)
    params["proj_b"] = nrm((hidden_dim,))

    # bidirectional multi-layer GRU (PyTorch weight layout, gate order [r,z,n]),
    # re-packed into the interleaved / block-diagonal layouts used in-kernel.
    gru = []
    for layer in range(num_layers):
        d_in = hidden_dim if layer == 0 else 2 * hidden_dim
        w_ih_f = nrm((3 * H, d_in))
        w_ih_b = nrm((3 * H, d_in))
        b_ih_f = nrm((3 * H,))
        b_ih_b = nrm((3 * H,))
        w_hh_f = nrm((3 * H, H))
        w_hh_b = nrm((3 * H, H))
        b_hh_f = nrm((3 * H,))
        b_hh_b = nrm((3 * H,))
        gru.append((
            _interleave_gate_cols(w_ih_f, w_ih_b, H).astype(MATMUL_DTYPE),
            _interleave_gate_vec(b_ih_f, b_ih_b, H),
            _blockdiag_hh(w_hh_f, w_hh_b, H).astype(MATMUL_DTYPE),
            _interleave_gate_vec(b_hh_f, b_hh_b, H),
        ))
    params["gru"] = gru

    # final head: while total_dim > 128: Linear(d, d//4) + GELU; then Linear(d, out)
    final = []
    total_dim = hidden_dim * 2 * seq_size
    while total_dim > 128:
        w = nrm((total_dim // 4, total_dim))
        final.append((w.T.astype(MATMUL_DTYPE), nrm((total_dim // 4,))))
        total_dim //= 4
    w = nrm((output_dim, total_dim))
    final.append((w.T.astype(MATMUL_DTYPE), nrm((output_dim,))))
    params["final"] = final
    return params


if __name__ == "__main__":
    batch, seq_size, num_features = 2, 8, 16
    hidden_dim, num_layers, output_dim = 32, 2, 3

    key = jax.random.PRNGKey(0)
    kx, kp = jax.random.split(key)
    x = jax.random.normal(kx, (batch, seq_size, num_features), dtype=jnp.float32)
    params = init_params(kp, hidden_dim, num_layers, seq_size, num_features,
                         output_dim)

    fwd = jax.jit(grulob_forward)
    out = jax.block_until_ready(fwd(x, params))
    assert out.shape == (batch, output_dim), out.shape
    assert jnp.all(jnp.isfinite(out))
    print("KERNEL_OK")
</pallas_src>

<mosaic_0001>
module attributes {stable_mosaic.version = 11 : i64} {
  func.func @bin_proj_kernel(%arg0: memref<2x8x16xf32, #tpu.memory_space<vmem>>, %arg1: memref<1x8x1xf32, #tpu.memory_space<vmem>>, %arg2: memref<1x8x1xf32, #tpu.memory_space<vmem>>, %arg3: memref<1x1x16xf32, #tpu.memory_space<vmem>>, %arg4: memref<1x1x16xf32, #tpu.memory_space<vmem>>, %arg5: memref<2xf32, #tpu.memory_space<smem>>, %arg6: memref<16x32xbf16, #tpu.memory_space<vmem>>, %arg7: memref<1x32xf32, #tpu.memory_space<vmem>>, %arg8: memref<8x2x32xf32, #tpu.memory_space<vmem>>) attributes {dimension_semantics = [], scalar_prefetch = 0 : i64, scratch_operands = 0 : i64, tpu.core_type = #tpu.core_type<tc>} {
    %c0 = arith.constant 0 : index
    %c0_0 = arith.constant 0 : index
    %c0_1 = arith.constant 0 : index
    %0 = vector.load %arg0[%c0, %c0_0, %c0_1] : memref<2x8x16xf32, #tpu.memory_space<vmem>>, vector<2x8x16xf32>
    %1 = arith.mulf %0, %0 : vector<2x8x16xf32>
    %cst = arith.constant dense<0.000000e+00> : vector<2x16xf32>
    %2 = vector.multi_reduction <add>, %0, %cst [1] : vector<2x8x16xf32> to vector<2x16xf32>
    %3 = vector.shape_cast %2 : vector<2x16xf32> to vector<2x1x16xf32>
    %cst_2 = arith.constant 8.000000e+00 : f32
    %4 = vector.broadcast %cst_2 : f32 to vector<2x1x16xf32>
    %5 = arith.divf %3, %4 : vector<2x1x16xf32>
    %cst_3 = arith.constant dense<0.000000e+00> : vector<2x16xf32>
    %6 = vector.multi_reduction <add>, %1, %cst_3 [1] : vector<2x8x16xf32> to vector<2x16xf32>
    %7 = vector.shape_cast %6 : vector<2x16xf32> to vector<2x1x16xf32>
    %cst_4 = arith.constant 8.000000e+00 : f32
    %8 = vector.broadcast %cst_4 : f32 to vector<2x1x16xf32>
    %9 = arith.divf %7, %8 : vector<2x1x16xf32>
    %10 = arith.mulf %5, %5 : vector<2x1x16xf32>
    %11 = arith.subf %9, %10 : vector<2x1x16xf32>
    %cst_5 = arith.constant 1.14285719 : f32
    %12 = vector.broadcast %cst_5 : f32 to vector<2x1x16xf32>
    %13 = arith.mulf %11, %12 : vector<2x1x16xf32>
    %cst_6 = arith.constant 9.99999993E-9 : f32
    %14 = vector.broadcast %cst_6 : f32 to vector<2x1x16xf32>
    %15 = arith.cmpf olt, %13, %14 : vector<2x1x16xf32>
    %cst_7 = arith.constant 9.99999996E-13 : f32
    %16 = vector.broadcast %cst_7 : f32 to vector<2x1x16xf32>
    %17 = arith.maximumf %13, %16 : vector<2x1x16xf32>
    %18 = math.rsqrt %17 : vector<2x1x16xf32>
    %cst_8 = arith.constant 1.000000e+00 : f32
    %19 = vector.broadcast %cst_8 : f32 to vector<2x1x16xf32>
    %20 = arith.select %15, %19, %18 : vector<2x1x16xi1>, vector<2x1x16xf32>
    %c0_9 = arith.constant 0 : index
    %c0_10 = arith.constant 0 : index
    %c0_11 = arith.constant 0 : index
    %21 = vector.load %arg3[%c0_9, %c0_10, %c0_11] : memref<1x1x16xf32, #tpu.memory_space<vmem>>, vector<1x1x16xf32>
    %22 = vector.broadcast %5 : vector<2x1x16xf32> to vector<2x8x16xf32>
    %23 = arith.subf %0, %22 : vector<2x8x16xf32>
    %24 = vector.broadcast %20 : vector<2x1x16xf32> to vector<2x8x16xf32>
    %25 = arith.mulf %23, %24 : vector<2x8x16xf32>
    %26 = vector.broadcast %21 : vector<1x1x16xf32> to vector<2x8x16xf32>
    %27 = arith.mulf %26, %25 : vector<2x8x16xf32>
    %c0_12 = arith.constant 0 : index
    %c0_13 = arith.constant 0 : index
    %c0_14 = arith.constant 0 : index
    %28 = vector.load %arg4[%c0_12, %c0_13, %c0_14] : memref<1x1x16xf32, #tpu.memory_space<vmem>>, vector<1x1x16xf32>
    %29 = vector.broadcast %28 : vector<1x1x16xf32> to vector<2x8x16xf32>
    %30 = arith.addf %27, %29 : vector<2x8x16xf32>
    %cst_15 = arith.constant dense<0.000000e+00> : vector<2x8xf32>
    %31 = vector.multi_reduction <add>, %0, %cst_15 [2] : vector<2x8x16xf32> to vector<2x8xf32>
    %32 = vector.shape_cast %31 : vector<2x8xf32> to vector<2x8x1xf32>
    %cst_16 = arith.constant 1.600000e+01 : f32
    %33 = vector.broadcast %cst_16 : f32 to vector<2x8x1xf32>
    %34 = arith.divf %32, %33 : vector<2x8x1xf32>
    %cst_17 = arith.constant dense<0.000000e+00> : vector<2x8xf32>
    %35 = vector.multi_reduction <add>, %1, %cst_17 [2] : vector<2x8x16xf32> to vector<2x8xf32>
    %36 = vector.shape_cast %35 : vector<2x8xf32> to vector<2x8x1xf32>
    %cst_18 = arith.constant 1.600000e+01 : f32
    %37 = vector.broadcast %cst_18 : f32 to vector<2x8x1xf32>
    %38 = arith.divf %36, %37 : vector<2x8x1xf32>
    %39 = arith.mulf %34, %34 : vector<2x8x1xf32>
    %40 = arith.subf %38, %39 : vector<2x8x1xf32>
    %cst_19 = arith.constant 1.06666672 : f32
    %41 = vector.broadcast %cst_19 : f32 to vector<2x8x1xf32>
    %42 = arith.mulf %40, %41 : vector<2x8x1xf32>
    %cst_20 = arith.constant 9.99999993E-9 : f32
    %43 = vector.broadcast %cst_20 : f32 to vector<2x8x1xf32>
    %44 = arith.cmpf olt, %42, %43 : vector<2x8x1xf32>
    %cst_21 = arith.constant 9.99999996E-13 : f32
    %45 = vector.broadcast %cst_21 : f32 to vector<2x8x1xf32>
    %46 = arith.maximumf %42, %45 : vector<2x8x1xf32>
    %47 = math.rsqrt %46 : vector<2x8x1xf32>
    %cst_22 = arith.constant 1.000000e+00 : f32
    %48 = vector.broadcast %cst_22 : f32 to vector<2x8x1xf32>
    %49 = arith.select %44, %48, %47 : vector<2x8x1xi1>, vector<2x8x1xf32>
    %c0_23 = arith.constant 0 : index
    %c0_24 = arith.constant 0 : index
    %c0_25 = arith.constant 0 : index
    %50 = vector.load %arg1[%c0_23, %c0_24, %c0_25] : memref<1x8x1xf32, #tpu.memory_space<vmem>>, vector<1x8x1xf32>
    %51 = vector.broadcast %34 : vector<2x8x1xf32> to vector<2x8x16xf32>
    %52 = arith.subf %0, %51 : vector<2x8x16xf32>
    %53 = vector.broadcast %49 : vector<2x8x1xf32> to vector<2x8x16xf32>
    %54 = arith.mulf %52, %53 : vector<2x8x16xf32>
    %55 = vector.broadcast %50 : vector<1x8x1xf32> to vector<2x8x16xf32>
    %56 = arith.mulf %55, %54 : vector<2x8x16xf32>
    %c0_26 = arith.constant 0 : index
    %c0_27 = arith.constant 0 : index
    %c0_28 = arith.constant 0 : index
    %57 = vector.load %arg2[%c0_26, %c0_27, %c0_28] : memref<1x8x1xf32, #tpu.memory_space<vmem>>, vector<1x8x1xf32>
    %58 = vector.broadcast %57 : vector<1x8x1xf32> to vector<2x8x16xf32>
    %59 = arith.addf %56, %58 : vector<2x8x16xf32>
    %c0_29 = arith.constant 0 : index
    %60 = memref.load %arg5[%c0_29] : memref<2xf32, #tpu.memory_space<smem>>
    %61 = vector.broadcast %60 : f32 to vector<2x8x16xf32>
    %62 = arith.mulf %61, %59 : vector<2x8x16xf32>
    %c1 = arith.constant 1 : index
    %63 = memref.load %arg5[%c1] : memref<2xf32, #tpu.memory_space<smem>>
    %64 = vector.broadcast %63 : f32 to vector<2x8x16xf32>
    %65 = arith.mulf %64, %30 : vector<2x8x16xf32>
    %66 = arith.addf %62, %65 : vector<2x8x16xf32>
    %c0_30 = arith.constant 0 : index
    %c0_31 = arith.constant 0 : index
    %67 = vector.load %arg7[%c0_30, %c0_31] : memref<1x32xf32, #tpu.memory_space<vmem>>, vector<1x32xf32>
    %68 = vector.shape_cast %66 : vector<2x8x16xf32> to vector<16x16xf32>
    %69 = arith.truncf %68 : vector<16x16xf32> to vector<16x16xbf16>
    %c0_32 = arith.constant 0 : index
    %c0_33 = arith.constant 0 : index
    %70 = vector.load %arg6[%c0_32, %c0_33] : memref<16x32xbf16, #tpu.memory_space<vmem>>, vector<16x32xbf16>
    %cst_34 = arith.constant dense<0.000000e+00> : vector<16x32xf32>
    %71 = tpu.matmul %69, %70, %cst_34 {dimension_numbers = #tpu.dot_dimension_numbers<[1], [0], [0], [1], [0, 0, 1, 1], [], []>} : vector<16x16xbf16>, vector<16x32xbf16>, vector<16x32xf32> -> vector<16x32xf32>
    %72 = vector.broadcast %67 : vector<1x32xf32> to vector<16x32xf32>
    %73 = arith.addf %71, %72 : vector<16x32xf32>
    %74 = vector.shape_cast %73 : vector<16x32xf32> to vector<2x8x32xf32>
    %75 = vector.extract_strided_slice %74 {offsets = [0, 0, 0], sizes = [2, 1, 32], strides = [1, 1, 1]} : vector<2x8x32xf32> to vector<2x1x32xf32>
    %76 = vector.shape_cast %75 : vector<2x1x32xf32> to vector<2x32xf32>
    %c0_35 = arith.constant 0 : index
    %c0_36 = arith.constant 0 : index
    %c0_37 = arith.constant 0 : index
    %77 = vector.load %arg8[%c0_35, %c0_36, %c0_37] : memref<8x2x32xf32, #tpu.memory_space<vmem>>, vector<1x2x32xf32>
    %78 = vector.shape_cast %77 : vector<1x2x32xf32> to vector<2x32xf32>
    %79 = vector.shape_cast %76 : vector<2x32xf32> to vector<1x2x32xf32>
    tpu.vector_store %arg8[%c0_35, %c0_36, %c0_37], %79 {strides = array<i32>} : memref<8x2x32xf32, #tpu.memory_space<vmem>>, vector<1x2x32xf32>,
    %80 = vector.extract_strided_slice %74 {offsets = [0, 1, 0], sizes = [2, 1, 32], strides = [1, 1, 1]} : vector<2x8x32xf32> to vector<2x1x32xf32>
    %81 = vector.shape_cast %80 : vector<2x1x32xf32> to vector<2x32xf32>
    %c1_38 = arith.constant 1 : index
    %c0_39 = arith.constant 0 : index
    %c0_40 = arith.constant 0 : index
    %82 = vector.load %arg8[%c1_38, %c0_39, %c0_40] : memref<8x2x32xf32, #tpu.memory_space<vmem>>, vector<1x2x32xf32>
    %83 = vector.shape_cast %82 : vector<1x2x32xf32> to vector<2x32xf32>
    %84 = vector.shape_cast %81 : vector<2x32xf32> to vector<1x2x32xf32>
    tpu.vector_store %arg8[%c1_38, %c0_39, %c0_40], %84 {strides = array<i32>} : memref<8x2x32xf32, #tpu.memory_space<vmem>>, vector<1x2x32xf32>,
    %85 = vector.extract_strided_slice %74 {offsets = [0, 2, 0], sizes = [2, 1, 32], strides = [1, 1, 1]} : vector<2x8x32xf32> to vector<2x1x32xf32>
    %86 = vector.shape_cast %85 : vector<2x1x32xf32> to vector<2x32xf32>
    %c2 = arith.constant 2 : index
    %c0_41 = arith.constant 0 : index
    %c0_42 = arith.constant 0 : index
    %87 = vector.load %arg8[%c2, %c0_41, %c0_42] : memref<8x2x32xf32, #tpu.memory_space<vmem>>, vector<1x2x32xf32>
    %88 = vector.shape_cast %87 : vector<1x2x32xf32> to vector<2x32xf32>
    %89 = vector.shape_cast %86 : vector<2x32xf32> to vector<1x2x32xf32>
    tpu.vector_store %arg8[%c2, %c0_41, %c0_42], %89 {strides = array<i32>} : memref<8x2x32xf32, #tpu.memory_space<vmem>>, vector<1x2x32xf32>,
    %90 = vector.extract_strided_slice %74 {offsets = [0, 3, 0], sizes = [2, 1, 32], strides = [1, 1, 1]} : vector<2x8x32xf32> to vector<2x1x32xf32>
    %91 = vector.shape_cast %90 : vector<2x1x32xf32> to vector<2x32xf32>
    %c3 = arith.constant 3 : index
    %c0_43 = arith.constant 0 : index
    %c0_44 = arith.constant 0 : index
    %92 = vector.load %arg8[%c3, %c0_43, %c0_44] : memref<8x2x32xf32, #tpu.memory_space<vmem>>, vector<1x2x32xf32>
    %93 = vector.shape_cast %92 : vector<1x2x32xf32> to vector<2x32xf32>
    %94 = vector.shape_cast %91 : vector<2x32xf32> to vector<1x2x32xf32>
    tpu.vector_store %arg8[%c3, %c0_43, %c0_44], %94 {strides = array<i32>} : memref<8x2x32xf32, #tpu.memory_space<vmem>>, vector<1x2x32xf32>,
    %95 = vector.extract_strided_slice %74 {offsets = [0, 4, 0], sizes = [2, 1, 32], strides = [1, 1, 1]} : vector<2x8x32xf32> to vector<2x1x32xf32>
    %96 = vector.shape_cast %95 : vector<2x1x32xf32> to vector<2x32xf32>
    %c4 = arith.constant 4 : index
    %c0_45 = arith.constant 0 : index
    %c0_46 = arith.constant 0 : index
    %97 = vector.load %arg8[%c4, %c0_45, %c0_46] : memref<8x2x32xf32, #tpu.memory_space<vmem>>, vector<1x2x32xf32>
    %98 = vector.shape_cast %97 : vector<1x2x32xf32> to vector<2x32xf32>
    %99 = vector.shape_cast %96 : vector<2x32xf32> to vector<1x2x32xf32>
    tpu.vector_store %arg8[%c4, %c0_45, %c0_46], %99 {strides = array<i32>} : memref<8x2x32xf32, #tpu.memory_space<vmem>>, vector<1x2x32xf32>,
    %100 = vector.extract_strided_slice %74 {offsets = [0, 5, 0], sizes = [2, 1, 32], strides = [1, 1, 1]} : vector<2x8x32xf32> to vector<2x1x32xf32>
    %101 = vector.shape_cast %100 : vector<2x1x32xf32> to vector<2x32xf32>
    %c5 = arith.constant 5 : index
    %c0_47 = arith.constant 0 : index
    %c0_48 = arith.constant 0 : index
    %102 = vector.load %arg8[%c5, %c0_47, %c0_48] : memref<8x2x32xf32, #tpu.memory_space<vmem>>, vector<1x2x32xf32>
    %103 = vector.shape_cast %102 : vector<1x2x32xf32> to vector<2x32xf32>
    %104 = vector.shape_cast %101 : vector<2x32xf32> to vector<1x2x32xf32>
    tpu.vector_store %arg8[%c5, %c0_47, %c0_48], %104 {strides = array<i32>} : memref<8x2x32xf32, #tpu.memory_space<vmem>>, vector<1x2x32xf32>,
    %105 = vector.extract_strided_slice %74 {offsets = [0, 6, 0], sizes = [2, 1, 32], strides = [1, 1, 1]} : vector<2x8x32xf32> to vector<2x1x32xf32>
    %106 = vector.shape_cast %105 : vector<2x1x32xf32> to vector<2x32xf32>
    %c6 = arith.constant 6 : index
    %c0_49 = arith.constant 0 : index
    %c0_50 = arith.constant 0 : index
    %107 = vector.load %arg8[%c6, %c0_49, %c0_50] : memref<8x2x32xf32, #tpu.memory_space<vmem>>, vector<1x2x32xf32>
    %108 = vector.shape_cast %107 : vector<1x2x32xf32> to vector<2x32xf32>
    %109 = vector.shape_cast %106 : vector<2x32xf32> to vector<1x2x32xf32>
    tpu.vector_store %arg8[%c6, %c0_49, %c0_50], %109 {strides = array<i32>} : memref<8x2x32xf32, #tpu.memory_space<vmem>>, vector<1x2x32xf32>,
    %110 = vector.extract_strided_slice %74 {offsets = [0, 7, 0], sizes = [2, 1, 32], strides = [1, 1, 1]} : vector<2x8x32xf32> to vector<2x1x32xf32>
    %111 = vector.shape_cast %110 : vector<2x1x32xf32> to vector<2x32xf32>
    %c7 = arith.constant 7 : index
    %c0_51 = arith.constant 0 : index
    %c0_52 = arith.constant 0 : index
    %112 = vector.load %arg8[%c7, %c0_51, %c0_52] : memref<8x2x32xf32, #tpu.memory_space<vmem>>, vector<1x2x32xf32>
    %113 = vector.shape_cast %112 : vector<1x2x32xf32> to vector<2x32xf32>
    %114 = vector.shape_cast %111 : vector<2x32xf32> to vector<1x2x32xf32>
    tpu.vector_store %arg8[%c7, %c0_51, %c0_52], %114 {strides = array<i32>} : memref<8x2x32xf32, #tpu.memory_space<vmem>>, vector<1x2x32xf32>,
    return
  }
}

module attributes {stable_mosaic.version = 11 : i64} {
  func.func @bigru_kernel(%arg0: memref<8x2x64xf32, #tpu.memory_space<vmem>>, %arg1: memref<64x192xbf16, #tpu.memory_space<vmem>>, %arg2: memref<1x192xf32, #tpu.memory_space<vmem>>, %arg3: memref<64x192xbf16, #tpu.memory_space<vmem>>, %arg4: memref<1x192xf32, #tpu.memory_space<vmem>>, %arg5: memref<2x8x64xf32, #tpu.memory_space<vmem>>, %arg6: memref<8x2x192xf32, #tpu.memory_space<vmem>>, %arg7: memref<8x2x32xf32, #tpu.memory_space<vmem>>, %arg8: memref<8x2x32xf32, #tpu.memory_space<vmem>>) attributes {dimension_semantics = [], scalar_prefetch = 0 : i64, scratch_operands = 3 : i64, tpu.core_type = #tpu.core_type<tc>} {
    %c0 = arith.constant 0 : index
    %c0_0 = arith.constant 0 : index
    %0 = vector.load %arg2[%c0, %c0_0] : memref<1x192xf32, #tpu.memory_space<vmem>>, vector<1x192xf32>
    %c0_1 = arith.constant 0 : index
    %c0_2 = arith.constant 0 : index
    %c0_3 = arith.constant 0 : index
    %1 = vector.load %arg0[%c0_1, %c0_2, %c0_3] : memref<8x2x64xf32, #tpu.memory_space<vmem>>, vector<8x2x64xf32>
    %2 = vector.shape_cast %1 : vector<8x2x64xf32> to vector<16x64xf32>
    %3 = arith.truncf %2 : vector<16x64xf32> to vector<16x64xbf16>
    %c0_4 = arith.constant 0 : index
    %c0_5 = arith.constant 0 : index
    %4 = vector.load %arg1[%c0_4, %c0_5] : memref<64x192xbf16, #tpu.memory_space<vmem>>, vector<64x192xbf16>
    %cst = arith.constant dense<0.000000e+00> : vector<16x192xf32>
    %5 = tpu.matmul %3, %4, %cst {dimension_numbers = #tpu.dot_dimension_numbers<[1], [0], [0], [1], [0, 0, 1, 1], [], []>} : vector<16x64xbf16>, vector<64x192xbf16>, vector<16x192xf32> -> vector<16x192xf32>
    %6 = vector.broadcast %0 : vector<1x192xf32> to vector<16x192xf32>
    %7 = arith.addf %5, %6 : vector<16x192xf32>
    %8 = vector.shape_cast %7 : vector<16x192xf32> to vector<8x2x192xf32>
    %c0_6 = arith.constant 0 : index
    %c0_7 = arith.constant 0 : index
    %c0_8 = arith.constant 0 : index
    %9 = vector.load %arg6[%c0_6, %c0_7, %c0_8] : memref<8x2x192xf32, #tpu.memory_space<vmem>>, vector<8x2x192xf32>
    tpu.vector_store %arg6[%c0_6, %c0_7, %c0_8], %8 {strides = array<i32>} : memref<8x2x192xf32, #tpu.memory_space<vmem>>, vector<8x2x192xf32>,
    %10 = tpu.iota {dimensions = array<i32: 1>} : vector<1x192xi32>
    %c64_i32 = arith.constant 64 : i32
    %c0_i32 = arith.constant 0 : i32
    %11 = arith.cmpi eq, %c64_i32, %c0_i32 : i32
    %c1_i32 = arith.constant 1 : i32
    %12 = arith.select %11, %c1_i32, %c64_i32 : i32
    %13 = vector.broadcast %12 : i32 to vector<1x192xi32>
    %14 = arith.remsi %10, %13 : vector<1x192xi32>
    %c0_i32_9 = arith.constant 0 : i32
    %15 = vector.broadcast %c0_i32_9 : i32 to vector<1x192xi32>
    %16 = arith.cmpi ne, %14, %15 : vector<1x192xi32>
    %c0_i32_10 = arith.constant 0 : i32
    %17 = vector.broadcast %c0_i32_10 : i32 to vector<1x192xi32>
    %18 = arith.cmpi slt, %14, %17 : vector<1x192xi32>
    %c0_i32_11 = arith.constant 0 : i32
    %19 = arith.cmpi slt, %12, %c0_i32_11 : i32
    %20 = vector.broadcast %19 : i1 to vector<1x192xi1>
    %21 = vector.broadcast %20 : vector<1x192xi1> to vector<1x192xi1>
    %22 = arith.xori %18, %21 : vector<1x192xi1>
    %23 = arith.andi %22, %16 : vector<1x192xi1>
    %24 = vector.broadcast %12 : i32 to vector<1x192xi32>
    %25 = arith.addi %14, %24 : vector<1x192xi32>
    %26 = arith.select %23, %25, %14 : vector<1x192xi1>, vector<1x192xi32>
    %c32_i32 = arith.constant 32 : i32
    %27 = vector.broadcast %c32_i32 : i32 to vector<1x192xi32>
    %28 = arith.cmpi slt, %26, %27 : vector<1x192xi32>
    %c0_12 = arith.constant 0 : index
    %c0_13 = arith.constant 0 : index
    %29 = vector.load %arg3[%c0_12, %c0_13] : memref<64x192xbf16, #tpu.memory_space<vmem>>, vector<64x192xbf16>
    %c0_14 = arith.constant 0 : index
    %c0_15 = arith.constant 0 : index
    %30 = vector.load %arg4[%c0_14, %c0_15] : memref<1x192xf32, #tpu.memory_space<vmem>>, vector<1x192xf32>
    %cst_16 = arith.constant 0.000000e+00 : f32
    %31 = vector.broadcast %cst_16 : f32 to vector<2x64xf32>
    %c0_i32_17 = arith.constant 0 : i32
    %c7_i32 = arith.constant 7 : i32
    %32 = arith.subi %c7_i32, %c0_i32_17 : i32
    %33 = arith.index_cast %c0_i32_17 : i32 to index
    %c0_18 = arith.constant 0 : index
    %c0_19 = arith.constant 0 : index
    %34 = vector.load %arg6[%33, %c0_18, %c0_19] : memref<8x2x192xf32, #tpu.memory_space<vmem>>, vector<1x2x192xf32>
    %35 = vector.shape_cast %34 : vector<1x2x192xf32> to vector<2x192xf32>
    %36 = arith.index_cast %32 : i32 to index
    %c0_20 = arith.constant 0 : index
    %c0_21 = arith.constant 0 : index
    %37 = vector.load %arg6[%36, %c0_20, %c0_21] : memref<8x2x192xf32, #tpu.memory_space<vmem>>, vector<1x2x192xf32>
    %38 = vector.shape_cast %37 : vector<1x2x192xf32> to vector<2x192xf32>
    %39 = vector.shape_cast %28 : vector<1x192xi1> to vector<1x192xi1>
    %40 = vector.broadcast %39 : vector<1x192xi1> to vector<2x192xi1>
    %41 = arith.select %40, %35, %38 : vector<2x192xi1>, vector<2x192xf32>
    %42 = arith.truncf %31 : vector<2x64xf32> to vector<2x64xbf16>
    %cst_22 = arith.constant dense<0.000000e+00> : vector<2x192xf32>
    %43 = tpu.matmul %42, %29, %cst_22 {dimension_numbers = #tpu.dot_dimension_numbers<[1], [0], [0], [1], [0, 0, 1, 1], [], []>} : vector<2x64xbf16>, vector<64x192xbf16>, vector<2x192xf32> -> vector<2x192xf32>
    %44 = vector.broadcast %30 : vector<1x192xf32> to vector<2x192xf32>
    %45 = arith.addf %43, %44 : vector<2x192xf32>
    %46 = vector.extract_strided_slice %41 {offsets = [0, 0], sizes = [2, 128], strides = [1, 1]} : vector<2x192xf32> to vector<2x128xf32>
    %47 = vector.extract_strided_slice %45 {offsets = [0, 0], sizes = [2, 128], strides = [1, 1]} : vector<2x192xf32> to vector<2x128xf32>
    %48 = arith.addf %46, %47 : vector<2x128xf32>
    %cst_23 = arith.constant 0.000000e+00 : f32
    %49 = vector.broadcast %cst_23 : f32 to vector<2x128xf32>
    %50 = arith.subf %49, %48 : vector<2x128xf32>
    %51 = math.exp %50 : vector<2x128xf32>
    %cst_24 = arith.constant 1.000000e+00 : f32
    %52 = vector.broadcast %cst_24 : f32 to vector<2x128xf32>
    %53 = arith.addf %52, %51 : vector<2x128xf32>
    %cst_25 = arith.constant 1.000000e+00 : f32
    %54 = vector.broadcast %cst_25 : f32 to vector<2x128xf32>
    %55 = arith.divf %54, %53 : vector<2x128xf32>
    %56 = vector.extract_strided_slice %55 {offsets = [0, 0], sizes = [2, 64], strides = [1, 1]} : vector<2x128xf32> to vector<2x64xf32>
    %57 = vector.extract_strided_slice %55 {offsets = [0, 64], sizes = [2, 64], strides = [1, 1]} : vector<2x128xf32> to vector<2x64xf32>
    %58 = vector.extract_strided_slice %41 {offsets = [0, 128], sizes = [2, 64], strides = [1, 1]} : vector<2x192xf32> to vector<2x64xf32>
    %59 = vector.extract_strided_slice %45 {offsets = [0, 128], sizes = [2, 64], strides = [1, 1]} : vector<2x192xf32> to vector<2x64xf32>
    %60 = arith.mulf %56, %59 : vector<2x64xf32>
    %61 = arith.addf %58, %60 : vector<2x64xf32>
    %62 = math.tanh %61 : vector<2x64xf32>
    %cst_26 = arith.constant 1.000000e+00 : f32
    %63 = vector.broadcast %cst_26 : f32 to vector<2x64xf32>
    %64 = arith.subf %63, %57 : vector<2x64xf32>
    %65 = arith.mulf %64, %62 : vector<2x64xf32>
    %66 = arith.mulf %57, %31 : vector<2x64xf32>
    %67 = arith.addf %65, %66 : vector<2x64xf32>
    %68 = vector.extract_strided_slice %67 {offsets = [0, 0], sizes = [2, 32], strides = [1, 1]} : vector<2x64xf32> to vector<2x32xf32>
    %69 = arith.index_cast %c0_i32_17 : i32 to index
    %c0_27 = arith.constant 0 : index
    %c0_28 = arith.constant 0 : index
    %70 = vector.load %arg7[%69, %c0_27, %c0_28] : memref<8x2x32xf32, #tpu.memory_space<vmem>>, vector<1x2x32xf32>
    %71 = vector.shape_cast %70 : vector<1x2x32xf32> to vector<2x32xf32>
    %72 = vector.shape_cast %68 : vector<2x32xf32> to vector<1x2x32xf32>
    tpu.vector_store %arg7[%69, %c0_27, %c0_28], %72 {strides = array<i32>} : memref<8x2x32xf32, #tpu.memory_space<vmem>>, vector<1x2x32xf32>,
    %73 = vector.extract_strided_slice %67 {offsets = [0, 32], sizes = [2, 32], strides = [1, 1]} : vector<2x64xf32> to vector<2x32xf32>
    %74 = arith.index_cast %32 : i32 to index
    %c0_29 = arith.constant 0 : index
    %c0_30 = arith.constant 0 : index
    %75 = vector.load %arg8[%74, %c0_29, %c0_30] : memref<8x2x32xf32, #tpu.memory_space<vmem>>, vector<1x2x32xf32>
    %76 = vector.shape_cast %75 : vector<1x2x32xf32> to vector<2x32xf32>
    %77 = vector.shape_cast %73 : vector<2x32xf32> to vector<1x2x32xf32>
    tpu.vector_store %arg8[%74, %c0_29, %c0_30], %77 {strides = array<i32>} : memref<8x2x32xf32, #tpu.memory_space<vmem>>, vector<1x2x32xf32>,
    %c1_i32_31 = arith.constant 1 : i32
    %c7_i32_32 = arith.constant 7 : i32
    %78 = arith.subi %c7_i32_32, %c1_i32_31 : i32
    %79 = arith.index_cast %c1_i32_31 : i32 to index
    %c0_33 = arith.constant 0 : index
    %c0_34 = arith.constant 0 : index
    %80 = vector.load %arg6[%79, %c0_33, %c0_34] : memref<8x2x192xf32, #tpu.memory_space<vmem>>, vector<1x2x192xf32>
    %81 = vector.shape_cast %80 : vector<1x2x192xf32> to vector<2x192xf32>
    %82 = arith.index_cast %78 : i32 to index
    %c0_35 = arith.constant 0 : index
    %c0_36 = arith.constant 0 : index
    %83 = vector.load %arg6[%82, %c0_35, %c0_36] : memref<8x2x192xf32, #tpu.memory_space<vmem>>, vector<1x2x192xf32>
    %84 = vector.shape_cast %83 : vector<1x2x192xf32> to vector<2x192xf32>
    %85 = vector.shape_cast %28 : vector<1x192xi1> to vector<1x192xi1>
    %86 = vector.broadcast %85 : vector<1x192xi1> to vector<2x192xi1>
    %87 = arith.select %86, %81, %84 : vector<2x192xi1>, vector<2x192xf32>
    %88 = arith.truncf %67 : vector<2x64xf32> to vector<2x64xbf16>
    %cst_37 = arith.constant dense<0.000000e+00> : vector<2x192xf32>
    %89 = tpu.matmul %88, %29, %cst_37 {dimension_numbers = #tpu.dot_dimension_numbers<[1], [0], [0], [1], [0, 0, 1, 1], [], []>} : vector<2x64xbf16>, vector<64x192xbf16>, vector<2x192xf32> -> vector<2x192xf32>
    %90 = vector.broadcast %30 : vector<1x192xf32> to vector<2x192xf32>
    %91 = arith.addf %89, %90 : vector<2x192xf32>
    %92 = vector.extract_strided_slice %87 {offsets = [0, 0], sizes = [2, 128], strides = [1, 1]} : vector<2x192xf32> to vector<2x128xf32>
    %93 = vector.extract_strided_slice %91 {offsets = [0, 0], sizes = [2, 128], strides = [1, 1]} : vector<2x192xf32> to vector<2x128xf32>
    %94 = arith.addf %92, %93 : vector<2x128xf32>
    %cst_38 = arith.constant 0.000000e+00 : f32
    %95 = vector.broadcast %cst_38 : f32 to vector<2x128xf32>
    %96 = arith.subf %95, %94 : vector<2x128xf32>
    %97 = math.exp %96 : vector<2x128xf32>
    %cst_39 = arith.constant 1.000000e+00 : f32
    %98 = vector.broadcast %cst_39 : f32 to vector<2x128xf32>
    %99 = arith.addf %98, %97 : vector<2x128xf32>
    %cst_40 = arith.constant 1.000000e+00 : f32
    %100 = vector.broadcast %cst_40 : f32 to vector<2x128xf32>
    %101 = arith.divf %100, %99 : vector<2x128xf32>
    %102 = vector.extract_strided_slice %101 {offsets = [0, 0], sizes = [2, 64], strides = [1, 1]} : vector<2x128xf32> to vector<2x64xf32>
    %103 = vector.extract_strided_slice %101 {offsets = [0, 64], sizes = [2, 64], strides = [1, 1]} : vector<2x128xf32> to vector<2x64xf32>
    %104 = vector.extract_strided_slice %87 {offsets = [0, 128], sizes = [2, 64], strides = [1, 1]} : vector<2x192xf32> to vector<2x64xf32>
    %105 = vector.extract_strided_slice %91 {offsets = [0, 128], sizes = [2, 64], strides = [1, 1]} : vector<2x192xf32> to vector<2x64xf32>
    %106 = arith.mulf %102, %105 : vector<2x64xf32>
    %107 = arith.addf %104, %106 : vector<2x64xf32>
    %108 = math.tanh %107 : vector<2x64xf32>
    %cst_41 = arith.constant 1.000000e+00 : f32
    %109 = vector.broadcast %cst_41 : f32 to vector<2x64xf32>
    %110 = arith.subf %109, %103 : vector<2x64xf32>
    %111 = arith.mulf %110, %108 : vector<2x64xf32>
    %112 = arith.mulf %103, %67 : vector<2x64xf32>
    %113 = arith.addf %111, %112 : vector<2x64xf32>
    %114 = vector.extract_strided_slice %113 {offsets = [0, 0], sizes = [2, 32], strides = [1, 1]} : vector<2x64xf32> to vector<2x32xf32>
    %115 = arith.index_cast %c1_i32_31 : i32 to index
    %c0_42 = arith.constant 0 : index
    %c0_43 = arith.constant 0 : index
    %116 = vector.load %arg7[%115, %c0_42, %c0_43] : memref<8x2x32xf32, #tpu.memory_space<vmem>>, vector<1x2x32xf32>
    %117 = vector.shape_cast %116 : vector<1x2x32xf32> to vector<2x32xf32>
    %118 = vector.shape_cast %114 : vector<2x32xf32> to vector<1x2x32xf32>
    tpu.vector_store %arg7[%115, %c0_42, %c0_43], %118 {strides = array<i32>} : memref<8x2x32xf32, #tpu.memory_space<vmem>>, vector<1x2x32xf32>,
    %119 = vector.extract_strided_slice %113 {offsets = [0, 32], sizes = [2, 32], strides = [1, 1]} : vector<2x64xf32> to vector<2x32xf32>
    %120 = arith.index_cast %78 : i32 to index
    %c0_44 = arith.constant 0 : index
    %c0_45 = arith.constant 0 : index
    %121 = vector.load %arg8[%120, %c0_44, %c0_45] : memref<8x2x32xf32, #tpu.memory_space<vmem>>, vector<1x2x32xf32>
    %122 = vector.shape_cast %121 : vector<1x2x32xf32> to vector<2x32xf32>
    %123 = vector.shape_cast %119 : vector<2x32xf32> to vector<1x2x32xf32>
    tpu.vector_store %arg8[%120, %c0_44, %c0_45], %123 {strides = array<i32>} : memref<8x2x32xf32, #tpu.memory_space<vmem>>, vector<1x2x32xf32>,
    %c2_i32 = arith.constant 2 : i32
    %c7_i32_46 = arith.constant 7 : i32
    %124 = arith.subi %c7_i32_46, %c2_i32 : i32
    %125 = arith.index_cast %c2_i32 : i32 to index
    %c0_47 = arith.constant 0 : index
    %c0_48 = arith.constant 0 : index
    %126 = vector.load %arg6[%125, %c0_47, %c0_48] : memref<8x2x192xf32, #tpu.memory_space<vmem>>, vector<1x2x192xf32>
    %127 = vector.shape_cast %126 : vector<1x2x192xf32> to vector<2x192xf32>
    %128 = arith.index_cast %124 : i32 to index
    %c0_49 = arith.constant 0 : index
    %c0_50 = arith.constant 0 : index
    %129 = vector.load %arg6[%128, %c0_49, %c0_50] : memref<8x2x192xf32, #tpu.memory_space<vmem>>, vector<1x2x192xf32>
    %130 = vector.shape_cast %129 : vector<1x2x192xf32> to vector<2x192xf32>
    %131 = vector.shape_cast %28 : vector<1x192xi1> to vector<1x192xi1>
    %132 = vector.broadcast %131 : vector<1x192xi1> to vector<2x192xi1>
    %133 = arith.select %132, %127, %130 : vector<2x192xi1>, vector<2x192xf32>
    %134 = arith.truncf %113 : vector<2x64xf32> to vector<2x64xbf16>
    %cst_51 = arith.constant dense<0.000000e+00> : vector<2x192xf32>
    %135 = tpu.matmul %134, %29, %cst_51 {dimension_numbers = #tpu.dot_dimension_numbers<[1], [0], [0], [1], [0, 0, 1, 1], [], []>} : vector<2x64xbf16>, vector<64x192xbf16>, vector<2x192xf32> -> vector<2x192xf32>
    %136 = vector.broadcast %30 : vector<1x192xf32> to vector<2x192xf32>
    %137 = arith.addf %135, %136 : vector<2x192xf32>
    %138 = vector.extract_strided_slice %133 {offsets = [0, 0], sizes = [2, 128], strides = [1, 1]} : vector<2x192xf32> to vector<2x128xf32>
    %139 = vector.extract_strided_slice %137 {offsets = [0, 0], sizes = [2, 128], strides = [1, 1]} : vector<2x192xf32> to vector<2x128xf32>
    %140 = arith.addf %138, %139 : vector<2x128xf32>
    %cst_52 = arith.constant 0.000000e+00 : f32
    %141 = vector.broadcast %cst_52 : f32 to vector<2x128xf32>
    %142 = arith.subf %141, %140 : vector<2x128xf32>
    %143 = math.exp %142 : vector<2x128xf32>
    %cst_53 = arith.constant 1.000000e+00 : f32
    %144 = vector.broadcast %cst_53 : f32 to vector<2x128xf32>
    %145 = arith.addf %144, %143 : vector<2x128xf32>
    %cst_54 = arith.constant 1.000000e+00 : f32
    %146 = vector.broadcast %cst_54 : f32 to vector<2x128xf32>
    %147 = arith.divf %146, %145 : vector<2x128xf32>
    %148 = vector.extract_strided_slice %147 {offsets = [0, 0], sizes = [2, 64], strides = [1, 1]} : vector<2x128xf32> to vector<2x64xf32>
    %149 = vector.extract_strided_slice %147 {offsets = [0, 64], sizes = [2, 64], strides = [1, 1]} : vector<2x128xf32> to vector<2x64xf32>
    %150 = vector.extract_strided_slice %133 {offsets = [0, 128], sizes = [2, 64], strides = [1, 1]} : vector<2x192xf32> to vector<2x64xf32>
    %151 = vector.extract_strided_slice %137 {offsets = [0, 128], sizes = [2, 64], strides = [1, 1]} : vector<2x192xf32> to vector<2x64xf32>
    %152 = arith.mulf %148, %151 : vector<2x64xf32>
    %153 = arith.addf %150, %152 : vector<2x64xf32>
    %154 = math.tanh %153 : vector<2x64xf32>
    %cst_55 = arith.constant 1.000000e+00 : f32
    %155 = vector.broadcast %cst_55 : f32 to vector<2x64xf32>
    %156 = arith.subf %155, %149 : vector<2x64xf32>
    %157 = arith.mulf %156, %154 : vector<2x64xf32>
    %158 = arith.mulf %149, %113 : vector<2x64xf32>
    %159 = arith.addf %157, %158 : vector<2x64xf32>
    %160 = vector.extract_strided_slice %159 {offsets = [0, 0], sizes = [2, 32], strides = [1, 1]} : vector<2x64xf32> to vector<2x32xf32>
    %161 = arith.index_cast %c2_i32 : i32 to index
    %c0_56 = arith.constant 0 : index
    %c0_57 = arith.constant 0 : index
    %162 = vector.load %arg7[%161, %c0_56, %c0_57] : memref<8x2x32xf32, #tpu.memory_space<vmem>>, vector<1x2x32xf32>
    %163 = vector.shape_cast %162 : vector<1x2x32xf32> to vector<2x32xf32>
    %164 = vector.shape_cast %160 : vector<2x32xf32> to vector<1x2x32xf32>
    tpu.vector_store %arg7[%161, %c0_56, %c0_57], %164 {strides = array<i32>} : memref<8x2x32xf32, #tpu.memory_space<vmem>>, vector<1x2x32xf32>,
    %165 = vector.extract_strided_slice %159 {offsets = [0, 32], sizes = [2, 32], strides = [1, 1]} : vector<2x64xf32> to vector<2x32xf32>
    %166 = arith.index_cast %124 : i32 to index
    %c0_58 = arith.constant 0 : index
    %c0_59 = arith.constant 0 : index
    %167 = vector.load %arg8[%166, %c0_58, %c0_59] : memref<8x2x32xf32, #tpu.memory_space<vmem>>, vector<1x2x32xf32>
    %168 = vector.shape_cast %167 : vector<1x2x32xf32> to vector<2x32xf32>
    %169 = vector.shape_cast %165 : vector<2x32xf32> to vector<1x2x32xf32>
    tpu.vector_store %arg8[%166, %c0_58, %c0_59], %169 {strides = array<i32>} : memref<8x2x32xf32, #tpu.memory_space<vmem>>, vector<1x2x32xf32>,
    %c3_i32 = arith.constant 3 : i32
    %c7_i32_60 = arith.constant 7 : i32
    %170 = arith.subi %c7_i32_60, %c3_i32 : i32
    %171 = arith.index_cast %c3_i32 : i32 to index
    %c0_61 = arith.constant 0 : index
    %c0_62 = arith.constant 0 : index
    %172 = vector.load %arg6[%171, %c0_61, %c0_62] : memref<8x2x192xf32, #tpu.memory_space<vmem>>, vector<1x2x192xf32>
    %173 = vector.shape_cast %172 : vector<1x2x192xf32> to vector<2x192xf32>
    %174 = arith.index_cast %170 : i32 to index
    %c0_63 = arith.constant 0 : index
    %c0_64 = arith.constant 0 : index
    %175 = vector.load %arg6[%174, %c0_63, %c0_64] : memref<8x2x192xf32, #tpu.memory_space<vmem>>, vector<1x2x192xf32>
    %176 = vector.shape_cast %175 : vector<1x2x192xf32> to vector<2x192xf32>
    %177 = vector.shape_cast %28 : vector<1x192xi1> to vector<1x192xi1>
    %178 = vector.broadcast %177 : vector<1x192xi1> to vector<2x192xi1>
    %179 = arith.select %178, %173, %176 : vector<2x192xi1>, vector<2x192xf32>
    %180 = arith.truncf %159 : vector<2x64xf32> to vector<2x64xbf16>
    %cst_65 = arith.constant dense<0.000000e+00> : vector<2x192xf32>
    %181 = tpu.matmul %180, %29, %cst_65 {dimension_numbers = #tpu.dot_dimension_numbers<[1], [0], [0], [1], [0, 0, 1, 1], [], []>} : vector<2x64xbf16>, vector<64x192xbf16>, vector<2x192xf32> -> vector<2x192xf32>
    %182 = vector.broadcast %30 : vector<1x192xf32> to vector<2x192xf32>
    %183 = arith.addf %181, %182 : vector<2x192xf32>
    %184 = vector.extract_strided_slice %179 {offsets = [0, 0], sizes = [2, 128], strides = [1, 1]} : vector<2x192xf32> to vector<2x128xf32>
    %185 = vector.extract_strided_slice %183 {offsets = [0, 0], sizes = [2, 128], strides = [1, 1]} : vector<2x192xf32> to vector<2x128xf32>
    %186 = arith.addf %184, %185 : vector<2x128xf32>
    %cst_66 = arith.constant 0.000000e+00 : f32
    %187 = vector.broadcast %cst_66 : f32 to vector<2x128xf32>
    %188 = arith.subf %187, %186 : vector<2x128xf32>
    %189 = math.exp %188 : vector<2x128xf32>
    %cst_67 = arith.constant 1.000000e+00 : f32
    %190 = vector.broadcast %cst_67 : f32 to vector<2x128xf32>
    %191 = arith.addf %190, %189 : vector<2x128xf32>
    %cst_68 = arith.constant 1.000000e+00 : f32
    %192 = vector.broadcast %cst_68 : f32 to vector<2x128xf32>
    %193 = arith.divf %192, %191 : vector<2x128xf32>
    %194 = vector.extract_strided_slice %193 {offsets = [0, 0], sizes = [2, 64], strides = [1, 1]} : vector<2x128xf32> to vector<2x64xf32>
    %195 = vector.extract_strided_slice %193 {offsets = [0, 64], sizes = [2, 64], strides = [1, 1]} : vector<2x128xf32> to vector<2x64xf32>
    %196 = vector.extract_strided_slice %179 {offsets = [0, 128], sizes = [2, 64], strides = [1, 1]} : vector<2x192xf32> to vector<2x64xf32>
    %197 = vector.extract_strided_slice %183 {offsets = [0, 128], sizes = [2, 64], strides = [1, 1]} : vector<2x192xf32> to vector<2x64xf32>
    %198 = arith.mulf %194, %197 : vector<2x64xf32>
    %199 = arith.addf %196, %198 : vector<2x64xf32>
    %200 = math.tanh %199 : vector<2x64xf32>
    %cst_69 = arith.constant 1.000000e+00 : f32
    %201 = vector.broadcast %cst_69 : f32 to vector<2x64xf32>
    %202 = arith.subf %201, %195 : vector<2x64xf32>
    %203 = arith.mulf %202, %200 : vector<2x64xf32>
    %204 = arith.mulf %195, %159 : vector<2x64xf32>
    %205 = arith.addf %203, %204 : vector<2x64xf32>
    %206 = vector.extract_strided_slice %205 {offsets = [0, 0], sizes = [2, 32], strides = [1, 1]} : vector<2x64xf32> to vector<2x32xf32>
    %207 = arith.index_cast %c3_i32 : i32 to index
    %c0_70 = arith.constant 0 : index
    %c0_71 = arith.constant 0 : index
    %208 = vector.load %arg7[%207, %c0_70, %c0_71] : memref<8x2x32xf32, #tpu.memory_space<vmem>>, vector<1x2x32xf32>
    %209 = vector.shape_cast %208 : vector<1x2x32xf32> to vector<2x32xf32>
    %210 = vector.shape_cast %206 : vector<2x32xf32> to vector<1x2x32xf32>
    tpu.vector_store %arg7[%207, %c0_70, %c0_71], %210 {strides = array<i32>} : memref<8x2x32xf32, #tpu.memory_space<vmem>>, vector<1x2x32xf32>,
    %211 = vector.extract_strided_slice %205 {offsets = [0, 32], sizes = [2, 32], strides = [1, 1]} : vector<2x64xf32> to vector<2x32xf32>
    %212 = arith.index_cast %170 : i32 to index
    %c0_72 = arith.constant 0 : index
    %c0_73 = arith.constant 0 : index
    %213 = vector.load %arg8[%212, %c0_72, %c0_73] : memref<8x2x32xf32, #tpu.memory_space<vmem>>, vector<1x2x32xf32>
    %214 = vector.shape_cast %213 : vector<1x2x32xf32> to vector<2x32xf32>
    %215 = vector.shape_cast %211 : vector<2x32xf32> to vector<1x2x32xf32>
    tpu.vector_store %arg8[%212, %c0_72, %c0_73], %215 {strides = array<i32>} : memref<8x2x32xf32, #tpu.memory_space<vmem>>, vector<1x2x32xf32>,
    %c4_i32 = arith.constant 4 : i32
    %c7_i32_74 = arith.constant 7 : i32
    %216 = arith.subi %c7_i32_74, %c4_i32 : i32
    %217 = arith.index_cast %c4_i32 : i32 to index
    %c0_75 = arith.constant 0 : index
    %c0_76 = arith.constant 0 : index
    %218 = vector.load %arg6[%217, %c0_75, %c0_76] : memref<8x2x192xf32, #tpu.memory_space<vmem>>, vector<1x2x192xf32>
    %219 = vector.shape_cast %218 : vector<1x2x192xf32> to vector<2x192xf32>
    %220 = arith.index_cast %216 : i32 to index
    %c0_77 = arith.constant 0 : index
    %c0_78 = arith.constant 0 : index
    %221 = vector.load %arg6[%220, %c0_77, %c0_78] : memref<8x2x192xf32, #tpu.memory_space<vmem>>, vector<1x2x192xf32>
    %222 = vector.shape_cast %221 : vector<1x2x192xf32> to vector<2x192xf32>
    %223 = vector.shape_cast %28 : vector<1x192xi1> to vector<1x192xi1>
    %224 = vector.broadcast %223 : vector<1x192xi1> to vector<2x192xi1>
    %225 = arith.select %224, %219, %222 : vector<2x192xi1>, vector<2x192xf32>
    %226 = arith.truncf %205 : vector<2x64xf32> to vector<2x64xbf16>
    %cst_79 = arith.constant dense<0.000000e+00> : vector<2x192xf32>
    %227 = tpu.matmul %226, %29, %cst_79 {dimension_numbers = #tpu.dot_dimension_numbers<[1], [0], [0], [1], [0, 0, 1, 1], [], []>} : vector<2x64xbf16>, vector<64x192xbf16>, vector<2x192xf32> -> vector<2x192xf32>
    %228 = vector.broadcast %30 : vector<1x192xf32> to vector<2x192xf32>
    %229 = arith.addf %227, %228 : vector<2x192xf32>
    %230 = vector.extract_strided_slice %225 {offsets = [0, 0], sizes = [2, 128], strides = [1, 1]} : vector<2x192xf32> to vector<2x128xf32>
    %231 = vector.extract_strided_slice %229 {offsets = [0, 0], sizes = [2, 128], strides = [1, 1]} : vector<2x192xf32> to vector<2x128xf32>
    %232 = arith.addf %230, %231 : vector<2x128xf32>
    %cst_80 = arith.constant 0.000000e+00 : f32
    %233 = vector.broadcast %cst_80 : f32 to vector<2x128xf32>
    %234 = arith.subf %233, %232 : vector<2x128xf32>
    %235 = math.exp %234 : vector<2x128xf32>
    %cst_81 = arith.constant 1.000000e+00 : f32
    %236 = vector.broadcast %cst_81 : f32 to vector<2x128xf32>
    %237 = arith.addf %236, %235 : vector<2x128xf32>
    %cst_82 = arith.constant 1.000000e+00 : f32
    %238 = vector.broadcast %cst_82 : f32 to vector<2x128xf32>
    %239 = arith.divf %238, %237 : vector<2x128xf32>
    %240 = vector.extract_strided_slice %239 {offsets = [0, 0], sizes = [2, 64], strides = [1, 1]} : vector<2x128xf32> to vector<2x64xf32>
    %241 = vector.extract_strided_slice %239 {offsets = [0, 64], sizes = [2, 64], strides = [1, 1]} : vector<2x128xf32> to vector<2x64xf32>
    %242 = vector.extract_strided_slice %225 {offsets = [0, 128], sizes = [2, 64], strides = [1, 1]} : vector<2x192xf32> to vector<2x64xf32>
    %243 = vector.extract_strided_slice %229 {offsets = [0, 128], sizes = [2, 64], strides = [1, 1]} : vector<2x192xf32> to vector<2x64xf32>
    %244 = arith.mulf %240, %243 : vector<2x64xf32>
    %245 = arith.addf %242, %244 : vector<2x64xf32>
    %246 = math.tanh %245 : vector<2x64xf32>
    %cst_83 = arith.constant 1.000000e+00 : f32
    %247 = vector.broadcast %cst_83 : f32 to vector<2x64xf32>
    %248 = arith.subf %247, %241 : vector<2x64xf32>
    %249 = arith.mulf %248, %246 : vector<2x64xf32>
    %250 = arith.mulf %241, %205 : vector<2x64xf32>
    %251 = arith.addf %249, %250 : vector<2x64xf32>
    %252 = vector.extract_strided_slice %251 {offsets = [0, 0], sizes = [2, 32], strides = [1, 1]} : vector<2x64xf32> to vector<2x32xf32>
    %253 = arith.index_cast %c4_i32 : i32 to index
    %c0_84 = arith.constant 0 : index
    %c0_85 = arith.constant 0 : index
    %254 = vector.load %arg7[%253, %c0_84, %c0_85] : memref<8x2x32xf32, #tpu.memory_space<vmem>>, vector<1x2x32xf32>
    %255 = vector.shape_cast %254 : vector<1x2x32xf32> to vector<2x32xf32>
    %256 = vector.shape_cast %252 : vector<2x32xf32> to vector<1x2x32xf32>
    tpu.vector_store %arg7[%253, %c0_84, %c0_85], %256 {strides = array<i32>} : memref<8x2x32xf32, #tpu.memory_space<vmem>>, vector<1x2x32xf32>,
    %257 = vector.extract_strided_slice %251 {offsets = [0, 32], sizes = [2, 32], strides = [1, 1]} : vector<2x64xf32> to vector<2x32xf32>
    %258 = arith.index_cast %216 : i32 to index
    %c0_86 = arith.constant 0 : index
    %c0_87 = arith.constant 0 : index
    %259 = vector.load %arg8[%258, %c0_86, %c0_87] : memref<8x2x32xf32, #tpu.memory_space<vmem>>, vector<1x2x32xf32>
    %260 = vector.shape_cast %259 : vector<1x2x32xf32> to vector<2x32xf32>
    %261 = vector.shape_cast %257 : vector<2x32xf32> to vector<1x2x32xf32>
    tpu.vector_store %arg8[%258, %c0_86, %c0_87], %261 {strides = array<i32>} : memref<8x2x32xf32, #tpu.memory_space<vmem>>, vector<1x2x32xf32>,
    %c5_i32 = arith.constant 5 : i32
    %c7_i32_88 = arith.constant 7 : i32
    %262 = arith.subi %c7_i32_88, %c5_i32 : i32
    %263 = arith.index_cast %c5_i32 : i32 to index
    %c0_89 = arith.constant 0 : index
    %c0_90 = arith.constant 0 : index
    %264 = vector.load %arg6[%263, %c0_89, %c0_90] : memref<8x2x192xf32, #tpu.memory_space<vmem>>, vector<1x2x192xf32>
    %265 = vector.shape_cast %264 : vector<1x2x192xf32> to vector<2x192xf32>
    %266 = arith.index_cast %262 : i32 to index
    %c0_91 = arith.constant 0 : index
    %c0_92 = arith.constant 0 : index
    %267 = vector.load %arg6[%266, %c0_91, %c0_92] : memref<8x2x192xf32, #tpu.memory_space<vmem>>, vector<1x2x192xf32>
    %268 = vector.shape_cast %267 : vector<1x2x192xf32> to vector<2x192xf32>
    %269 = vector.shape_cast %28 : vector<1x192xi1> to vector<1x192xi1>
    %270 = vector.broadcast %269 : vector<1x192xi1> to vector<2x192xi1>
    %271 = arith.select %270, %265, %268 : vector<2x192xi1>, vector<2x192xf32>
    %272 = arith.truncf %251 : vector<2x64xf32> to vector<2x64xbf16>
    %cst_93 = arith.constant dense<0.000000e+00> : vector<2x192xf32>
    %273 = tpu.matmul %272, %29, %cst_93 {dimension_numbers = #tpu.dot_dimension_numbers<[1], [0], [0], [1], [0, 0, 1, 1], [], []>} : vector<2x64xbf16>, vector<64x192xbf16>, vector<2x192xf32> -> vector<2x192xf32>
    %274 = vector.broadcast %30 : vector<1x192xf32> to vector<2x192xf32>
    %275 = arith.addf %273, %274 : vector<2x192xf32>
    %276 = vector.extract_strided_slice %271 {offsets = [0, 0], sizes = [2, 128], strides = [1, 1]} : vector<2x192xf32> to vector<2x128xf32>
    %277 = vector.extract_strided_slice %275 {offsets = [0, 0], sizes = [2, 128], strides = [1, 1]} : vector<2x192xf32> to vector<2x128xf32>
    %278 = arith.addf %276, %277 : vector<2x128xf32>
    %cst_94 = arith.constant 0.000000e+00 : f32
    %279 = vector.broadcast %cst_94 : f32 to vector<2x128xf32>
    %280 = arith.subf %279, %278 : vector<2x128xf32>
    %281 = math.exp %280 : vector<2x128xf32>
    %cst_95 = arith.constant 1.000000e+00 : f32
    %282 = vector.broadcast %cst_95 : f32 to vector<2x128xf32>
    %283 = arith.addf %282, %281 : vector<2x128xf32>
    %cst_96 = arith.constant 1.000000e+00 : f32
    %284 = vector.broadcast %cst_96 : f32 to vector<2x128xf32>
    %285 = arith.divf %284, %283 : vector<2x128xf32>
    %286 = vector.extract_strided_slice %285 {offsets = [0, 0], sizes = [2, 64], strides = [1, 1]} : vector<2x128xf32> to vector<2x64xf32>
    %287 = vector.extract_strided_slice %285 {offsets = [0, 64], sizes = [2, 64], strides = [1, 1]} : vector<2x128xf32> to vector<2x64xf32>
    %288 = vector.extract_strided_slice %271 {offsets = [0, 128], sizes = [2, 64], strides = [1, 1]} : vector<2x192xf32> to vector<2x64xf32>
    %289 = vector.extract_strided_slice %275 {offsets = [0, 128], sizes = [2, 64], strides = [1, 1]} : vector<2x192xf32> to vector<2x64xf32>
    %290 = arith.mulf %286, %289 : vector<2x64xf32>
    %291 = arith.addf %288, %290 : vector<2x64xf32>
    %292 = math.tanh %291 : vector<2x64xf32>
    %cst_97 = arith.constant 1.000000e+00 : f32
    %293 = vector.broadcast %cst_97 : f32 to vector<2x64xf32>
    %294 = arith.subf %293, %287 : vector<2x64xf32>
    %295 = arith.mulf %294, %292 : vector<2x64xf32>
    %296 = arith.mulf %287, %251 : vector<2x64xf32>
    %297 = arith.addf %295, %296 : vector<2x64xf32>
    %298 = vector.extract_strided_slice %297 {offsets = [0, 0], sizes = [2, 32], strides = [1, 1]} : vector<2x64xf32> to vector<2x32xf32>
    %299 = arith.index_cast %c5_i32 : i32 to index
    %c0_98 = arith.constant 0 : index
    %c0_99 = arith.constant 0 : index
    %300 = vector.load %arg7[%299, %c0_98, %c0_99] : memref<8x2x32xf32, #tpu.memory_space<vmem>>, vector<1x2x32xf32>
    %301 = vector.shape_cast %300 : vector<1x2x32xf32> to vector<2x32xf32>
    %302 = vector.shape_cast %298 : vector<2x32xf32> to vector<1x2x32xf32>
    tpu.vector_store %arg7[%299, %c0_98, %c0_99], %302 {strides = array<i32>} : memref<8x2x32xf32, #tpu.memory_space<vmem>>, vector<1x2x32xf32>,
    %303 = vector.extract_strided_slice %297 {offsets = [0, 32], sizes = [2, 32], strides = [1, 1]} : vector<2x64xf32> to vector<2x32xf32>
    %304 = arith.index_cast %262 : i32 to index
    %c0_100 = arith.constant 0 : index
    %c0_101 = arith.constant 0 : index
    %305 = vector.load %arg8[%304, %c0_100, %c0_101] : memref<8x2x32xf32, #tpu.memory_space<vmem>>, vector<1x2x32xf32>
    %306 = vector.shape_cast %305 : vector<1x2x32xf32> to vector<2x32xf32>
    %307 = vector.shape_cast %303 : vector<2x32xf32> to vector<1x2x32xf32>
    tpu.vector_store %arg8[%304, %c0_100, %c0_101], %307 {strides = array<i32>} : memref<8x2x32xf32, #tpu.memory_space<vmem>>, vector<1x2x32xf32>,
    %c6_i32 = arith.constant 6 : i32
    %c7_i32_102 = arith.constant 7 : i32
    %308 = arith.subi %c7_i32_102, %c6_i32 : i32
    %309 = arith.index_cast %c6_i32 : i32 to index
    %c0_103 = arith.constant 0 : index
    %c0_104 = arith.constant 0 : index
    %310 = vector.load %arg6[%309, %c0_103, %c0_104] : memref<8x2x192xf32, #tpu.memory_space<vmem>>, vector<1x2x192xf32>
    %311 = vector.shape_cast %310 : vector<1x2x192xf32> to vector<2x192xf32>
    %312 = arith.index_cast %308 : i32 to index
    %c0_105 = arith.constant 0 : index
    %c0_106 = arith.constant 0 : index
    %313 = vector.load %arg6[%312, %c0_105, %c0_106] : memref<8x2x192xf32, #tpu.memory_space<vmem>>, vector<1x2x192xf32>
    %314 = vector.shape_cast %313 : vector<1x2x192xf32> to vector<2x192xf32>
    %315 = vector.shape_cast %28 : vector<1x192xi1> to vector<1x192xi1>
    %316 = vector.broadcast %315 : vector<1x192xi1> to vector<2x192xi1>
    %317 = arith.select %316, %311, %314 : vector<2x192xi1>, vector<2x192xf32>
    %318 = arith.truncf %297 : vector<2x64xf32> to vector<2x64xbf16>
    %cst_107 = arith.constant dense<0.000000e+00> : vector<2x192xf32>
    %319 = tpu.matmul %318, %29, %cst_107 {dimension_numbers = #tpu.dot_dimension_numbers<[1], [0], [0], [1], [0, 0, 1, 1], [], []>} : vector<2x64xbf16>, vector<64x192xbf16>, vector<2x192xf32> -> vector<2x192xf32>
    %320 = vector.broadcast %30 : vector<1x192xf32> to vector<2x192xf32>
    %321 = arith.addf %319, %320 : vector<2x192xf32>
    %322 = vector.extract_strided_slice %317 {offsets = [0, 0], sizes = [2, 128], strides = [1, 1]} : vector<2x192xf32> to vector<2x128xf32>
    %323 = vector.extract_strided_slice %321 {offsets = [0, 0], sizes = [2, 128], strides = [1, 1]} : vector<2x192xf32> to vector<2x128xf32>
    %324 = arith.addf %322, %323 : vector<2x128xf32>
    %cst_108 = arith.constant 0.000000e+00 : f32
    %325 = vector.broadcast %cst_108 : f32 to vector<2x128xf32>
    %326 = arith.subf %325, %324 : vector<2x128xf32>
    %327 = math.exp %326 : vector<2x128xf32>
    %cst_109 = arith.constant 1.000000e+00 : f32
    %328 = vector.broadcast %cst_109 : f32 to vector<2x128xf32>
    %329 = arith.addf %328, %327 : vector<2x128xf32>
    %cst_110 = arith.constant 1.000000e+00 : f32
    %330 = vector.broadcast %cst_110 : f32 to vector<2x128xf32>
    %331 = arith.divf %330, %329 : vector<2x128xf32>
    %332 = vector.extract_strided_slice %331 {offsets = [0, 0], sizes = [2, 64], strides = [1, 1]} : vector<2x128xf32> to vector<2x64xf32>
    %333 = vector.extract_strided_slice %331 {offsets = [0, 64], sizes = [2, 64], strides = [1, 1]} : vector<2x128xf32> to vector<2x64xf32>
    %334 = vector.extract_strided_slice %317 {offsets = [0, 128], sizes = [2, 64], strides = [1, 1]} : vector<2x192xf32> to vector<2x64xf32>
    %335 = vector.extract_strided_slice %321 {offsets = [0, 128], sizes = [2, 64], strides = [1, 1]} : vector<2x192xf32> to vector<2x64xf32>
    %336 = arith.mulf %332, %335 : vector<2x64xf32>
    %337 = arith.addf %334, %336 : vector<2x64xf32>
    %338 = math.tanh %337 : vector<2x64xf32>
    %cst_111 = arith.constant 1.000000e+00 : f32
    %339 = vector.broadcast %cst_111 : f32 to vector<2x64xf32>
    %340 = arith.subf %339, %333 : vector<2x64xf32>
    %341 = arith.mulf %340, %338 : vector<2x64xf32>
    %342 = arith.mulf %333, %297 : vector<2x64xf32>
    %343 = arith.addf %341, %342 : vector<2x64xf32>
    %344 = vector.extract_strided_slice %343 {offsets = [0, 0], sizes = [2, 32], strides = [1, 1]} : vector<2x64xf32> to vector<2x32xf32>
    %345 = arith.index_cast %c6_i32 : i32 to index
    %c0_112 = arith.constant 0 : index
    %c0_113 = arith.constant 0 : index
    %346 = vector.load %arg7[%345, %c0_112, %c0_113] : memref<8x2x32xf32, #tpu.memory_space<vmem>>, vector<1x2x32xf32>
    %347 = vector.shape_cast %346 : vector<1x2x32xf32> to vector<2x32xf32>
    %348 = vector.shape_cast %344 : vector<2x32xf32> to vector<1x2x32xf32>
    tpu.vector_store %arg7[%345, %c0_112, %c0_113], %348 {strides = array<i32>} : memref<8x2x32xf32, #tpu.memory_space<vmem>>, vector<1x2x32xf32>,
    %349 = vector.extract_strided_slice %343 {offsets = [0, 32], sizes = [2, 32], strides = [1, 1]} : vector<2x64xf32> to vector<2x32xf32>
    %350 = arith.index_cast %308 : i32 to index
    %c0_114 = arith.constant 0 : index
    %c0_115 = arith.constant 0 : index
    %351 = vector.load %arg8[%350, %c0_114, %c0_115] : memref<8x2x32xf32, #tpu.memory_space<vmem>>, vector<1x2x32xf32>
    %352 = vector.shape_cast %351 : vector<1x2x32xf32> to vector<2x32xf32>
    %353 = vector.shape_cast %349 : vector<2x32xf32> to vector<1x2x32xf32>
    tpu.vector_store %arg8[%350, %c0_114, %c0_115], %353 {strides = array<i32>} : memref<8x2x32xf32, #tpu.memory_space<vmem>>, vector<1x2x32xf32>,
    %c7_i32_116 = arith.constant 7 : i32
    %c7_i32_117 = arith.constant 7 : i32
    %354 = arith.subi %c7_i32_117, %c7_i32_116 : i32
    %355 = arith.index_cast %c7_i32_116 : i32 to index
    %c0_118 = arith.constant 0 : index
    %c0_119 = arith.constant 0 : index
    %356 = vector.load %arg6[%355, %c0_118, %c0_119] : memref<8x2x192xf32, #tpu.memory_space<vmem>>, vector<1x2x192xf32>
    %357 = vector.shape_cast %356 : vector<1x2x192xf32> to vector<2x192xf32>
    %358 = arith.index_cast %354 : i32 to index
    %c0_120 = arith.constant 0 : index
    %c0_121 = arith.constant 0 : index
    %359 = vector.load %arg6[%358, %c0_120, %c0_121] : memref<8x2x192xf32, #tpu.memory_space<vmem>>, vector<1x2x192xf32>
    %360 = vector.shape_cast %359 : vector<1x2x192xf32> to vector<2x192xf32>
    %361 = vector.shape_cast %28 : vector<1x192xi1> to vector<1x192xi1>
    %362 = vector.broadcast %361 : vector<1x192xi1> to vector<2x192xi1>
    %363 = arith.select %362, %357, %360 : vector<2x192xi1>, vector<2x192xf32>
    %364 = arith.truncf %343 : vector<2x64xf32> to vector<2x64xbf16>
    %cst_122 = arith.constant dense<0.000000e+00> : vector<2x192xf32>
    %365 = tpu.matmul %364, %29, %cst_122 {dimension_numbers = #tpu.dot_dimension_numbers<[1], [0], [0], [1], [0, 0, 1, 1], [], []>} : vector<2x64xbf16>, vector<64x192xbf16>, vector<2x192xf32> -> vector<2x192xf32>
    %366 = vector.broadcast %30 : vector<1x192xf32> to vector<2x192xf32>
    %367 = arith.addf %365, %366 : vector<2x192xf32>
    %368 = vector.extract_strided_slice %363 {offsets = [0, 0], sizes = [2, 128], strides = [1, 1]} : vector<2x192xf32> to vector<2x128xf32>
    %369 = vector.extract_strided_slice %367 {offsets = [0, 0], sizes = [2, 128], strides = [1, 1]} : vector<2x192xf32> to vector<2x128xf32>
    %370 = arith.addf %368, %369 : vector<2x128xf32>
    %cst_123 = arith.constant 0.000000e+00 : f32
    %371 = vector.broadcast %cst_123 : f32 to vector<2x128xf32>
    %372 = arith.subf %371, %370 : vector<2x128xf32>
    %373 = math.exp %372 : vector<2x128xf32>
    %cst_124 = arith.constant 1.000000e+00 : f32
    %374 = vector.broadcast %cst_124 : f32 to vector<2x128xf32>
    %375 = arith.addf %374, %373 : vector<2x128xf32>
    %cst_125 = arith.constant 1.000000e+00 : f32
    %376 = vector.broadcast %cst_125 : f32 to vector<2x128xf32>
    %377 = arith.divf %376, %375 : vector<2x128xf32>
    %378 = vector.extract_strided_slice %377 {offsets = [0, 0], sizes = [2, 64], strides = [1, 1]} : vector<2x128xf32> to vector<2x64xf32>
    %379 = vector.extract_strided_slice %377 {offsets = [0, 64], sizes = [2, 64], strides = [1, 1]} : vector<2x128xf32> to vector<2x64xf32>
    %380 = vector.extract_strided_slice %363 {offsets = [0, 128], sizes = [2, 64], strides = [1, 1]} : vector<2x192xf32> to vector<2x64xf32>
    %381 = vector.extract_strided_slice %367 {offsets = [0, 128], sizes = [2, 64], strides = [1, 1]} : vector<2x192xf32> to vector<2x64xf32>
    %382 = arith.mulf %378, %381 : vector<2x64xf32>
    %383 = arith.addf %380, %382 : vector<2x64xf32>
    %384 = math.tanh %383 : vector<2x64xf32>
    %cst_126 = arith.constant 1.000000e+00 : f32
    %385 = vector.broadcast %cst_126 : f32 to vector<2x64xf32>
    %386 = arith.subf %385, %379 : vector<2x64xf32>
    %387 = arith.mulf %386, %384 : vector<2x64xf32>
    %388 = arith.mulf %379, %343 : vector<2x64xf32>
    %389 = arith.addf %387, %388 : vector<2x64xf32>
    %390 = vector.extract_strided_slice %389 {offsets = [0, 0], sizes = [2, 32], strides = [1, 1]} : vector<2x64xf32> to vector<2x32xf32>
    %391 = arith.index_cast %c7_i32_116 : i32 to index
    %c0_127 = arith.constant 0 : index
    %c0_128 = arith.constant 0 : index
    %392 = vector.load %arg7[%391, %c0_127, %c0_128] : memref<8x2x32xf32, #tpu.memory_space<vmem>>, vector<1x2x32xf32>
    %393 = vector.shape_cast %392 : vector<1x2x32xf32> to vector<2x32xf32>
    %394 = vector.shape_cast %390 : vector<2x32xf32> to vector<1x2x32xf32>
    tpu.vector_store %arg7[%391, %c0_127, %c0_128], %394 {strides = array<i32>} : memref<8x2x32xf32, #tpu.memory_space<vmem>>, vector<1x2x32xf32>,
    %395 = vector.extract_strided_slice %389 {offsets = [0, 32], sizes = [2, 32], strides = [1, 1]} : vector<2x64xf32> to vector<2x32xf32>
    %396 = arith.index_cast %354 : i32 to index
    %c0_129 = arith.constant 0 : index
    %c0_130 = arith.constant 0 : index
    %397 = vector.load %arg8[%396, %c0_129, %c0_130] : memref<8x2x32xf32, #tpu.memory_space<vmem>>, vector<1x2x32xf32>
    %398 = vector.shape_cast %397 : vector<1x2x32xf32> to vector<2x32xf32>
    %399 = vector.shape_cast %395 : vector<2x32xf32> to vector<1x2x32xf32>
    tpu.vector_store %arg8[%396, %c0_129, %c0_130], %399 {strides = array<i32>} : memref<8x2x32xf32, #tpu.memory_space<vmem>>, vector<1x2x32xf32>,
    %c8_i32 = arith.constant 8 : i32
    %c0_131 = arith.constant 0 : index
    %c0_132 = arith.constant 0 : index
    %c0_133 = arith.constant 0 : index
    %400 = vector.load %arg7[%c0_131, %c0_132, %c0_133] : memref<8x2x32xf32, #tpu.memory_space<vmem>>, vector<8x2x32xf32>
    %c0_134 = arith.constant 0 : index
    %c0_135 = arith.constant 0 : index
    %c0_136 = arith.constant 0 : index
    %401 = vector.load %arg8[%c0_134, %c0_135, %c0_136] : memref<8x2x32xf32, #tpu.memory_space<vmem>>, vector<8x2x32xf32>
    %402 = vector.extract_strided_slice %400 {offsets = [0, 0, 0], sizes = [8, 1, 32], strides = [1, 1, 1]} : vector<8x2x32xf32> to vector<8x1x32xf32>
    %403 = vector.shape_cast %402 : vector<8x1x32xf32> to vector<8x32xf32>
    %404 = vector.extract_strided_slice %401 {offsets = [0, 0, 0], sizes = [8, 1, 32], strides = [1, 1, 1]} : vector<8x2x32xf32> to vector<8x1x32xf32>
    %405 = vector.shape_cast %404 : vector<8x1x32xf32> to vector<8x32xf32>
    %406 = tpu.concatenate %403, %405 in 1 : vector<8x32xf32>, vector<8x32xf32> -> vector<8x64xf32>
    %c0_137 = arith.constant 0 : index
    %c0_138 = arith.constant 0 : index
    %c0_139 = arith.constant 0 : index
    %407 = vector.load %arg5[%c0_137, %c0_138, %c0_139] : memref<2x8x64xf32, #tpu.memory_space<vmem>>, vector<1x8x64xf32>
    %408 = vector.shape_cast %407 : vector<1x8x64xf32> to vector<8x64xf32>
    %409 = vector.shape_cast %406 : vector<8x64xf32> to vector<1x8x64xf32>
    tpu.vector_store %arg5[%c0_137, %c0_138, %c0_139], %409 {strides = array<i32>} : memref<2x8x64xf32, #tpu.memory_space<vmem>>, vector<1x8x64xf32>,
    %410 = vector.extract_strided_slice %400 {offsets = [0, 1, 0], sizes = [8, 1, 32], strides = [1, 1, 1]} : vector<8x2x32xf32> to vector<8x1x32xf32>
    %411 = vector.shape_cast %410 : vector<8x1x32xf32> to vector<8x32xf32>
    %412 = vector.extract_strided_slice %401 {offsets = [0, 1, 0], sizes = [8, 1, 32], strides = [1, 1, 1]} : vector<8x2x32xf32> to vector<8x1x32xf32>
    %413 = vector.shape_cast %412 : vector<8x1x32xf32> to vector<8x32xf32>
    %414 = tpu.concatenate %411, %413 in 1 : vector<8x32xf32>, vector<8x32xf32> -> vector<8x64xf32>
    %c1 = arith.constant 1 : index
    %c0_140 = arith.constant 0 : index
    %c0_141 = arith.constant 0 : index
    %415 = vector.load %arg5[%c1, %c0_140, %c0_141] : memref<2x8x64xf32, #tpu.memory_space<vmem>>, vector<1x8x64xf32>
    %416 = vector.shape_cast %415 : vector<1x8x64xf32> to vector<8x64xf32>
    %417 = vector.shape_cast %414 : vector<8x64xf32> to vector<1x8x64xf32>
    tpu.vector_store %arg5[%c1, %c0_140, %c0_141], %417 {strides = array<i32>} : memref<2x8x64xf32, #tpu.memory_space<vmem>>, vector<1x8x64xf32>,
    return
  }
}

module attributes {stable_mosaic.version = 11 : i64} {
  func.func @bigru_kernel(%arg0: memref<8x2x32xf32, #tpu.memory_space<vmem>>, %arg1: memref<32x192xbf16, #tpu.memory_space<vmem>>, %arg2: memref<1x192xf32, #tpu.memory_space<vmem>>, %arg3: memref<64x192xbf16, #tpu.memory_space<vmem>>, %arg4: memref<1x192xf32, #tpu.memory_space<vmem>>, %arg5: memref<8x2x64xf32, #tpu.memory_space<vmem>>, %arg6: memref<8x2x192xf32, #tpu.memory_space<vmem>>, %arg7: memref<8x2x32xf32, #tpu.memory_space<vmem>>, %arg8: memref<8x2x32xf32, #tpu.memory_space<vmem>>) attributes {dimension_semantics = [], scalar_prefetch = 0 : i64, scratch_operands = 3 : i64, tpu.core_type = #tpu.core_type<tc>} {
    %c0 = arith.constant 0 : index
    %c0_0 = arith.constant 0 : index
    %0 = vector.load %arg2[%c0, %c0_0] : memref<1x192xf32, #tpu.memory_space<vmem>>, vector<1x192xf32>
    %c0_1 = arith.constant 0 : index
    %c0_2 = arith.constant 0 : index
    %c0_3 = arith.constant 0 : index
    %1 = vector.load %arg0[%c0_1, %c0_2, %c0_3] : memref<8x2x32xf32, #tpu.memory_space<vmem>>, vector<8x2x32xf32>
    %2 = vector.shape_cast %1 : vector<8x2x32xf32> to vector<16x32xf32>
    %3 = arith.truncf %2 : vector<16x32xf32> to vector<16x32xbf16>
    %c0_4 = arith.constant 0 : index
    %c0_5 = arith.constant 0 : index
    %4 = vector.load %arg1[%c0_4, %c0_5] : memref<32x192xbf16, #tpu.memory_space<vmem>>, vector<32x192xbf16>
    %cst = arith.constant dense<0.000000e+00> : vector<16x192xf32>
    %5 = tpu.matmul %3, %4, %cst {dimension_numbers = #tpu.dot_dimension_numbers<[1], [0], [0], [1], [0, 0, 1, 1], [], []>} : vector<16x32xbf16>, vector<32x192xbf16>, vector<16x192xf32> -> vector<16x192xf32>
    %6 = vector.broadcast %0 : vector<1x192xf32> to vector<16x192xf32>
    %7 = arith.addf %5, %6 : vector<16x192xf32>
    %8 = vector.shape_cast %7 : vector<16x192xf32> to vector<8x2x192xf32>
    %c0_6 = arith.constant 0 : index
    %c0_7 = arith.constant 0 : index
    %c0_8 = arith.constant 0 : index
    %9 = vector.load %arg6[%c0_6, %c0_7, %c0_8] : memref<8x2x192xf32, #tpu.memory_space<vmem>>, vector<8x2x192xf32>
    tpu.vector_store %arg6[%c0_6, %c0_7, %c0_8], %8 {strides = array<i32>} : memref<8x2x192xf32, #tpu.memory_space<vmem>>, vector<8x2x192xf32>,
    %10 = tpu.iota {dimensions = array<i32: 1>} : vector<1x192xi32>
    %c64_i32 = arith.constant 64 : i32
    %c0_i32 = arith.constant 0 : i32
    %11 = arith.cmpi eq, %c64_i32, %c0_i32 : i32
    %c1_i32 = arith.constant 1 : i32
    %12 = arith.select %11, %c1_i32, %c64_i32 : i32
    %13 = vector.broadcast %12 : i32 to vector<1x192xi32>
    %14 = arith.remsi %10, %13 : vector<1x192xi32>
    %c0_i32_9 = arith.constant 0 : i32
    %15 = vector.broadcast %c0_i32_9 : i32 to vector<1x192xi32>
    %16 = arith.cmpi ne, %14, %15 : vector<1x192xi32>
    %c0_i32_10 = arith.constant 0 : i32
    %17 = vector.broadcast %c0_i32_10 : i32 to vector<1x192xi32>
    %18 = arith.cmpi slt, %14, %17 : vector<1x192xi32>
    %c0_i32_11 = arith.constant 0 : i32
    %19 = arith.cmpi slt, %12, %c0_i32_11 : i32
    %20 = vector.broadcast %19 : i1 to vector<1x192xi1>
    %21 = vector.broadcast %20 : vector<1x192xi1> to vector<1x192xi1>
    %22 = arith.xori %18, %21 : vector<1x192xi1>
    %23 = arith.andi %22, %16 : vector<1x192xi1>
    %24 = vector.broadcast %12 : i32 to vector<1x192xi32>
    %25 = arith.addi %14, %24 : vector<1x192xi32>
    %26 = arith.select %23, %25, %14 : vector<1x192xi1>, vector<1x192xi32>
    %c32_i32 = arith.constant 32 : i32
    %27 = vector.broadcast %c32_i32 : i32 to vector<1x192xi32>
    %28 = arith.cmpi slt, %26, %27 : vector<1x192xi32>
    %c0_12 = arith.constant 0 : index
    %c0_13 = arith.constant 0 : index
    %29 = vector.load %arg3[%c0_12, %c0_13] : memref<64x192xbf16, #tpu.memory_space<vmem>>, vector<64x192xbf16>
    %c0_14 = arith.constant 0 : index
    %c0_15 = arith.constant 0 : index
    %30 = vector.load %arg4[%c0_14, %c0_15] : memref<1x192xf32, #tpu.memory_space<vmem>>, vector<1x192xf32>
    %cst_16 = arith.constant 0.000000e+00 : f32
    %31 = vector.broadcast %cst_16 : f32 to vector<2x64xf32>
    %c0_i32_17 = arith.constant 0 : i32
    %c7_i32 = arith.constant 7 : i32
    %32 = arith.subi %c7_i32, %c0_i32_17 : i32
    %33 = arith.index_cast %c0_i32_17 : i32 to index
    %c0_18 = arith.constant 0 : index
    %c0_19 = arith.constant 0 : index
    %34 = vector.load %arg6[%33, %c0_18, %c0_19] : memref<8x2x192xf32, #tpu.memory_space<vmem>>, vector<1x2x192xf32>
    %35 = vector.shape_cast %34 : vector<1x2x192xf32> to vector<2x192xf32>
    %36 = arith.index_cast %32 : i32 to index
    %c0_20 = arith.constant 0 : index
    %c0_21 = arith.constant 0 : index
    %37 = vector.load %arg6[%36, %c0_20, %c0_21] : memref<8x2x192xf32, #tpu.memory_space<vmem>>, vector<1x2x192xf32>
    %38 = vector.shape_cast %37 : vector<1x2x192xf32> to vector<2x192xf32>
    %39 = vector.shape_cast %28 : vector<1x192xi1> to vector<1x192xi1>
    %40 = vector.broadcast %39 : vector<1x192xi1> to vector<2x192xi1>
    %41 = arith.select %40, %35, %38 : vector<2x192xi1>, vector<2x192xf32>
    %42 = arith.truncf %31 : vector<2x64xf32> to vector<2x64xbf16>
    %cst_22 = arith.constant dense<0.000000e+00> : vector<2x192xf32>
    %43 = tpu.matmul %42, %29, %cst_22 {dimension_numbers = #tpu.dot_dimension_numbers<[1], [0], [0], [1], [0, 0, 1, 1], [], []>} : vector<2x64xbf16>, vector<64x192xbf16>, vector<2x192xf32> -> vector<2x192xf32>
    %44 = vector.broadcast %30 : vector<1x192xf32> to vector<2x192xf32>
    %45 = arith.addf %43, %44 : vector<2x192xf32>
    %46 = vector.extract_strided_slice %41 {offsets = [0, 0], sizes = [2, 128], strides = [1, 1]} : vector<2x192xf32> to vector<2x128xf32>
    %47 = vector.extract_strided_slice %45 {offsets = [0, 0], sizes = [2, 128], strides = [1, 1]} : vector<2x192xf32> to vector<2x128xf32>
    %48 = arith.addf %46, %47 : vector<2x128xf32>
    %cst_23 = arith.constant 0.000000e+00 : f32
    %49 = vector.broadcast %cst_23 : f32 to vector<2x128xf32>
    %50 = arith.subf %49, %48 : vector<2x128xf32>
    %51 = math.exp %50 : vector<2x128xf32>
    %cst_24 = arith.constant 1.000000e+00 : f32
    %52 = vector.broadcast %cst_24 : f32 to vector<2x128xf32>
    %53 = arith.addf %52, %51 : vector<2x128xf32>
    %cst_25 = arith.constant 1.000000e+00 : f32
    %54 = vector.broadcast %cst_25 : f32 to vector<2x128xf32>
    %55 = arith.divf %54, %53 : vector<2x128xf32>
    %56 = vector.extract_strided_slice %55 {offsets = [0, 0], sizes = [2, 64], strides = [1, 1]} : vector<2x128xf32> to vector<2x64xf32>
    %57 = vector.extract_strided_slice %55 {offsets = [0, 64], sizes = [2, 64], strides = [1, 1]} : vector<2x128xf32> to vector<2x64xf32>
    %58 = vector.extract_strided_slice %41 {offsets = [0, 128], sizes = [2, 64], strides = [1, 1]} : vector<2x192xf32> to vector<2x64xf32>
    %59 = vector.extract_strided_slice %45 {offsets = [0, 128], sizes = [2, 64], strides = [1, 1]} : vector<2x192xf32> to vector<2x64xf32>
    %60 = arith.mulf %56, %59 : vector<2x64xf32>
    %61 = arith.addf %58, %60 : vector<2x64xf32>
    %62 = math.tanh %61 : vector<2x64xf32>
    %cst_26 = arith.constant 1.000000e+00 : f32
    %63 = vector.broadcast %cst_26 : f32 to vector<2x64xf32>
    %64 = arith.subf %63, %57 : vector<2x64xf32>
    %65 = arith.mulf %64, %62 : vector<2x64xf32>
    %66 = arith.mulf %57, %31 : vector<2x64xf32>
    %67 = arith.addf %65, %66 : vector<2x64xf32>
    %68 = vector.extract_strided_slice %67 {offsets = [0, 0], sizes = [2, 32], strides = [1, 1]} : vector<2x64xf32> to vector<2x32xf32>
    %69 = arith.index_cast %c0_i32_17 : i32 to index
    %c0_27 = arith.constant 0 : index
    %c0_28 = arith.constant 0 : index
    %70 = vector.load %arg7[%69, %c0_27, %c0_28] : memref<8x2x32xf32, #tpu.memory_space<vmem>>, vector<1x2x32xf32>
    %71 = vector.shape_cast %70 : vector<1x2x32xf32> to vector<2x32xf32>
    %72 = vector.shape_cast %68 : vector<2x32xf32> to vector<1x2x32xf32>
    tpu.vector_store %arg7[%69, %c0_27, %c0_28], %72 {strides = array<i32>} : memref<8x2x32xf32, #tpu.memory_space<vmem>>, vector<1x2x32xf32>,
    %73 = vector.extract_strided_slice %67 {offsets = [0, 32], sizes = [2, 32], strides = [1, 1]} : vector<2x64xf32> to vector<2x32xf32>
    %74 = arith.index_cast %32 : i32 to index
    %c0_29 = arith.constant 0 : index
    %c0_30 = arith.constant 0 : index
    %75 = vector.load %arg8[%74, %c0_29, %c0_30] : memref<8x2x32xf32, #tpu.memory_space<vmem>>, vector<1x2x32xf32>
    %76 = vector.shape_cast %75 : vector<1x2x32xf32> to vector<2x32xf32>
    %77 = vector.shape_cast %73 : vector<2x32xf32> to vector<1x2x32xf32>
    tpu.vector_store %arg8[%74, %c0_29, %c0_30], %77 {strides = array<i32>} : memref<8x2x32xf32, #tpu.memory_space<vmem>>, vector<1x2x32xf32>,
    %c1_i32_31 = arith.constant 1 : i32
    %c7_i32_32 = arith.constant 7 : i32
    %78 = arith.subi %c7_i32_32, %c1_i32_31 : i32
    %79 = arith.index_cast %c1_i32_31 : i32 to index
    %c0_33 = arith.constant 0 : index
    %c0_34 = arith.constant 0 : index
    %80 = vector.load %arg6[%79, %c0_33, %c0_34] : memref<8x2x192xf32, #tpu.memory_space<vmem>>, vector<1x2x192xf32>
    %81 = vector.shape_cast %80 : vector<1x2x192xf32> to vector<2x192xf32>
    %82 = arith.index_cast %78 : i32 to index
    %c0_35 = arith.constant 0 : index
    %c0_36 = arith.constant 0 : index
    %83 = vector.load %arg6[%82, %c0_35, %c0_36] : memref<8x2x192xf32, #tpu.memory_space<vmem>>, vector<1x2x192xf32>
    %84 = vector.shape_cast %83 : vector<1x2x192xf32> to vector<2x192xf32>
    %85 = vector.shape_cast %28 : vector<1x192xi1> to vector<1x192xi1>
    %86 = vector.broadcast %85 : vector<1x192xi1> to vector<2x192xi1>
    %87 = arith.select %86, %81, %84 : vector<2x192xi1>, vector<2x192xf32>
    %88 = arith.truncf %67 : vector<2x64xf32> to vector<2x64xbf16>
    %cst_37 = arith.constant dense<0.000000e+00> : vector<2x192xf32>
    %89 = tpu.matmul %88, %29, %cst_37 {dimension_numbers = #tpu.dot_dimension_numbers<[1], [0], [0], [1], [0, 0, 1, 1], [], []>} : vector<2x64xbf16>, vector<64x192xbf16>, vector<2x192xf32> -> vector<2x192xf32>
    %90 = vector.broadcast %30 : vector<1x192xf32> to vector<2x192xf32>
    %91 = arith.addf %89, %90 : vector<2x192xf32>
    %92 = vector.extract_strided_slice %87 {offsets = [0, 0], sizes = [2, 128], strides = [1, 1]} : vector<2x192xf32> to vector<2x128xf32>
    %93 = vector.extract_strided_slice %91 {offsets = [0, 0], sizes = [2, 128], strides = [1, 1]} : vector<2x192xf32> to vector<2x128xf32>
    %94 = arith.addf %92, %93 : vector<2x128xf32>
    %cst_38 = arith.constant 0.000000e+00 : f32
    %95 = vector.broadcast %cst_38 : f32 to vector<2x128xf32>
    %96 = arith.subf %95, %94 : vector<2x128xf32>
    %97 = math.exp %96 : vector<2x128xf32>
    %cst_39 = arith.constant 1.000000e+00 : f32
    %98 = vector.broadcast %cst_39 : f32 to vector<2x128xf32>
    %99 = arith.addf %98, %97 : vector<2x128xf32>
    %cst_40 = arith.constant 1.000000e+00 : f32
    %100 = vector.broadcast %cst_40 : f32 to vector<2x128xf32>
    %101 = arith.divf %100, %99 : vector<2x128xf32>
    %102 = vector.extract_strided_slice %101 {offsets = [0, 0], sizes = [2, 64], strides = [1, 1]} : vector<2x128xf32> to vector<2x64xf32>
    %103 = vector.extract_strided_slice %101 {offsets = [0, 64], sizes = [2, 64], strides = [1, 1]} : vector<2x128xf32> to vector<2x64xf32>
    %104 = vector.extract_strided_slice %87 {offsets = [0, 128], sizes = [2, 64], strides = [1, 1]} : vector<2x192xf32> to vector<2x64xf32>
    %105 = vector.extract_strided_slice %91 {offsets = [0, 128], sizes = [2, 64], strides = [1, 1]} : vector<2x192xf32> to vector<2x64xf32>
    %106 = arith.mulf %102, %105 : vector<2x64xf32>
    %107 = arith.addf %104, %106 : vector<2x64xf32>
    %108 = math.tanh %107 : vector<2x64xf32>
    %cst_41 = arith.constant 1.000000e+00 : f32
    %109 = vector.broadcast %cst_41 : f32 to vector<2x64xf32>
    %110 = arith.subf %109, %103 : vector<2x64xf32>
    %111 = arith.mulf %110, %108 : vector<2x64xf32>
    %112 = arith.mulf %103, %67 : vector<2x64xf32>
    %113 = arith.addf %111, %112 : vector<2x64xf32>
    %114 = vector.extract_strided_slice %113 {offsets = [0, 0], sizes = [2, 32], strides = [1, 1]} : vector<2x64xf32> to vector<2x32xf32>
    %115 = arith.index_cast %c1_i32_31 : i32 to index
    %c0_42 = arith.constant 0 : index
    %c0_43 = arith.constant 0 : index
    %116 = vector.load %arg7[%115, %c0_42, %c0_43] : memref<8x2x32xf32, #tpu.memory_space<vmem>>, vector<1x2x32xf32>
    %117 = vector.shape_cast %116 : vector<1x2x32xf32> to vector<2x32xf32>
    %118 = vector.shape_cast %114 : vector<2x32xf32> to vector<1x2x32xf32>
    tpu.vector_store %arg7[%115, %c0_42, %c0_43], %118 {strides = array<i32>} : memref<8x2x32xf32, #tpu.memory_space<vmem>>, vector<1x2x32xf32>,
    %119 = vector.extract_strided_slice %113 {offsets = [0, 32], sizes = [2, 32], strides = [1, 1]} : vector<2x64xf32> to vector<2x32xf32>
    %120 = arith.index_cast %78 : i32 to index
    %c0_44 = arith.constant 0 : index
    %c0_45 = arith.constant 0 : index
    %121 = vector.load %arg8[%120, %c0_44, %c0_45] : memref<8x2x32xf32, #tpu.memory_space<vmem>>, vector<1x2x32xf32>
    %122 = vector.shape_cast %121 : vector<1x2x32xf32> to vector<2x32xf32>
    %123 = vector.shape_cast %119 : vector<2x32xf32> to vector<1x2x32xf32>
    tpu.vector_store %arg8[%120, %c0_44, %c0_45], %123 {strides = array<i32>} : memref<8x2x32xf32, #tpu.memory_space<vmem>>, vector<1x2x32xf32>,
    %c2_i32 = arith.constant 2 : i32
    %c7_i32_46 = arith.constant 7 : i32
    %124 = arith.subi %c7_i32_46, %c2_i32 : i32
    %125 = arith.index_cast %c2_i32 : i32 to index
    %c0_47 = arith.constant 0 : index
    %c0_48 = arith.constant 0 : index
    %126 = vector.load %arg6[%125, %c0_47, %c0_48] : memref<8x2x192xf32, #tpu.memory_space<vmem>>, vector<1x2x192xf32>
    %127 = vector.shape_cast %126 : vector<1x2x192xf32> to vector<2x192xf32>
    %128 = arith.index_cast %124 : i32 to index
    %c0_49 = arith.constant 0 : index
    %c0_50 = arith.constant 0 : index
    %129 = vector.load %arg6[%128, %c0_49, %c0_50] : memref<8x2x192xf32, #tpu.memory_space<vmem>>, vector<1x2x192xf32>
    %130 = vector.shape_cast %129 : vector<1x2x192xf32> to vector<2x192xf32>
    %131 = vector.shape_cast %28 : vector<1x192xi1> to vector<1x192xi1>
    %132 = vector.broadcast %131 : vector<1x192xi1> to vector<2x192xi1>
    %133 = arith.select %132, %127, %130 : vector<2x192xi1>, vector<2x192xf32>
    %134 = arith.truncf %113 : vector<2x64xf32> to vector<2x64xbf16>
    %cst_51 = arith.constant dense<0.000000e+00> : vector<2x192xf32>
    %135 = tpu.matmul %134, %29, %cst_51 {dimension_numbers = #tpu.dot_dimension_numbers<[1], [0], [0], [1], [0, 0, 1, 1], [], []>} : vector<2x64xbf16>, vector<64x192xbf16>, vector<2x192xf32> -> vector<2x192xf32>
    %136 = vector.broadcast %30 : vector<1x192xf32> to vector<2x192xf32>
    %137 = arith.addf %135, %136 : vector<2x192xf32>
    %138 = vector.extract_strided_slice %133 {offsets = [0, 0], sizes = [2, 128], strides = [1, 1]} : vector<2x192xf32> to vector<2x128xf32>
    %139 = vector.extract_strided_slice %137 {offsets = [0, 0], sizes = [2, 128], strides = [1, 1]} : vector<2x192xf32> to vector<2x128xf32>
    %140 = arith.addf %138, %139 : vector<2x128xf32>
    %cst_52 = arith.constant 0.000000e+00 : f32
    %141 = vector.broadcast %cst_52 : f32 to vector<2x128xf32>
    %142 = arith.subf %141, %140 : vector<2x128xf32>
    %143 = math.exp %142 : vector<2x128xf32>
    %cst_53 = arith.constant 1.000000e+00 : f32
    %144 = vector.broadcast %cst_53 : f32 to vector<2x128xf32>
    %145 = arith.addf %144, %143 : vector<2x128xf32>
    %cst_54 = arith.constant 1.000000e+00 : f32
    %146 = vector.broadcast %cst_54 : f32 to vector<2x128xf32>
    %147 = arith.divf %146, %145 : vector<2x128xf32>
    %148 = vector.extract_strided_slice %147 {offsets = [0, 0], sizes = [2, 64], strides = [1, 1]} : vector<2x128xf32> to vector<2x64xf32>
    %149 = vector.extract_strided_slice %147 {offsets = [0, 64], sizes = [2, 64], strides = [1, 1]} : vector<2x128xf32> to vector<2x64xf32>
    %150 = vector.extract_strided_slice %133 {offsets = [0, 128], sizes = [2, 64], strides = [1, 1]} : vector<2x192xf32> to vector<2x64xf32>
    %151 = vector.extract_strided_slice %137 {offsets = [0, 128], sizes = [2, 64], strides = [1, 1]} : vector<2x192xf32> to vector<2x64xf32>
    %152 = arith.mulf %148, %151 : vector<2x64xf32>
    %153 = arith.addf %150, %152 : vector<2x64xf32>
    %154 = math.tanh %153 : vector<2x64xf32>
    %cst_55 = arith.constant 1.000000e+00 : f32
    %155 = vector.broadcast %cst_55 : f32 to vector<2x64xf32>
    %156 = arith.subf %155, %149 : vector<2x64xf32>
    %157 = arith.mulf %156, %154 : vector<2x64xf32>
    %158 = arith.mulf %149, %113 : vector<2x64xf32>
    %159 = arith.addf %157, %158 : vector<2x64xf32>
    %160 = vector.extract_strided_slice %159 {offsets = [0, 0], sizes = [2, 32], strides = [1, 1]} : vector<2x64xf32> to vector<2x32xf32>
    %161 = arith.index_cast %c2_i32 : i32 to index
    %c0_56 = arith.constant 0 : index
    %c0_57 = arith.constant 0 : index
    %162 = vector.load %arg7[%161, %c0_56, %c0_57] : memref<8x2x32xf32, #tpu.memory_space<vmem>>, vector<1x2x32xf32>
    %163 = vector.shape_cast %162 : vector<1x2x32xf32> to vector<2x32xf32>
    %164 = vector.shape_cast %160 : vector<2x32xf32> to vector<1x2x32xf32>
    tpu.vector_store %arg7[%161, %c0_56, %c0_57], %164 {strides = array<i32>} : memref<8x2x32xf32, #tpu.memory_space<vmem>>, vector<1x2x32xf32>,
    %165 = vector.extract_strided_slice %159 {offsets = [0, 32], sizes = [2, 32], strides = [1, 1]} : vector<2x64xf32> to vector<2x32xf32>
    %166 = arith.index_cast %124 : i32 to index
    %c0_58 = arith.constant 0 : index
    %c0_59 = arith.constant 0 : index
    %167 = vector.load %arg8[%166, %c0_58, %c0_59] : memref<8x2x32xf32, #tpu.memory_space<vmem>>, vector<1x2x32xf32>
    %168 = vector.shape_cast %167 : vector<1x2x32xf32> to vector<2x32xf32>
    %169 = vector.shape_cast %165 : vector<2x32xf32> to vector<1x2x32xf32>
    tpu.vector_store %arg8[%166, %c0_58, %c0_59], %169 {strides = array<i32>} : memref<8x2x32xf32, #tpu.memory_space<vmem>>, vector<1x2x32xf32>,
    %c3_i32 = arith.constant 3 : i32
    %c7_i32_60 = arith.constant 7 : i32
    %170 = arith.subi %c7_i32_60, %c3_i32 : i32
    %171 = arith.index_cast %c3_i32 : i32 to index
    %c0_61 = arith.constant 0 : index
    %c0_62 = arith.constant 0 : index
    %172 = vector.load %arg6[%171, %c0_61, %c0_62] : memref<8x2x192xf32, #tpu.memory_space<vmem>>, vector<1x2x192xf32>
    %173 = vector.shape_cast %172 : vector<1x2x192xf32> to vector<2x192xf32>
    %174 = arith.index_cast %170 : i32 to index
    %c0_63 = arith.constant 0 : index
    %c0_64 = arith.constant 0 : index
    %175 = vector.load %arg6[%174, %c0_63, %c0_64] : memref<8x2x192xf32, #tpu.memory_space<vmem>>, vector<1x2x192xf32>
    %176 = vector.shape_cast %175 : vector<1x2x192xf32> to vector<2x192xf32>
    %177 = vector.shape_cast %28 : vector<1x192xi1> to vector<1x192xi1>
    %178 = vector.broadcast %177 : vector<1x192xi1> to vector<2x192xi1>
    %179 = arith.select %178, %173, %176 : vector<2x192xi1>, vector<2x192xf32>
    %180 = arith.truncf %159 : vector<2x64xf32> to vector<2x64xbf16>
    %cst_65 = arith.constant dense<0.000000e+00> : vector<2x192xf32>
    %181 = tpu.matmul %180, %29, %cst_65 {dimension_numbers = #tpu.dot_dimension_numbers<[1], [0], [0], [1], [0, 0, 1, 1], [], []>} : vector<2x64xbf16>, vector<64x192xbf16>, vector<2x192xf32> -> vector<2x192xf32>
    %182 = vector.broadcast %30 : vector<1x192xf32> to vector<2x192xf32>
    %183 = arith.addf %181, %182 : vector<2x192xf32>
    %184 = vector.extract_strided_slice %179 {offsets = [0, 0], sizes = [2, 128], strides = [1, 1]} : vector<2x192xf32> to vector<2x128xf32>
    %185 = vector.extract_strided_slice %183 {offsets = [0, 0], sizes = [2, 128], strides = [1, 1]} : vector<2x192xf32> to vector<2x128xf32>
    %186 = arith.addf %184, %185 : vector<2x128xf32>
    %cst_66 = arith.constant 0.000000e+00 : f32
    %187 = vector.broadcast %cst_66 : f32 to vector<2x128xf32>
    %188 = arith.subf %187, %186 : vector<2x128xf32>
    %189 = math.exp %188 : vector<2x128xf32>
    %cst_67 = arith.constant 1.000000e+00 : f32
    %190 = vector.broadcast %cst_67 : f32 to vector<2x128xf32>
    %191 = arith.addf %190, %189 : vector<2x128xf32>
    %cst_68 = arith.constant 1.000000e+00 : f32
    %192 = vector.broadcast %cst_68 : f32 to vector<2x128xf32>
    %193 = arith.divf %192, %191 : vector<2x128xf32>
    %194 = vector.extract_strided_slice %193 {offsets = [0, 0], sizes = [2, 64], strides = [1, 1]} : vector<2x128xf32> to vector<2x64xf32>
    %195 = vector.extract_strided_slice %193 {offsets = [0, 64], sizes = [2, 64], strides = [1, 1]} : vector<2x128xf32> to vector<2x64xf32>
    %196 = vector.extract_strided_slice %179 {offsets = [0, 128], sizes = [2, 64], strides = [1, 1]} : vector<2x192xf32> to vector<2x64xf32>
    %197 = vector.extract_strided_slice %183 {offsets = [0, 128], sizes = [2, 64], strides = [1, 1]} : vector<2x192xf32> to vector<2x64xf32>
    %198 = arith.mulf %194, %197 : vector<2x64xf32>
    %199 = arith.addf %196, %198 : vector<2x64xf32>
    %200 = math.tanh %199 : vector<2x64xf32>
    %cst_69 = arith.constant 1.000000e+00 : f32
    %201 = vector.broadcast %cst_69 : f32 to vector<2x64xf32>
    %202 = arith.subf %201, %195 : vector<2x64xf32>
    %203 = arith.mulf %202, %200 : vector<2x64xf32>
    %204 = arith.mulf %195, %159 : vector<2x64xf32>
    %205 = arith.addf %203, %204 : vector<2x64xf32>
    %206 = vector.extract_strided_slice %205 {offsets = [0, 0], sizes = [2, 32], strides = [1, 1]} : vector<2x64xf32> to vector<2x32xf32>
    %207 = arith.index_cast %c3_i32 : i32 to index
    %c0_70 = arith.constant 0 : index
    %c0_71 = arith.constant 0 : index
    %208 = vector.load %arg7[%207, %c0_70, %c0_71] : memref<8x2x32xf32, #tpu.memory_space<vmem>>, vector<1x2x32xf32>
    %209 = vector.shape_cast %208 : vector<1x2x32xf32> to vector<2x32xf32>
    %210 = vector.shape_cast %206 : vector<2x32xf32> to vector<1x2x32xf32>
    tpu.vector_store %arg7[%207, %c0_70, %c0_71], %210 {strides = array<i32>} : memref<8x2x32xf32, #tpu.memory_space<vmem>>, vector<1x2x32xf32>,
    %211 = vector.extract_strided_slice %205 {offsets = [0, 32], sizes = [2, 32], strides = [1, 1]} : vector<2x64xf32> to vector<2x32xf32>
    %212 = arith.index_cast %170 : i32 to index
    %c0_72 = arith.constant 0 : index
    %c0_73 = arith.constant 0 : index
    %213 = vector.load %arg8[%212, %c0_72, %c0_73] : memref<8x2x32xf32, #tpu.memory_space<vmem>>, vector<1x2x32xf32>
    %214 = vector.shape_cast %213 : vector<1x2x32xf32> to vector<2x32xf32>
    %215 = vector.shape_cast %211 : vector<2x32xf32> to vector<1x2x32xf32>
    tpu.vector_store %arg8[%212, %c0_72, %c0_73], %215 {strides = array<i32>} : memref<8x2x32xf32, #tpu.memory_space<vmem>>, vector<1x2x32xf32>,
    %c4_i32 = arith.constant 4 : i32
    %c7_i32_74 = arith.constant 7 : i32
    %216 = arith.subi %c7_i32_74, %c4_i32 : i32
    %217 = arith.index_cast %c4_i32 : i32 to index
    %c0_75 = arith.constant 0 : index
    %c0_76 = arith.constant 0 : index
    %218 = vector.load %arg6[%217, %c0_75, %c0_76] : memref<8x2x192xf32, #tpu.memory_space<vmem>>, vector<1x2x192xf32>
    %219 = vector.shape_cast %218 : vector<1x2x192xf32> to vector<2x192xf32>
    %220 = arith.index_cast %216 : i32 to index
    %c0_77 = arith.constant 0 : index
    %c0_78 = arith.constant 0 : index
    %221 = vector.load %arg6[%220, %c0_77, %c0_78] : memref<8x2x192xf32, #tpu.memory_space<vmem>>, vector<1x2x192xf32>
    %222 = vector.shape_cast %221 : vector<1x2x192xf32> to vector<2x192xf32>
    %223 = vector.shape_cast %28 : vector<1x192xi1> to vector<1x192xi1>
    %224 = vector.broadcast %223 : vector<1x192xi1> to vector<2x192xi1>
    %225 = arith.select %224, %219, %222 : vector<2x192xi1>, vector<2x192xf32>
    %226 = arith.truncf %205 : vector<2x64xf32> to vector<2x64xbf16>
    %cst_79 = arith.constant dense<0.000000e+00> : vector<2x192xf32>
    %227 = tpu.matmul %226, %29, %cst_79 {dimension_numbers = #tpu.dot_dimension_numbers<[1], [0], [0], [1], [0, 0, 1, 1], [], []>} : vector<2x64xbf16>, vector<64x192xbf16>, vector<2x192xf32> -> vector<2x192xf32>
    %228 = vector.broadcast %30 : vector<1x192xf32> to vector<2x192xf32>
    %229 = arith.addf %227, %228 : vector<2x192xf32>
    %230 = vector.extract_strided_slice %225 {offsets = [0, 0], sizes = [2, 128], strides = [1, 1]} : vector<2x192xf32> to vector<2x128xf32>
    %231 = vector.extract_strided_slice %229 {offsets = [0, 0], sizes = [2, 128], strides = [1, 1]} : vector<2x192xf32> to vector<2x128xf32>
    %232 = arith.addf %230, %231 : vector<2x128xf32>
    %cst_80 = arith.constant 0.000000e+00 : f32
    %233 = vector.broadcast %cst_80 : f32 to vector<2x128xf32>
    %234 = arith.subf %233, %232 : vector<2x128xf32>
    %235 = math.exp %234 : vector<2x128xf32>
    %cst_81 = arith.constant 1.000000e+00 : f32
    %236 = vector.broadcast %cst_81 : f32 to vector<2x128xf32>
    %237 = arith.addf %236, %235 : vector<2x128xf32>
    %cst_82 = arith.constant 1.000000e+00 : f32
    %238 = vector.broadcast %cst_82 : f32 to vector<2x128xf32>
    %239 = arith.divf %238, %237 : vector<2x128xf32>
    %240 = vector.extract_strided_slice %239 {offsets = [0, 0], sizes = [2, 64], strides = [1, 1]} : vector<2x128xf32> to vector<2x64xf32>
    %241 = vector.extract_strided_slice %239 {offsets = [0, 64], sizes = [2, 64], strides = [1, 1]} : vector<2x128xf32> to vector<2x64xf32>
    %242 = vector.extract_strided_slice %225 {offsets = [0, 128], sizes = [2, 64], strides = [1, 1]} : vector<2x192xf32> to vector<2x64xf32>
    %243 = vector.extract_strided_slice %229 {offsets = [0, 128], sizes = [2, 64], strides = [1, 1]} : vector<2x192xf32> to vector<2x64xf32>
    %244 = arith.mulf %240, %243 : vector<2x64xf32>
    %245 = arith.addf %242, %244 : vector<2x64xf32>
    %246 = math.tanh %245 : vector<2x64xf32>
    %cst_83 = arith.constant 1.000000e+00 : f32
    %247 = vector.broadcast %cst_83 : f32 to vector<2x64xf32>
    %248 = arith.subf %247, %241 : vector<2x64xf32>
    %249 = arith.mulf %248, %246 : vector<2x64xf32>
    %250 = arith.mulf %241, %205 : vector<2x64xf32>
    %251 = arith.addf %249, %250 : vector<2x64xf32>
    %252 = vector.extract_strided_slice %251 {offsets = [0, 0], sizes = [2, 32], strides = [1, 1]} : vector<2x64xf32> to vector<2x32xf32>
    %253 = arith.index_cast %c4_i32 : i32 to index
    %c0_84 = arith.constant 0 : index
    %c0_85 = arith.constant 0 : index
    %254 = vector.load %arg7[%253, %c0_84, %c0_85] : memref<8x2x32xf32, #tpu.memory_space<vmem>>, vector<1x2x32xf32>
    %255 = vector.shape_cast %254 : vector<1x2x32xf32> to vector<2x32xf32>
    %256 = vector.shape_cast %252 : vector<2x32xf32> to vector<1x2x32xf32>
    tpu.vector_store %arg7[%253, %c0_84, %c0_85], %256 {strides = array<i32>} : memref<8x2x32xf32, #tpu.memory_space<vmem>>, vector<1x2x32xf32>,
    %257 = vector.extract_strided_slice %251 {offsets = [0, 32], sizes = [2, 32], strides = [1, 1]} : vector<2x64xf32> to vector<2x32xf32>
    %258 = arith.index_cast %216 : i32 to index
    %c0_86 = arith.constant 0 : index
    %c0_87 = arith.constant 0 : index
    %259 = vector.load %arg8[%258, %c0_86, %c0_87] : memref<8x2x32xf32, #tpu.memory_space<vmem>>, vector<1x2x32xf32>
    %260 = vector.shape_cast %259 : vector<1x2x32xf32> to vector<2x32xf32>
    %261 = vector.shape_cast %257 : vector<2x32xf32> to vector<1x2x32xf32>
    tpu.vector_store %arg8[%258, %c0_86, %c0_87], %261 {strides = array<i32>} : memref<8x2x32xf32, #tpu.memory_space<vmem>>, vector<1x2x32xf32>,
    %c5_i32 = arith.constant 5 : i32
    %c7_i32_88 = arith.constant 7 : i32
    %262 = arith.subi %c7_i32_88, %c5_i32 : i32
    %263 = arith.index_cast %c5_i32 : i32 to index
    %c0_89 = arith.constant 0 : index
    %c0_90 = arith.constant 0 : index
    %264 = vector.load %arg6[%263, %c0_89, %c0_90] : memref<8x2x192xf32, #tpu.memory_space<vmem>>, vector<1x2x192xf32>
    %265 = vector.shape_cast %264 : vector<1x2x192xf32> to vector<2x192xf32>
    %266 = arith.index_cast %262 : i32 to index
    %c0_91 = arith.constant 0 : index
    %c0_92 = arith.constant 0 : index
    %267 = vector.load %arg6[%266, %c0_91, %c0_92] : memref<8x2x192xf32, #tpu.memory_space<vmem>>, vector<1x2x192xf32>
    %268 = vector.shape_cast %267 : vector<1x2x192xf32> to vector<2x192xf32>
    %269 = vector.shape_cast %28 : vector<1x192xi1> to vector<1x192xi1>
    %270 = vector.broadcast %269 : vector<1x192xi1> to vector<2x192xi1>
    %271 = arith.select %270, %265, %268 : vector<2x192xi1>, vector<2x192xf32>
    %272 = arith.truncf %251 : vector<2x64xf32> to vector<2x64xbf16>
    %cst_93 = arith.constant dense<0.000000e+00> : vector<2x192xf32>
    %273 = tpu.matmul %272, %29, %cst_93 {dimension_numbers = #tpu.dot_dimension_numbers<[1], [0], [0], [1], [0, 0, 1, 1], [], []>} : vector<2x64xbf16>, vector<64x192xbf16>, vector<2x192xf32> -> vector<2x192xf32>
    %274 = vector.broadcast %30 : vector<1x192xf32> to vector<2x192xf32>
    %275 = arith.addf %273, %274 : vector<2x192xf32>
    %276 = vector.extract_strided_slice %271 {offsets = [0, 0], sizes = [2, 128], strides = [1, 1]} : vector<2x192xf32> to vector<2x128xf32>
    %277 = vector.extract_strided_slice %275 {offsets = [0, 0], sizes = [2, 128], strides = [1, 1]} : vector<2x192xf32> to vector<2x128xf32>
    %278 = arith.addf %276, %277 : vector<2x128xf32>
    %cst_94 = arith.constant 0.000000e+00 : f32
    %279 = vector.broadcast %cst_94 : f32 to vector<2x128xf32>
    %280 = arith.subf %279, %278 : vector<2x128xf32>
    %281 = math.exp %280 : vector<2x128xf32>
    %cst_95 = arith.constant 1.000000e+00 : f32
    %282 = vector.broadcast %cst_95 : f32 to vector<2x128xf32>
    %283 = arith.addf %282, %281 : vector<2x128xf32>
    %cst_96 = arith.constant 1.000000e+00 : f32
    %284 = vector.broadcast %cst_96 : f32 to vector<2x128xf32>
    %285 = arith.divf %284, %283 : vector<2x128xf32>
    %286 = vector.extract_strided_slice %285 {offsets = [0, 0], sizes = [2, 64], strides = [1, 1]} : vector<2x128xf32> to vector<2x64xf32>
    %287 = vector.extract_strided_slice %285 {offsets = [0, 64], sizes = [2, 64], strides = [1, 1]} : vector<2x128xf32> to vector<2x64xf32>
    %288 = vector.extract_strided_slice %271 {offsets = [0, 128], sizes = [2, 64], strides = [1, 1]} : vector<2x192xf32> to vector<2x64xf32>
    %289 = vector.extract_strided_slice %275 {offsets = [0, 128], sizes = [2, 64], strides = [1, 1]} : vector<2x192xf32> to vector<2x64xf32>
    %290 = arith.mulf %286, %289 : vector<2x64xf32>
    %291 = arith.addf %288, %290 : vector<2x64xf32>
    %292 = math.tanh %291 : vector<2x64xf32>
    %cst_97 = arith.constant 1.000000e+00 : f32
    %293 = vector.broadcast %cst_97 : f32 to vector<2x64xf32>
    %294 = arith.subf %293, %287 : vector<2x64xf32>
    %295 = arith.mulf %294, %292 : vector<2x64xf32>
    %296 = arith.mulf %287, %251 : vector<2x64xf32>
    %297 = arith.addf %295, %296 : vector<2x64xf32>
    %298 = vector.extract_strided_slice %297 {offsets = [0, 0], sizes = [2, 32], strides = [1, 1]} : vector<2x64xf32> to vector<2x32xf32>
    %299 = arith.index_cast %c5_i32 : i32 to index
    %c0_98 = arith.constant 0 : index
    %c0_99 = arith.constant 0 : index
    %300 = vector.load %arg7[%299, %c0_98, %c0_99] : memref<8x2x32xf32, #tpu.memory_space<vmem>>, vector<1x2x32xf32>
    %301 = vector.shape_cast %300 : vector<1x2x32xf32> to vector<2x32xf32>
    %302 = vector.shape_cast %298 : vector<2x32xf32> to vector<1x2x32xf32>
    tpu.vector_store %arg7[%299, %c0_98, %c0_99], %302 {strides = array<i32>} : memref<8x2x32xf32, #tpu.memory_space<vmem>>, vector<1x2x32xf32>,
    %303 = vector.extract_strided_slice %297 {offsets = [0, 32], sizes = [2, 32], strides = [1, 1]} : vector<2x64xf32> to vector<2x32xf32>
    %304 = arith.index_cast %262 : i32 to index
    %c0_100 = arith.constant 0 : index
    %c0_101 = arith.constant 0 : index
    %305 = vector.load %arg8[%304, %c0_100, %c0_101] : memref<8x2x32xf32, #tpu.memory_space<vmem>>, vector<1x2x32xf32>
    %306 = vector.shape_cast %305 : vector<1x2x32xf32> to vector<2x32xf32>
    %307 = vector.shape_cast %303 : vector<2x32xf32> to vector<1x2x32xf32>
    tpu.vector_store %arg8[%304, %c0_100, %c0_101], %307 {strides = array<i32>} : memref<8x2x32xf32, #tpu.memory_space<vmem>>, vector<1x2x32xf32>,
    %c6_i32 = arith.constant 6 : i32
    %c7_i32_102 = arith.constant 7 : i32
    %308 = arith.subi %c7_i32_102, %c6_i32 : i32
    %309 = arith.index_cast %c6_i32 : i32 to index
    %c0_103 = arith.constant 0 : index
    %c0_104 = arith.constant 0 : index
    %310 = vector.load %arg6[%309, %c0_103, %c0_104] : memref<8x2x192xf32, #tpu.memory_space<vmem>>, vector<1x2x192xf32>
    %311 = vector.shape_cast %310 : vector<1x2x192xf32> to vector<2x192xf32>
    %312 = arith.index_cast %308 : i32 to index
    %c0_105 = arith.constant 0 : index
    %c0_106 = arith.constant 0 : index
    %313 = vector.load %arg6[%312, %c0_105, %c0_106] : memref<8x2x192xf32, #tpu.memory_space<vmem>>, vector<1x2x192xf32>
    %314 = vector.shape_cast %313 : vector<1x2x192xf32> to vector<2x192xf32>
    %315 = vector.shape_cast %28 : vector<1x192xi1> to vector<1x192xi1>
    %316 = vector.broadcast %315 : vector<1x192xi1> to vector<2x192xi1>
    %317 = arith.select %316, %311, %314 : vector<2x192xi1>, vector<2x192xf32>
    %318 = arith.truncf %297 : vector<2x64xf32> to vector<2x64xbf16>
    %cst_107 = arith.constant dense<0.000000e+00> : vector<2x192xf32>
    %319 = tpu.matmul %318, %29, %cst_107 {dimension_numbers = #tpu.dot_dimension_numbers<[1], [0], [0], [1], [0, 0, 1, 1], [], []>} : vector<2x64xbf16>, vector<64x192xbf16>, vector<2x192xf32> -> vector<2x192xf32>
    %320 = vector.broadcast %30 : vector<1x192xf32> to vector<2x192xf32>
    %321 = arith.addf %319, %320 : vector<2x192xf32>
    %322 = vector.extract_strided_slice %317 {offsets = [0, 0], sizes = [2, 128], strides = [1, 1]} : vector<2x192xf32> to vector<2x128xf32>
    %323 = vector.extract_strided_slice %321 {offsets = [0, 0], sizes = [2, 128], strides = [1, 1]} : vector<2x192xf32> to vector<2x128xf32>
    %324 = arith.addf %322, %323 : vector<2x128xf32>
    %cst_108 = arith.constant 0.000000e+00 : f32
    %325 = vector.broadcast %cst_108 : f32 to vector<2x128xf32>
    %326 = arith.subf %325, %324 : vector<2x128xf32>
    %327 = math.exp %326 : vector<2x128xf32>
    %cst_109 = arith.constant 1.000000e+00 : f32
    %328 = vector.broadcast %cst_109 : f32 to vector<2x128xf32>
    %329 = arith.addf %328, %327 : vector<2x128xf32>
    %cst_110 = arith.constant 1.000000e+00 : f32
    %330 = vector.broadcast %cst_110 : f32 to vector<2x128xf32>
    %331 = arith.divf %330, %329 : vector<2x128xf32>
    %332 = vector.extract_strided_slice %331 {offsets = [0, 0], sizes = [2, 64], strides = [1, 1]} : vector<2x128xf32> to vector<2x64xf32>
    %333 = vector.extract_strided_slice %331 {offsets = [0, 64], sizes = [2, 64], strides = [1, 1]} : vector<2x128xf32> to vector<2x64xf32>
    %334 = vector.extract_strided_slice %317 {offsets = [0, 128], sizes = [2, 64], strides = [1, 1]} : vector<2x192xf32> to vector<2x64xf32>
    %335 = vector.extract_strided_slice %321 {offsets = [0, 128], sizes = [2, 64], strides = [1, 1]} : vector<2x192xf32> to vector<2x64xf32>
    %336 = arith.mulf %332, %335 : vector<2x64xf32>
    %337 = arith.addf %334, %336 : vector<2x64xf32>
    %338 = math.tanh %337 : vector<2x64xf32>
    %cst_111 = arith.constant 1.000000e+00 : f32
    %339 = vector.broadcast %cst_111 : f32 to vector<2x64xf32>
    %340 = arith.subf %339, %333 : vector<2x64xf32>
    %341 = arith.mulf %340, %338 : vector<2x64xf32>
    %342 = arith.mulf %333, %297 : vector<2x64xf32>
    %343 = arith.addf %341, %342 : vector<2x64xf32>
    %344 = vector.extract_strided_slice %343 {offsets = [0, 0], sizes = [2, 32], strides = [1, 1]} : vector<2x64xf32> to vector<2x32xf32>
    %345 = arith.index_cast %c6_i32 : i32 to index
    %c0_112 = arith.constant 0 : index
    %c0_113 = arith.constant 0 : index
    %346 = vector.load %arg7[%345, %c0_112, %c0_113] : memref<8x2x32xf32, #tpu.memory_space<vmem>>, vector<1x2x32xf32>
    %347 = vector.shape_cast %346 : vector<1x2x32xf32> to vector<2x32xf32>
    %348 = vector.shape_cast %344 : vector<2x32xf32> to vector<1x2x32xf32>
    tpu.vector_store %arg7[%345, %c0_112, %c0_113], %348 {strides = array<i32>} : memref<8x2x32xf32, #tpu.memory_space<vmem>>, vector<1x2x32xf32>,
    %349 = vector.extract_strided_slice %343 {offsets = [0, 32], sizes = [2, 32], strides = [1, 1]} : vector<2x64xf32> to vector<2x32xf32>
    %350 = arith.index_cast %308 : i32 to index
    %c0_114 = arith.constant 0 : index
    %c0_115 = arith.constant 0 : index
    %351 = vector.load %arg8[%350, %c0_114, %c0_115] : memref<8x2x32xf32, #tpu.memory_space<vmem>>, vector<1x2x32xf32>
    %352 = vector.shape_cast %351 : vector<1x2x32xf32> to vector<2x32xf32>
    %353 = vector.shape_cast %349 : vector<2x32xf32> to vector<1x2x32xf32>
    tpu.vector_store %arg8[%350, %c0_114, %c0_115], %353 {strides = array<i32>} : memref<8x2x32xf32, #tpu.memory_space<vmem>>, vector<1x2x32xf32>,
    %c7_i32_116 = arith.constant 7 : i32
    %c7_i32_117 = arith.constant 7 : i32
    %354 = arith.subi %c7_i32_117, %c7_i32_116 : i32
    %355 = arith.index_cast %c7_i32_116 : i32 to index
    %c0_118 = arith.constant 0 : index
    %c0_119 = arith.constant 0 : index
    %356 = vector.load %arg6[%355, %c0_118, %c0_119] : memref<8x2x192xf32, #tpu.memory_space<vmem>>, vector<1x2x192xf32>
    %357 = vector.shape_cast %356 : vector<1x2x192xf32> to vector<2x192xf32>
    %358 = arith.index_cast %354 : i32 to index
    %c0_120 = arith.constant 0 : index
    %c0_121 = arith.constant 0 : index
    %359 = vector.load %arg6[%358, %c0_120, %c0_121] : memref<8x2x192xf32, #tpu.memory_space<vmem>>, vector<1x2x192xf32>
    %360 = vector.shape_cast %359 : vector<1x2x192xf32> to vector<2x192xf32>
    %361 = vector.shape_cast %28 : vector<1x192xi1> to vector<1x192xi1>
    %362 = vector.broadcast %361 : vector<1x192xi1> to vector<2x192xi1>
    %363 = arith.select %362, %357, %360 : vector<2x192xi1>, vector<2x192xf32>
    %364 = arith.truncf %343 : vector<2x64xf32> to vector<2x64xbf16>
    %cst_122 = arith.constant dense<0.000000e+00> : vector<2x192xf32>
    %365 = tpu.matmul %364, %29, %cst_122 {dimension_numbers = #tpu.dot_dimension_numbers<[1], [0], [0], [1], [0, 0, 1, 1], [], []>} : vector<2x64xbf16>, vector<64x192xbf16>, vector<2x192xf32> -> vector<2x192xf32>
    %366 = vector.broadcast %30 : vector<1x192xf32> to vector<2x192xf32>
    %367 = arith.addf %365, %366 : vector<2x192xf32>
    %368 = vector.extract_strided_slice %363 {offsets = [0, 0], sizes = [2, 128], strides = [1, 1]} : vector<2x192xf32> to vector<2x128xf32>
    %369 = vector.extract_strided_slice %367 {offsets = [0, 0], sizes = [2, 128], strides = [1, 1]} : vector<2x192xf32> to vector<2x128xf32>
    %370 = arith.addf %368, %369 : vector<2x128xf32>
    %cst_123 = arith.constant 0.000000e+00 : f32
    %371 = vector.broadcast %cst_123 : f32 to vector<2x128xf32>
    %372 = arith.subf %371, %370 : vector<2x128xf32>
    %373 = math.exp %372 : vector<2x128xf32>
    %cst_124 = arith.constant 1.000000e+00 : f32
    %374 = vector.broadcast %cst_124 : f32 to vector<2x128xf32>
    %375 = arith.addf %374, %373 : vector<2x128xf32>
    %cst_125 = arith.constant 1.000000e+00 : f32
    %376 = vector.broadcast %cst_125 : f32 to vector<2x128xf32>
    %377 = arith.divf %376, %375 : vector<2x128xf32>
    %378 = vector.extract_strided_slice %377 {offsets = [0, 0], sizes = [2, 64], strides = [1, 1]} : vector<2x128xf32> to vector<2x64xf32>
    %379 = vector.extract_strided_slice %377 {offsets = [0, 64], sizes = [2, 64], strides = [1, 1]} : vector<2x128xf32> to vector<2x64xf32>
    %380 = vector.extract_strided_slice %363 {offsets = [0, 128], sizes = [2, 64], strides = [1, 1]} : vector<2x192xf32> to vector<2x64xf32>
    %381 = vector.extract_strided_slice %367 {offsets = [0, 128], sizes = [2, 64], strides = [1, 1]} : vector<2x192xf32> to vector<2x64xf32>
    %382 = arith.mulf %378, %381 : vector<2x64xf32>
    %383 = arith.addf %380, %382 : vector<2x64xf32>
    %384 = math.tanh %383 : vector<2x64xf32>
    %cst_126 = arith.constant 1.000000e+00 : f32
    %385 = vector.broadcast %cst_126 : f32 to vector<2x64xf32>
    %386 = arith.subf %385, %379 : vector<2x64xf32>
    %387 = arith.mulf %386, %384 : vector<2x64xf32>
    %388 = arith.mulf %379, %343 : vector<2x64xf32>
    %389 = arith.addf %387, %388 : vector<2x64xf32>
    %390 = vector.extract_strided_slice %389 {offsets = [0, 0], sizes = [2, 32], strides = [1, 1]} : vector<2x64xf32> to vector<2x32xf32>
    %391 = arith.index_cast %c7_i32_116 : i32 to index
    %c0_127 = arith.constant 0 : index
    %c0_128 = arith.constant 0 : index
    %392 = vector.load %arg7[%391, %c0_127, %c0_128] : memref<8x2x32xf32, #tpu.memory_space<vmem>>, vector<1x2x32xf32>
    %393 = vector.shape_cast %392 : vector<1x2x32xf32> to vector<2x32xf32>
    %394 = vector.shape_cast %390 : vector<2x32xf32> to vector<1x2x32xf32>
    tpu.vector_store %arg7[%391, %c0_127, %c0_128], %394 {strides = array<i32>} : memref<8x2x32xf32, #tpu.memory_space<vmem>>, vector<1x2x32xf32>,
    %395 = vector.extract_strided_slice %389 {offsets = [0, 32], sizes = [2, 32], strides = [1, 1]} : vector<2x64xf32> to vector<2x32xf32>
    %396 = arith.index_cast %354 : i32 to index
    %c0_129 = arith.constant 0 : index
    %c0_130 = arith.constant 0 : index
    %397 = vector.load %arg8[%396, %c0_129, %c0_130] : memref<8x2x32xf32, #tpu.memory_space<vmem>>, vector<1x2x32xf32>
    %398 = vector.shape_cast %397 : vector<1x2x32xf32> to vector<2x32xf32>
    %399 = vector.shape_cast %395 : vector<2x32xf32> to vector<1x2x32xf32>
    tpu.vector_store %arg8[%396, %c0_129, %c0_130], %399 {strides = array<i32>} : memref<8x2x32xf32, #tpu.memory_space<vmem>>, vector<1x2x32xf32>,
    %c8_i32 = arith.constant 8 : i32
    %c0_131 = arith.constant 0 : index
    %c0_132 = arith.constant 0 : index
    %c0_133 = arith.constant 0 : index
    %400 = vector.load %arg7[%c0_131, %c0_132, %c0_133] : memref<8x2x32xf32, #tpu.memory_space<vmem>>, vector<8x2x32xf32>
    %c0_134 = arith.constant 0 : index
    %c0_135 = arith.constant 0 : index
    %c0_136 = arith.constant 0 : index
    %401 = vector.load %arg8[%c0_134, %c0_135, %c0_136] : memref<8x2x32xf32, #tpu.memory_space<vmem>>, vector<8x2x32xf32>
    %402 = tpu.concatenate %400, %401 in 2 : vector<8x2x32xf32>, vector<8x2x32xf32> -> vector<8x2x64xf32>
    %c0_137 = arith.constant 0 : index
    %c0_138 = arith.constant 0 : index
    %c0_139 = arith.constant 0 : index
    %403 = vector.load %arg5[%c0_137, %c0_138, %c0_139] : memref<8x2x64xf32, #tpu.memory_space<vmem>>, vector<8x2x64xf32>
    tpu.vector_store %arg5[%c0_137, %c0_138, %c0_139], %402 {strides = array<i32>} : memref<8x2x64xf32, #tpu.memory_space<vmem>>, vector<8x2x64xf32>,
    return
  }
}

module attributes {stable_mosaic.version = 11 : i64} {
  func.func @tiled_linear_kernel(%arg0: i32, %arg1: i32, %arg2: memref<2x512xbf16, #tpu.memory_space<vmem>>, %arg3: memref<512x128xbf16, #tpu.memory_space<vmem>>, %arg4: memref<1x128xf32, #tpu.memory_space<vmem>>, %arg5: memref<2x128xf32, #tpu.memory_space<vmem>>, %arg6: memref<2x128xf32, #tpu.memory_space<vmem>>) attributes {dimension_semantics = [#tpu.dimension_semantics<parallel>, #tpu.dimension_semantics<arbitrary>], iteration_bounds = array<i64: 1, 1>, scalar_prefetch = 0 : i64, scratch_operands = 1 : i64, tpu.core_type = #tpu.core_type<tc>, window_params = [{transform_indices = @transform_0, window_bounds = array<i64: 2, 512>}, {transform_indices = @transform_1, window_bounds = array<i64: 512, 128>}, {transform_indices = @transform_2, window_bounds = array<i64: 1, 128>}, {transform_indices = @transform_3, window_bounds = array<i64: 2, 128>}]} {
    %c0_i32 = arith.constant 0 : i32
    %0 = arith.cmpi eq, %arg1, %c0_i32 : i32
    %1 = arith.extui %0 : i1 to i32
    %c0_i32_0 = arith.constant 0 : i32
    %2 = arith.cmpi ne, %1, %c0_i32_0 : i32
    scf.if %2 {
      %cst_10 = arith.constant 0.000000e+00 : f32
      %12 = vector.broadcast %cst_10 : f32 to vector<2x128xf32>
      %c0_11 = arith.constant 0 : index
      %c0_12 = arith.constant 0 : index
      %13 = vector.load %arg6[%c0_11, %c0_12] : memref<2x128xf32, #tpu.memory_space<vmem>>, vector<2x128xf32>
      tpu.vector_store %arg6[%c0_11, %c0_12], %12 {strides = array<i32>} : memref<2x128xf32, #tpu.memory_space<vmem>>, vector<2x128xf32>,
    } else {
    }
    %c0 = arith.constant 0 : index
    %c0_1 = arith.constant 0 : index
    %3 = vector.load %arg6[%c0, %c0_1] : memref<2x128xf32, #tpu.memory_space<vmem>>, vector<2x128xf32>
    %c0_2 = arith.constant 0 : index
    %c0_3 = arith.constant 0 : index
    %4 = vector.load %arg2[%c0_2, %c0_3] : memref<2x512xbf16, #tpu.memory_space<vmem>>, vector<2x512xbf16>
    %c0_4 = arith.constant 0 : index
    %c0_5 = arith.constant 0 : index
    %5 = vector.load %arg3[%c0_4, %c0_5] : memref<512x128xbf16, #tpu.memory_space<vmem>>, vector<512x128xbf16>
    %cst = arith.constant dense<0.000000e+00> : vector<2x128xf32>
    %6 = tpu.matmul %4, %5, %cst {dimension_numbers = #tpu.dot_dimension_numbers<[1], [0], [0], [1], [0, 0, 1, 1], [], []>} : vector<2x512xbf16>, vector<512x128xbf16>, vector<2x128xf32> -> vector<2x128xf32>
    %7 = arith.addf %3, %6 : vector<2x128xf32>
    %c0_6 = arith.constant 0 : index
    %c0_7 = arith.constant 0 : index
    %8 = vector.load %arg6[%c0_6, %c0_7] : memref<2x128xf32, #tpu.memory_space<vmem>>, vector<2x128xf32>
    tpu.vector_store %arg6[%c0_6, %c0_7], %7 {strides = array<i32>} : memref<2x128xf32, #tpu.memory_space<vmem>>, vector<2x128xf32>,
    %c0_i32_8 = arith.constant 0 : i32
    %9 = arith.cmpi eq, %arg1, %c0_i32_8 : i32
    %10 = arith.extui %9 : i1 to i32
    %c0_i32_9 = arith.constant 0 : i32
    %11 = arith.cmpi ne, %10, %c0_i32_9 : i32
    scf.if %11 {
      %c0_10 = arith.constant 0 : index
      %c0_11 = arith.constant 0 : index
      %12 = vector.load %arg6[%c0_10, %c0_11] : memref<2x128xf32, #tpu.memory_space<vmem>>, vector<2x128xf32>
      %c0_12 = arith.constant 0 : index
      %c0_13 = arith.constant 0 : index
      %13 = vector.load %arg4[%c0_12, %c0_13] : memref<1x128xf32, #tpu.memory_space<vmem>>, vector<1x128xf32>
      %14 = vector.broadcast %13 : vector<1x128xf32> to vector<2x128xf32>
      %15 = arith.addf %12, %14 : vector<2x128xf32>
      %cst_14 = arith.constant 0.707106769 : f32
      %16 = vector.broadcast %cst_14 : f32 to vector<2x128xf32>
      %17 = arith.mulf %15, %16 : vector<2x128xf32>
      %18 = math.absf %17 : vector<2x128xf32>
      %cst_15 = arith.constant 0.327591091 : f32
      %19 = vector.broadcast %cst_15 : f32 to vector<2x128xf32>
      %20 = arith.mulf %19, %18 : vector<2x128xf32>
      %cst_16 = arith.constant 1.000000e+00 : f32
      %21 = vector.broadcast %cst_16 : f32 to vector<2x128xf32>
      %22 = arith.addf %21, %20 : vector<2x128xf32>
      %cst_17 = arith.constant 1.000000e+00 : f32
      %23 = vector.broadcast %cst_17 : f32 to vector<2x128xf32>
      %24 = arith.divf %23, %22 : vector<2x128xf32>
      %cst_18 = arith.constant 1.06140542 : f32
      %25 = vector.broadcast %cst_18 : f32 to vector<2x128xf32>
      %26 = arith.mulf %24, %25 : vector<2x128xf32>
      %cst_19 = arith.constant -1.45315206 : f32
      %27 = vector.broadcast %cst_19 : f32 to vector<2x128xf32>
      %28 = arith.addf %27, %26 : vector<2x128xf32>
      %29 = arith.mulf %24, %28 : vector<2x128xf32>
      %cst_20 = arith.constant 1.42141378 : f32
      %30 = vector.broadcast %cst_20 : f32 to vector<2x128xf32>
      %31 = arith.addf %30, %29 : vector<2x128xf32>
      %32 = arith.mulf %24, %31 : vector<2x128xf32>
      %cst_21 = arith.constant -0.284496725 : f32
      %33 = vector.broadcast %cst_21 : f32 to vector<2x128xf32>
      %34 = arith.addf %33, %32 : vector<2x128xf32>
      %35 = arith.mulf %24, %34 : vector<2x128xf32>
      %cst_22 = arith.constant 0.254829586 : f32
      %36 = vector.broadcast %cst_22 : f32 to vector<2x128xf32>
      %37 = arith.addf %36, %35 : vector<2x128xf32>
      %38 = arith.mulf %24, %37 : vector<2x128xf32>
      %cst_23 = arith.constant 0.000000e+00 : f32
      %39 = vector.broadcast %cst_23 : f32 to vector<2x128xf32>
      %40 = arith.subf %39, %18 : vector<2x128xf32>
      %41 = arith.mulf %40, %18 : vector<2x128xf32>
      %42 = math.exp %41 : vector<2x128xf32>
      %43 = arith.mulf %38, %42 : vector<2x128xf32>
      %cst_24 = arith.constant 1.000000e+00 : f32
      %44 = vector.broadcast %cst_24 : f32 to vector<2x128xf32>
      %45 = arith.subf %44, %43 : vector<2x128xf32>
      %cst_25 = arith.constant 0.000000e+00 : f32
      %46 = vector.broadcast %cst_25 : f32 to vector<2x128xf32>
      %47 = arith.cmpf oge, %17, %46 : vector<2x128xf32>
      %cst_26 = arith.constant 0.000000e+00 : f32
      %48 = vector.broadcast %cst_26 : f32 to vector<2x128xf32>
      %49 = arith.subf %48, %45 : vector<2x128xf32>
      %50 = arith.select %47, %45, %49 : vector<2x128xi1>, vector<2x128xf32>
      %cst_27 = arith.constant 5.000000e-01 : f32
      %51 = vector.broadcast %cst_27 : f32 to vector<2x128xf32>
      %52 = arith.mulf %51, %15 : vector<2x128xf32>
      %cst_28 = arith.constant 1.000000e+00 : f32
      %53 = vector.broadcast %cst_28 : f32 to vector<2x128xf32>
      %54 = arith.addf %53, %50 : vector<2x128xf32>
      %55 = arith.mulf %52, %54 : vector<2x128xf32>
      %c0_29 = arith.constant 0 : index
      %c0_30 = arith.constant 0 : index
      %56 = vector.load %arg5[%c0_29, %c0_30] : memref<2x128xf32, #tpu.memory_space<vmem>>, vector<2x128xf32>
      tpu.vector_store %arg5[%c0_29, %c0_30], %55 {strides = array<i32>} : memref<2x128xf32, #tpu.memory_space<vmem>>, vector<2x128xf32>,
    } else {
    }
    return
  }
  func.func @transform_0(%arg0: i32, %arg1: i32) -> (i32, i32) {
    %c0_i32 = arith.constant 0 : i32
    %c0_i32_0 = arith.constant 0 : i32
    return %c0_i32, %arg1 : i32, i32
  }
  func.func @transform_1(%arg0: i32, %arg1: i32) -> (i32, i32) {
    %c0_i32 = arith.constant 0 : i32
    return %arg1, %arg0 : i32, i32
  }
  func.func @transform_2(%arg0: i32, %arg1: i32) -> (i32, i32) {
    %c0_i32 = arith.constant 0 : i32
    %c0_i32_0 = arith.constant 0 : i32
    return %c0_i32, %arg0 : i32, i32
  }
  func.func @transform_3(%arg0: i32, %arg1: i32) -> (i32, i32) {
    %c0_i32 = arith.constant 0 : i32
    %c0_i32_0 = arith.constant 0 : i32
    return %c0_i32, %arg0 : i32, i32
  }
}

module attributes {stable_mosaic.version = 11 : i64} {
  func.func @mlp_tail_kernel(%arg0: memref<2x128xbf16, #tpu.memory_space<vmem>>, %arg1: memref<128x3xbf16, #tpu.memory_space<vmem>>, %arg2: memref<1x3xf32, #tpu.memory_space<vmem>>, %arg3: memref<2x3xf32, #tpu.memory_space<vmem>>) attributes {dimension_semantics = [], scalar_prefetch = 0 : i64, scratch_operands = 0 : i64, tpu.core_type = #tpu.core_type<tc>} {
    %c0 = arith.constant 0 : index
    %c0_0 = arith.constant 0 : index
    %0 = vector.load %arg0[%c0, %c0_0] : memref<2x128xbf16, #tpu.memory_space<vmem>>, vector<2x128xbf16>
    %1 = arith.extf %0 : vector<2x128xbf16> to vector<2x128xf32>
    %c0_1 = arith.constant 0 : index
    %c0_2 = arith.constant 0 : index
    %2 = vector.load %arg1[%c0_1, %c0_2] : memref<128x3xbf16, #tpu.memory_space<vmem>>, vector<128x3xbf16>
    %c0_3 = arith.constant 0 : index
    %c0_4 = arith.constant 0 : index
    %3 = vector.load %arg2[%c0_3, %c0_4] : memref<1x3xf32, #tpu.memory_space<vmem>>, vector<1x3xf32>
    %4 = arith.truncf %1 : vector<2x128xf32> to vector<2x128xbf16>
    %cst = arith.constant dense<0.000000e+00> : vector<2x3xf32>
    %5 = tpu.matmul %4, %2, %cst {dimension_numbers = #tpu.dot_dimension_numbers<[1], [0], [0], [1], [0, 0, 1, 1], [], []>} : vector<2x128xbf16>, vector<128x3xbf16>, vector<2x3xf32> -> vector<2x3xf32>
    %6 = vector.broadcast %3 : vector<1x3xf32> to vector<2x3xf32>
    %7 = arith.addf %5, %6 : vector<2x3xf32>
    %c0_5 = arith.constant 0 : index
    %c0_6 = arith.constant 0 : index
    %8 = vector.load %arg3[%c0_5, %c0_6] : memref<2x3xf32, #tpu.memory_space<vmem>>, vector<2x3xf32>
    tpu.vector_store %arg3[%c0_5, %c0_6], %7 {strides = array<i32>} : memref<2x3xf32, #tpu.memory_space<vmem>>, vector<2x3xf32>,
    return
  }
}

</mosaic_0001>

<llo_original>
// kernel: grulob_forward.5
$region0: #{grulob_forward.5}
  #allocation0 [shape = 'u32[]', space=smem, size = 0x4, offset = 0x4, fixed_abs, tag = 'smem constant byte address 0x4 - core index']
  #allocation1 [shape = 'u32[144,128]{1,0:T(1,128)}', space=vmem, size = 0x12000, scoped, tag = 'internal scratch']
  %s0 = inlined_call_operand.hbm [shape: f32[2,8,16], index: 0, kind: input, shape index: {}]
  %s1 = inlined_call_operand.vmem [shape: f32[1,8,1], index: 1, kind: input, shape index: {}]
  %s2 = inlined_call_operand.vmem [shape: f32[1,8,1], index: 2, kind: input, shape index: {}]
  %s3 = inlined_call_operand.hbm [shape: f32[1,1,16], index: 3, kind: input, shape index: {}]
  %s4 = inlined_call_operand.hbm [shape: f32[1,1,16], index: 4, kind: input, shape index: {}]
  %s5 = inlined_call_operand.hbm [shape: f32[2], index: 5, kind: input, shape index: {}]
  %s6 = inlined_call_operand.vmem [shape: bf16[16,32], index: 6, kind: input, shape index: {}]
  %s7 = inlined_call_operand.vmem [shape: f32[1,32], index: 7, kind: input, shape index: {}]
  %s8 = inlined_call_operand.vmem [shape: f32[8,2,32], index: 8, kind: output, shape index: {}]
  %s9 = sld [smem:[#allocation0]]
  $region58: #{grulob_forward.5} parent=0
    _
  %s11 = ssub.s32 1, %s9
  %s12 = scalar_select 0, %s11, %s9
  $region1: #{grulob_forward.5} parent=0
    #allocation2 [shape = 'u8[8192]{0}', space=vmem, size = 0x2000, scoped, tag = 'input window, operand 0, single buffered']
    #allocation3 [shape = 's32[1]{0}', space=sflag, size = 0x4, scoped, tag = 'scoped memory for grulob_forward.5']
    #allocation4 [shape = 's32[1]{0}', space=sflag, size = 0x4, scoped, tag = 'scoped memory for grulob_forward.5']
    #allocation5 [shape = 'u8[512]{0}', space=vmem, size = 0x400, scoped, tag = 'input window, operand 3, single buffered']
    #allocation6 [shape = 's32[1]{0}', space=sflag, size = 0x4, scoped, tag = 'scoped memory for grulob_forward.5']
    #allocation7 [shape = 'u8[512]{0}', space=vmem, size = 0x400, scoped, tag = 'input window, operand 4, single buffered']
    #allocation8 [shape = 'u8[512]{0}', space=smem, size = 0x200, scoped, tag = 'input window, operand 5, single buffered']
    %13 = vsyncpa [#allocation3], 0
    %14 = vsyncpa [#allocation6], 0
    %15 = vsyncpa [#allocation4], 0
    // Predicated region
    $region2: #{grulob_forward.5} parent=1 // pred_check
      _
    $region3: #{grulob_forward.5} parent=1 // pred_check_branch
      %17 = sbr.rel (0) target = $region5
    $region4: #{grulob_forward.5} parent=1 // pred_region
      %s19 = ssub.s32 256, 256
      %20 = vsyncadd [#allocation3], %s19
      %s21 = sshll.u32 [#allocation2], 4
      %s22 = int_to_ptr.vmem [resolvable:$true] %s21
      %27 = dma.hbm_to_vmem [thread:$0]  %s0, 256, %s22, [#allocation3], 128, 128, 8
    $region5: #{grulob_forward.5} parent=1 // pred_fallthru
      _
    // Predicated region
    $region6: #{grulob_forward.5} parent=1 // pred_check
      _
    $region7: #{grulob_forward.5} parent=1 // pred_check_branch
      %29 = sbr.rel (0) target = $region9
    $region8: #{grulob_forward.5} parent=1 // pred_region
      _
    $region9: #{grulob_forward.5} parent=1 // pred_fallthru
      _
    // Predicated region
    $region10: #{grulob_forward.5} parent=1 // pred_check
      _
    $region11: #{grulob_forward.5} parent=1 // pred_check_branch
      %31 = sbr.rel (0) target = $region13
    $region12: #{grulob_forward.5} parent=1 // pred_region
      _
    $region13: #{grulob_forward.5} parent=1 // pred_fallthru
      _
    // Predicated region
    $region14: #{grulob_forward.5} parent=1 // pred_check
      _
    $region15: #{grulob_forward.5} parent=1 // pred_check_branch
      %33 = sbr.rel (0) target = $region17
    $region16: #{grulob_forward.5} parent=1 // pred_region
      %s35 = ssub.s32 16, 16
      %36 = vsyncadd [#allocation6], %s35
      %s38 = sshll.u32 [#allocation5], 4
      %s39 = int_to_ptr.vmem [resolvable:$true] %s38
      %41 = dma.hbm_to_vmem [thread:$0]  %s3, 16, %s39, [#allocation6]
    $region17: #{grulob_forward.5} parent=1 // pred_fallthru
      _
    // Predicated region
    $region18: #{grulob_forward.5} parent=1 // pred_check
      _
    $region19: #{grulob_forward.5} parent=1 // pred_check_branch
      %43 = sbr.rel (0) target = $region21
    $region20: #{grulob_forward.5} parent=1 // pred_region
      %s45 = ssub.s32 16, 16
      %46 = vsyncadd [#allocation6], %s45
      %s48 = sshll.u32 [#allocation7], 4
      %s49 = int_to_ptr.vmem [resolvable:$true] %s48
      %51 = dma.hbm_to_vmem [thread:$0]  %s4, 16, %s49, [#allocation6]
    $region21: #{grulob_forward.5} parent=1 // pred_fallthru
      _
    // Predicated region
    $region22: #{grulob_forward.5} parent=1 // pred_check
      _
    $region23: #{grulob_forward.5} parent=1 // pred_check_branch
      %53 = sbr.rel (0) target = $region25
    $region24: #{grulob_forward.5} parent=1 // pred_region
      %s55 = ssub.s32 16, 16
      %56 = vsyncadd [#allocation4], %s55
      %59 = dma.hbm_to_smem %s5, 16, [#allocation8], [#allocation4]
    $region25: #{grulob_forward.5} parent=1 // pred_fallthru
      _
    // Predicated region
    $region26: #{grulob_forward.5} parent=1 // pred_check
      _
    $region27: #{grulob_forward.5} parent=1 // pred_check_branch
      %61 = sbr.rel (0) target = $region29
    $region28: #{grulob_forward.5} parent=1 // pred_region
      _
    $region29: #{grulob_forward.5} parent=1 // pred_fallthru
      _
    // Predicated region
    $region30: #{grulob_forward.5} parent=1 // pred_check
      _
    $region31: #{grulob_forward.5} parent=1 // pred_check_branch
      %63 = sbr.rel (0) target = $region33
    $region32: #{grulob_forward.5} parent=1 // pred_region
      _
    $region33: #{grulob_forward.5} parent=1 // pred_fallthru
      _
    // Predicated region
    $region34: #{grulob_forward.5} parent=1 // pred_check
      _
    $region35: #{grulob_forward.5} parent=1 // pred_check_branch
      %65 = sbr.rel (0) target = $region37
    $region36: #{grulob_forward.5} parent=1 // pred_region
      %66 = dma.done [#allocation3], 256
    $region37: #{grulob_forward.5} parent=1 // pred_fallthru
      _
    // Predicated region
    $region38: #{grulob_forward.5} parent=1 // pred_check
      _
    $region39: #{grulob_forward.5} parent=1 // pred_check_branch
      %68 = sbr.rel (0) target = $region41
    $region40: #{grulob_forward.5} parent=1 // pred_region
      %69 = dma.done [#allocation6], 16
    $region41: #{grulob_forward.5} parent=1 // pred_fallthru
      _
    // Predicated region
    $region42: #{grulob_forward.5} parent=1 // pred_check
      _
    $region43: #{grulob_forward.5} parent=1 // pred_check_branch
      %71 = sbr.rel (0) target = $region45
    $region44: #{grulob_forward.5} parent=1 // pred_region
      %72 = dma.done [#allocation6], 16
    $region45: #{grulob_forward.5} parent=1 // pred_fallthru
      _
    // Predicated region
    $region46: #{grulob_forward.5} parent=1 // pred_check
      _
    $region47: #{grulob_forward.5} parent=1 // pred_check_branch
      %74 = sbr.rel (0) target = $region49
    $region48: #{grulob_forward.5} parent=1 // pred_region
      %75 = dma.done [#allocation4], 16
    $region49: #{grulob_forward.5} parent=1 // pred_fallthru
      _
    %76 = sfence
    %v78 = vld [vmem:[#allocation2] sm:$0xff]
    %v79 = vld [vmem:[#allocation2 + $0x8] sm:$0xff]
    %v80 = vmul.f32 %v78, %v78
    %v81 = vmul.f32 %v79, %v79
    %vm82 = vcmask 130048
    %v83 = vsel %vm82, %v78, 0.0
    %v84 = vrot.slane %v83, 4
    %v85 = vadd.f32 %v83, %v84
    %v86 = vrot.slane %v85, 2
    %v87 = vadd.f32 %v85, %v86
    %v88 = vrot.slane %v87, 1
    %v89 = vadd.f32 %v87, %v88
    %v90 = vsel %vm82, %v79, 0.0
    %v91 = vrot.slane %v90, 4
    %v92 = vadd.f32 %v90, %v91
    %v93 = vrot.slane %v92, 2
    %v94 = vadd.f32 %v92, %v93
    %v95 = vrot.slane %v94, 1
    %v96 = vadd.f32 %v94, %v95
    %v97 = vrcp.pop 8.0
    %v98 = vmul.f32 %v89, %v97
    %v99 = vmul.f32 %v96, %v97
    %v100 = vsel %vm82, %v80, 0.0
    %v101 = vrot.slane %v100, 4
    %v102 = vadd.f32 %v100, %v101
    %v103 = vrot.slane %v102, 2
    %v104 = vadd.f32 %v102, %v103
    %v105 = vrot.slane %v104, 1
    %v106 = vadd.f32 %v104, %v105
    %v107 = vsel %vm82, %v81, 0.0
    %v108 = vrot.slane %v107, 4
    %v109 = vadd.f32 %v107, %v108
    %v110 = vrot.slane %v109, 2
    %v111 = vadd.f32 %v109, %v110
    %v112 = vrot.slane %v111, 1
    %v113 = vadd.f32 %v111, %v112
    %v114 = vmul.f32 %v106, %v97
    %v115 = vmul.f32 %v113, %v97
    %v116 = vmul.f32 %v98, %v98
    %v117 = vmul.f32 %v99, %v99
    %v118 = vsub.f32 %v114, %v116
    %v119 = vsub.f32 %v115, %v117
    %v120 = vmul.f32 %v118, 1.1428572
    %v121 = vmul.f32 %v119, 1.1428572
    %vm122 = vcmp.lt.f32.partialorder %v120, 1e-08
    %vm123 = vcmp.lt.f32.partialorder %v121, 1e-08
    %v124 = vmax.f32 %v120, 1e-12
    %v125 = vmax.f32 %v121, 1e-12
    %v126 = vrsqrt.pop %v124
    %v127 = vrsqrt.pop %v125
    %v128 = vsel %vm122, 1.0, %v126
    %v129 = vsel %vm123, 1.0, %v127
    %v130 = vld [vmem:[#allocation5] sm:$0x1]
    %v131 = vsub.f32 %v78, %v98
    %v132 = vsub.f32 %v79, %v99
    %v133 = vmul.f32 %v131, %v128
    %v134 = vmul.f32 %v132, %v129
    %v136 = vlaneseq
    %v137 = vshrl.u32 %v136, 7
    %v138 = vsub.s32 0, %v137
    %v139 = vrot.slane %v130, %v138
    %v141 = vmul.f32 %v139, %v133
    %v142 = vmul.f32 %v139, %v134
    %v143 = vld [vmem:[#allocation7] sm:$0x1]
    %v145 = vlaneseq
    %v146 = vshrl.u32 %v145, 7
    %v147 = vsub.s32 0, %v146
    %v148 = vrot.slane %v143, %v147
    %v150 = vadd.f32 %v141, %v148
    %v151 = vadd.f32 %v142, %v148
    %152 = vadd.xlane.f32.xlu0 %v83
    %v153 = vpop.xlane.xlu0 %152
    %154 = vadd.xlane.f32.xlu0 %v90
    %v155 = vpop.xlane.xlu0 %154
    %v156 = vrcp.pop 16.0
    %v157 = vmul.f32 %v153, %v156
    %v158 = vmul.f32 %v155, %v156
    %159 = vadd.xlane.f32.xlu0 %v100
    %v160 = vpop.xlane.xlu0 %159
    %161 = vadd.xlane.f32.xlu0 %v107
    %v162 = vpop.xlane.xlu0 %161
    %v163 = vmul.f32 %v160, %v156
    %v164 = vmul.f32 %v162, %v156
    %v165 = vmul.f32 %v157, %v157
    %v166 = vmul.f32 %v158, %v158
    %v167 = vsub.f32 %v163, %v165
    %v168 = vsub.f32 %v164, %v166
    %v169 = vmul.f32 %v167, 1.0666667
    %v170 = vmul.f32 %v168, 1.0666667
    %vm171 = vcmp.lt.f32.partialorder %v169, 1e-08
    %vm172 = vcmp.lt.f32.partialorder %v170, 1e-08
    %v173 = vmax.f32 %v169, 1e-12
    %v174 = vmax.f32 %v170, 1e-12
    %v175 = vrsqrt.pop %v173
    %v176 = vrsqrt.pop %v174
    %v177 = vsel %vm171, 1.0, %v175
    %v178 = vsel %vm172, 1.0, %v176
    %v179 = vld [vmem:[%s1] sm:$0xff]
    %v180 = vsub.f32 %v78, %v157
    %v181 = vsub.f32 %v79, %v158
    %v182 = vmul.f32 %v180, %v177
    %v183 = vmul.f32 %v181, %v178
    %185 = vset.pattern.permute.xlu0 0
    %186 = vperm.xlu0 %185, %v179
    %v187 = vpop.permute.xlu0 %186
    %v189 = vmul.f32 %v187, %v182
    %v190 = vmul.f32 %v187, %v183
    %v191 = vld [vmem:[%s2] sm:$0xff]
    %193 = vset.pattern.permute.xlu0 0
    %194 = vperm.xlu0 %193, %v191
    %v195 = vpop.permute.xlu0 %194
    %v197 = vadd.f32 %v189, %v195
    %v198 = vadd.f32 %v190, %v195
    %s199 = sld [smem:[#allocation8]]
    %v200 = vstv %s199
    %v201 = vmul.f32 %v200, %v197
    %v202 = vmul.f32 %v200, %v198
    %s203 = sld [smem:[#allocation8 + $0x1]]
    %v204 = vstv %s203
    %v205 = vmul.f32 %v204, %v150
    %v206 = vmul.f32 %v204, %v151
    %v207 = vadd.f32 %v201, %v205
    %v208 = vadd.f32 %v202, %v206
    %v209 = vld [vmem:[%s7] sm:$0x1]
    %v210 = vpack.c.bf16 %v208, %v207
    %v211 = vld [vmem:[%s6] sm:$0xf]
    %v212 = vld [vmem:[%s6 + $0x4] sm:$0xf]
    %v214 = vlaneseq
    %v215 = vshrl.u32 %v214, 7
    %v216 = vsub.s32 0, %v215
    %v217 = vrot.slane %v209, %v216
    %v221 = vunpack.c.l.b16 %v211
    %v222 = vunpack.c.l.b16 %v212
    %v223 = vpack.c.b16 %v222, %v221
    %v226 = vsel %vm82, %v210, 0
    %228 = vmatprep.subr.bf16.mxu0 0
    %229 = vmatpush1.bf16.msra.mxu0 %v223
    %230 = vmatprep.subr.bf16.mxu0 0
    %231 = vmatpush1.bf16.msra.mxu0 0
    %232 = vmatprep.subr.bf16.mxu0 0
    %233 = vmatpush1.bf16.msra.mxu0 0
    %234 = vmatprep.subr.bf16.mxu0 0
    %235 = vmatpush1.bf16.msra.mxu0 0
    %236 = vmatprep.subr.bf16.mxu0 0
    %237 = vmatpush1.bf16.msra.mxu0 0
    %238 = vmatprep.subr.bf16.mxu0 0
    %239 = vmatpush1.bf16.msra.mxu0 0
    %240 = vmatprep.subr.bf16.mxu0 0
    %241 = vmatpush1.bf16.msra.mxu0 0
    %242 = vmatprep.subr.bf16.mxu0 0
    %243 = vmatpush1.bf16.msra.mxu0 0
    %244 = vmatprep.subr.bf16.mxu0 0
    %245 = vmatpush1.bf16.msra.mxu0 0
    %246 = vmatprep.subr.bf16.mxu0 0
    %247 = vmatpush1.bf16.msra.mxu0 0
    %248 = vmatprep.subr.bf16.mxu0 0
    %249 = vmatpush1.bf16.msra.mxu0 0
    %250 = vmatprep.subr.bf16.mxu0 0
    %251 = vmatpush1.bf16.msra.mxu0 0
    %252 = vmatprep.subr.bf16.mxu0 0
    %253 = vmatpush1.bf16.msra.mxu0 0
    %254 = vmatprep.subr.bf16.mxu0 0
    %255 = vmatpush1.bf16.msra.mxu0 0
    %256 = vmatprep.subr.bf16.mxu0 0
    %257 = vmatpush1.bf16.msra.mxu0 0
    %258 = vmatprep.subr.bf16.mxu0 0
    %259 = vmatpush1.bf16.msra.mxu0 0
    %260 = vmatprep.mubr.bf16.mxu0 0
    %261 = vmatmul.mubr.bf16.gmra.mrb[0].mxu0 %v226
    %v262 = vpop.f32.mrb[0].mxu0
    %v263 = vadd.f32 %v217, %v262
    %v264 = vpop.f32.mrb[0].mxu0
    %v265 = vpop.f32.mrb[0].mxu0
    %v266 = vadd.f32 %v217, %v265
    %v267 = vpop.f32.mrb[0].mxu0
    %268 = vdwg.mxu0
    %v271 = vrot.slane %v266, 7
    %vm272 = vcmask 1041409
    %v273 = vsel %vm272, %v271, %v263
    %vm275 = vcmask 254976
    %276 = vst.msk [vmem:[%s8] sm:$0x3] %vm275, %v273
    %vm277 = vcmask 1042434
    %v278 = vsel %vm277, %v271, %v263
    %s280 = scalar_lea.vmem %s8, 2
    %vm281 = vcmask 256001
    %282 = vst.msk [vmem:[%s280 - $0x1] sm:$0x6] %vm281, %v278
    %vm283 = vcmask 1043459
    %v284 = vsel %vm283, %v271, %v263
    %s286 = scalar_lea.vmem %s8, 4
    %vm287 = vcmask 257026
    %288 = vst.msk [vmem:[%s286 - $0x2] sm:$0xc] %vm287, %v284
    %vm289 = vcmask 1044484
    %v290 = vsel %vm289, %v271, %v263
    %s292 = scalar_lea.vmem %s8, 6
    %vm293 = vcmask 258051
    %294 = vst.msk [vmem:[%s292 - $0x3] sm:$0x18] %vm293, %v290
    %vm295 = vcmask 1045509
    %v296 = vsel %vm295, %v271, %v263
    %s298 = scalar_lea.vmem %s8, 8
    %vm299 = vcmask 259076
    %300 = vst.msk [vmem:[%s298 - $0x4] sm:$0x30] %vm299, %v296
    %vm301 = vcmask 1046534
    %v302 = vsel %vm301, %v271, %v263
    %s304 = scalar_lea.vmem %s8, 10
    %vm305 = vcmask 260101
    %306 = vst.msk [vmem:[%s304 - $0x5] sm:$0x60] %vm305, %v302
    %vm307 = vcmask 1047559
    %v308 = vsel %vm307, %v271, %v263
    %s310 = scalar_lea.vmem %s8, 12
    %vm311 = vcmask 261126
    %312 = vst.msk [vmem:[%s310 - $0x6] sm:$0xc0] %vm311, %v308
    %s315 = scalar_lea.vmem %s8, 14
    %vm316 = vcmask 261127
    %317 = vst.msk [vmem:[%s315 - $0x7] sm:$0x80] %vm316, %v263
    %vm318 = vcmask 253952
    %319 = vst.msk [vmem:[%s315 + $0x1] sm:$0x1] %vm318, %v271
    // Predicated region
    $region50: #{grulob_forward.5} parent=1 // pred_check
      _
    $region51: #{grulob_forward.5} parent=1 // pred_check_branch
      %321 = sbr.rel (0) target = $region53
    $region52: #{grulob_forward.5} parent=1 // pred_region
      _
    $region53: #{grulob_forward.5} parent=1 // pred_fallthru
      _
    // Predicated region
    $region54: #{grulob_forward.5} parent=1 // pred_check
      _
    $region55: #{grulob_forward.5} parent=1 // pred_check_branch
      %323 = sbr.rel (0) target = $region57
    $region56: #{grulob_forward.5} parent=1 // pred_region
      _
    $region57: #{grulob_forward.5} parent=1 // pred_fallthru
      _
    %324 = vsyncpa [#allocation3], 1
    %325 = vsyncpa [#allocation6], 1
    %326 = vsyncpa [#allocation4], 1

// kernel: grulob_forward.7
$region0: #{grulob_forward.7}
  #allocation0 [shape = 'u32[]', space=smem, size = 0x4, offset = 0x4, fixed_abs, tag = 'smem constant byte address 0x4 - core index']
  #allocation1 [shape = 'u32[144,128]{1,0:T(1,128)}', space=vmem, size = 0x12000, scoped, tag = 'internal scratch']
  #allocation2 [shape = 'f32[8,2,192]{2,1,0:T(2,128)}', space=vmem, size = 0x4000, scoped, tag = 'scratch operand']
  #allocation3 [shape = 'f32[8,2,32]{2,1,0:T(2,128)}', space=vmem, size = 0x2000, scoped, tag = 'scratch operand']
  #allocation4 [shape = 'f32[8,2,32]{2,1,0:T(2,128)}', space=vmem, size = 0x2000, scoped, tag = 'scratch operand']
  %s0 = inlined_call_operand.vmem [shape: f32[8,2,64], index: 0, kind: input, shape index: {}]
  %s1 = inlined_call_operand.vmem [shape: bf16[64,192], index: 1, kind: input, shape index: {}]
  %s2 = inlined_call_operand.vmem [shape: f32[1,192], index: 2, kind: input, shape index: {}]
  %s3 = inlined_call_operand.vmem [shape: bf16[64,192], index: 3, kind: input, shape index: {}]
  %s4 = inlined_call_operand.vmem [shape: f32[1,192], index: 4, kind: input, shape index: {}]
  %s5 = inlined_call_operand.vmem [shape: f32[2,8,64], index: 5, kind: output, shape index: {}]
  %s6 = sld [smem:[#allocation0]]
  $region30: #{grulob_forward.7} parent=0
    _
  %s8 = ssub.s32 1, %s6
  %s9 = scalar_select 0, %s8, %s6
  // Predicated region
  $region2: #{grulob_forward.7} parent=0 // pred_check
    _
  $region3: #{grulob_forward.7} parent=0 // pred_check_branch
    %11 = sbr.rel (0) target = $region5
  $region4: #{grulob_forward.7} parent=0 // pred_region
    _
  $region5: #{grulob_forward.7} parent=0 // pred_fallthru
    _
  // Predicated region
  $region6: #{grulob_forward.7} parent=0 // pred_check
    _
  $region7: #{grulob_forward.7} parent=0 // pred_check_branch
    %13 = sbr.rel (0) target = $region9
  $region8: #{grulob_forward.7} parent=0 // pred_region
    _
  $region9: #{grulob_forward.7} parent=0 // pred_fallthru
    _
  // Predicated region
  $region10: #{grulob_forward.7} parent=0 // pred_check
    _
  $region11: #{grulob_forward.7} parent=0 // pred_check_branch
    %15 = sbr.rel (0) target = $region13
  $region12: #{grulob_forward.7} parent=0 // pred_region
    _
  $region13: #{grulob_forward.7} parent=0 // pred_fallthru
    _
  // Predicated region
  $region14: #{grulob_forward.7} parent=0 // pred_check
    _
  $region15: #{grulob_forward.7} parent=0 // pred_check_branch
    %17 = sbr.rel (0) target = $region17
  $region16: #{grulob_forward.7} parent=0 // pred_region
    _
  $region17: #{grulob_forward.7} parent=0 // pred_fallthru
    _
  // Predicated region
  $region18: #{grulob_forward.7} parent=0 // pred_check
    _
  $region19: #{grulob_forward.7} parent=0 // pred_check_branch
    %19 = sbr.rel (0) target = $region21
  $region20: #{grulob_forward.7} parent=0 // pred_region
    _
  $region21: #{grulob_forward.7} parent=0 // pred_fallthru
    _
  %v21 = vld [vmem:[%s2] sm:$0x3]
  %v22 = vld [vmem:[%s0] sm:$0x3]
  %v23 = vld [vmem:[%s0 + $0x2] sm:$0x3]
  %v24 = vld [vmem:[%s0 + $0x4] sm:$0x3]
  %v25 = vld [vmem:[%s0 + $0x6] sm:$0x3]
  %v26 = vld [vmem:[%s0 + $0x8] sm:$0x3]
  %v27 = vld [vmem:[%s0 + $0xa] sm:$0x3]
  %v28 = vld [vmem:[%s0 + $0xc] sm:$0x3]
  %v29 = vld [vmem:[%s0 + $0xe] sm:$0x3]
  %v38 = vcombine.low %v22, %v23
  %v39 = vcombine.low %v24, %v25
  %v41 = vunpack.c.l.s4 1983009808
  %v42 = vunpack.c.0.s8 %v41
  %v43 = vlaneseq
  %v44 = vshrl.u32 %v43, 7
  %v45 = vsub.s32 %v42, %v44
  %v46 = vrot.slane %v38, %v45
  %v48 = vunpack.c.l.s4 1983009808
  %v49 = vunpack.c.0.s8 %v48
  %v50 = vlaneseq
  %v51 = vshrl.u32 %v50, 7
  %v52 = vsub.s32 %v49, %v51
  %v53 = vrot.slane %v39, %v52
  %v54 = vcombine.low %v46, %v53
  %v55 = vcombine.low %v26, %v27
  %v56 = vcombine.low %v28, %v29
  %v58 = vunpack.c.l.s4 1983009808
  %v59 = vunpack.c.0.s8 %v58
  %v60 = vlaneseq
  %v61 = vshrl.u32 %v60, 7
  %v62 = vsub.s32 %v59, %v61
  %v63 = vrot.slane %v55, %v62
  %v65 = vunpack.c.l.s4 1983009808
  %v66 = vunpack.c.0.s8 %v65
  %v67 = vlaneseq
  %v68 = vshrl.u32 %v67, 7
  %v69 = vsub.s32 %v66, %v68
  %v70 = vrot.slane %v56, %v69
  %v71 = vcombine.low %v63, %v70
  %v74 = vpack.c.bf16 %v71, %v54
  %v75 = vld [vmem:[%s1] sm:$0xff]
  %v76 = vld [vmem:[%s1 + $0x8] sm:$0xff]
  %v77 = vld [vmem:[%s1 + $0x10] sm:$0xff]
  %v78 = vld [vmem:[%s1 + $0x18] sm:$0xff]
  %v79 = vld [vmem:[%s1 + $0x20] sm:$0xff]
  %v80 = vld [vmem:[%s1 + $0x28] sm:$0xff]
  %v81 = vld [vmem:[%s1 + $0x30] sm:$0xff]
  %v82 = vld [vmem:[%s1 + $0x38] sm:$0xff]
  %v84 = vlaneseq
  %v85 = vshrl.u32 %v84, 7
  %v86 = vsub.s32 0, %v85
  %v87 = vrot.slane %v21, %v86
  %v88 = vlaneseq
  %v89 = vshrl.u32 %v88, 7
  %v90 = vsub.s32 1, %v89
  %v91 = vrot.slane %v21, %v90
  %v102 = vunpack.c.l.b16 %v75
  %v103 = vunpack.c.h.b16 %v75
  %v104 = vunpack.c.l.b16 %v76
  %v105 = vunpack.c.h.b16 %v76
  %v106 = vunpack.c.l.b16 %v77
  %v107 = vunpack.c.h.b16 %v77
  %v108 = vunpack.c.l.b16 %v78
  %v109 = vunpack.c.h.b16 %v78
  %v110 = vunpack.c.l.b16 %v79
  %v111 = vunpack.c.h.b16 %v79
  %v112 = vunpack.c.l.b16 %v80
  %v113 = vunpack.c.h.b16 %v80
  %v114 = vunpack.c.l.b16 %v81
  %v115 = vunpack.c.h.b16 %v81
  %v116 = vunpack.c.l.b16 %v82
  %v117 = vunpack.c.h.b16 %v82
  %v118 = vpack.c.b16 %v104, %v102
  %v119 = vpack.c.b16 %v105, %v103
  %v120 = vpack.c.b16 %v108, %v106
  %v121 = vpack.c.b16 %v109, %v107
  %v122 = vpack.c.b16 %v112, %v110
  %v123 = vpack.c.b16 %v113, %v111
  %v124 = vpack.c.b16 %v116, %v114
  %v125 = vpack.c.b16 %v117, %v115
  %vm134 = vcmask 523264
  %v136 = vsel %vm134, %v74, 0
  %138 = vmatprep.subr.bf16.mxu0 %v119
  %139 = vmatpush1.bf16.msra.mxu0 %v118
  %140 = vmatprep.subr.bf16.mxu0 %v121
  %141 = vmatpush1.bf16.msra.mxu0 %v120
  %142 = vmatprep.subr.bf16.mxu0 %v123
  %143 = vmatpush1.bf16.msra.mxu0 %v122
  %144 = vmatprep.subr.bf16.mxu0 %v125
  %145 = vmatpush1.bf16.msra.mxu0 %v124
  %146 = vmatprep.subr.bf16.mxu0 0
  %147 = vmatpush1.bf16.msra.mxu0 0
  %148 = vmatprep.subr.bf16.mxu0 0
  %149 = vmatpush1.bf16.msra.mxu0 0
  %150 = vmatprep.subr.bf16.mxu0 0
  %151 = vmatpush1.bf16.msra.mxu0 0
  %152 = vmatprep.subr.bf16.mxu0 0
  %153 = vmatpush1.bf16.msra.mxu0 0
  %154 = vmatprep.subr.bf16.mxu0 0
  %155 = vmatpush1.bf16.msra.mxu0 0
  %156 = vmatprep.subr.bf16.mxu0 0
  %157 = vmatpush1.bf16.msra.mxu0 0
  %158 = vmatprep.subr.bf16.mxu0 0
  %159 = vmatpush1.bf16.msra.mxu0 0
  %160 = vmatprep.subr.bf16.mxu0 0
  %161 = vmatpush1.bf16.msra.mxu0 0
  %162 = vmatprep.subr.bf16.mxu0 0
  %163 = vmatpush1.bf16.msra.mxu0 0
  %164 = vmatprep.subr.bf16.mxu0 0
  %165 = vmatpush1.bf16.msra.mxu0 0
  %166 = vmatprep.subr.bf16.mxu0 0
  %167 = vmatpush1.bf16.msra.mxu0 0
  %168 = vmatprep.subr.bf16.mxu0 0
  %169 = vmatpush1.bf16.msra.mxu0 0
  %170 = vmatprep.mubr.bf16.mxu0 0
  %171 = vmatmul.mubr.bf16.gmra.mrb[0].mxu0 %v136
  %v172 = vpop.f32.mrb[0].mxu0
  %v173 = vadd.f32 %v87, %v172
  %v174 = vpop.f32.mrb[0].mxu0
  %v175 = vadd.f32 %v91, %v174
  %v176 = vpop.f32.mrb[0].mxu0
  %v177 = vadd.f32 %v87, %v176
  %v178 = vpop.f32.mrb[0].mxu0
  %v179 = vadd.f32 %v91, %v178
  %180 = vdwg.mxu0
  %v185 = vcombine.low %v173, %v175
  %v186 = vcombine.high %v173, %v175
  %v188 = vunpack.c.l.s4 1983009808
  %v189 = vunpack.c.0.s8 %v188
  %v190 = vlaneseq
  %v191 = vshrl.u32 %v190, 7
  %v192 = vsub.s32 %v189, %v191
  %v193 = vrot.slane %v185, %v192
  %v195 = vunpack.c.l.s4 1983009808
  %v196 = vunpack.c.0.s8 %v195
  %v197 = vlaneseq
  %v198 = vshrl.u32 %v197, 7
  %v199 = vsub.s32 %v196, %v198
  %v200 = vrot.slane %v186, %v199
  %v201 = vcombine.high %v193, %v193
  %v202 = vcombine.high %v200, %v200
  %v203 = vcombine.low %v177, %v179
  %v204 = vcombine.high %v177, %v179
  %v206 = vunpack.c.l.s4 1983009808
  %v207 = vunpack.c.0.s8 %v206
  %v208 = vlaneseq
  %v209 = vshrl.u32 %v208, 7
  %v210 = vsub.s32 %v207, %v209
  %v211 = vrot.slane %v203, %v210
  %v213 = vunpack.c.l.s4 1983009808
  %v214 = vunpack.c.0.s8 %v213
  %v215 = vlaneseq
  %v216 = vshrl.u32 %v215, 7
  %v217 = vsub.s32 %v214, %v216
  %v218 = vrot.slane %v204, %v217
  %v219 = vcombine.high %v211, %v211
  %v220 = vcombine.high %v218, %v218
  %vm229 = vcmask 1041408
  %vm230 = vcmask 519170
  %vm231 = vmor %vm230, %vm229
  %232 = vst.msk [vmem:[#allocation2] sm:$0xf] %vm231, %v193
  %233 = vst.msk [vmem:[#allocation2 + $0x4] sm:$0xf] %vm231, %v201
  %234 = vst.msk [vmem:[#allocation2 + $0x8] sm:$0xf] %vm231, %v200
  %235 = vst.msk [vmem:[#allocation2 + $0xc] sm:$0xf] %vm231, %v202
  %236 = vst.msk [vmem:[#allocation2 + $0x10] sm:$0xf] %vm231, %v211
  %237 = vst.msk [vmem:[#allocation2 + $0x14] sm:$0xf] %vm231, %v219
  %238 = vst.msk [vmem:[#allocation2 + $0x18] sm:$0xf] %vm231, %v218
  %239 = vst.msk [vmem:[#allocation2 + $0x1c] sm:$0xf] %vm231, %v220
  %v240 = vlaneseq
  %v241 = vand.u32 %v240, 127
  %v242 = vadd.s32 %v241, 128
  %vm243 = vcmp.lt.s32.totalorder %v241, 0
  %v244 = vsub.s32 0, %v241
  %v245 = vsel %vm243, %v244, %v241
  %v246 = vshrl.u32 %v245, 6
  %v247 = vand.u32 %v245, 63
  %v248 = vsub.s32 0, %v247
  %v249 = vsel %vm243, %v248, %v247
  %vm250 = vcmp.lt.s32.totalorder %v242, 0
  %v251 = vsub.s32 0, %v242
  %v252 = vsel %vm250, %v251, %v242
  %v253 = vshrl.u32 %v252, 6
  %v254 = vand.u32 %v252, 63
  %v255 = vsub.s32 0, %v254
  %v256 = vsel %vm250, %v255, %v254
  %vm257 = vcmp.ne.s32.totalorder %v249, 0
  %vm258 = vcmp.ne.s32.totalorder %v256, 0
  %vm259 = vcmp.lt.s32.totalorder %v249, 0
  %vm260 = vcmp.lt.s32.totalorder %v256, 0
  %vm261 = vmand %vm259, %vm257
  %vm262 = vmand %vm260, %vm258
  %v263 = vadd.s32 %v249, 64
  %v264 = vadd.s32 %v256, 64
  %v265 = vsel %vm261, %v263, %v249
  %v266 = vsel %vm262, %v264, %v256
  %vm267 = vcmp.lt.s32.totalorder %v265, 32
  %vm268 = vcmp.lt.s32.totalorder %v266, 32
  %v269 = vld [vmem:[%s3] sm:$0xff]
  %v270 = vld [vmem:[%s3 + $0x8] sm:$0xff]
  %v271 = vld [vmem:[%s3 + $0x10] sm:$0xff]
  %v272 = vld [vmem:[%s3 + $0x18] sm:$0xff]
  %v273 = vld [vmem:[%s3 + $0x20] sm:$0xff]
  %v274 = vld [vmem:[%s3 + $0x28] sm:$0xff]
  %v275 = vld [vmem:[%s3 + $0x30] sm:$0xff]
  %v276 = vld [vmem:[%s3 + $0x38] sm:$0xff]
  %v277 = vld [vmem:[%s4] sm:$0x3]
  %v278 = vld [vmem:[#allocation2] sm:$0xf]
  %s279 = scalar_lea.vmem [#allocation2], 28
  %v280 = vld [vmem:[%s279] sm:$0xf]
  %v281 = vsel %vm267, 1, 0
  %v282 = vsel %vm268, 1, 0
  %vm283 = vcmp.eq.s32.totalorder %v281, 1
  %vm284 = vcmp.eq.s32.totalorder %v282, 1
  %v287 = vunpack.c.l.s4 1983009808
  %v288 = vunpack.c.0.s8 %v287
  %v289 = vlaneseq
  %v290 = vshrl.u32 %v289, 7
  %v291 = vsub.s32 %v288, %v290
  %v292 = vrot.slane %v278, %v291
  %v293 = vcombine.high %v292, %v292
  %v298 = vunpack.c.l.s4 1983009808
  %v299 = vunpack.c.0.s8 %v298
  %v300 = vlaneseq
  %v301 = vshrl.u32 %v300, 7
  %v302 = vsub.s32 %v299, %v301
  %v303 = vrot.slane %v280, %v302
  %v304 = vcombine.high %v303, %v303
  %v307 = vsel %vm283, %v292, %v303
  %v308 = vsel %vm284, %v293, %v304
  %v310 = vlaneseq
  %v311 = vshrl.u32 %v310, 7
  %v312 = vsub.s32 0, %v311
  %v313 = vrot.slane %v277, %v312
  %v314 = vlaneseq
  %v315 = vshrl.u32 %v314, 7
  %v316 = vsub.s32 1, %v315
  %v317 = vrot.slane %v277, %v316
  %v328 = vunpack.c.l.b16 %v269
  %v329 = vunpack.c.h.b16 %v269
  %v330 = vunpack.c.l.b16 %v270
  %v331 = vunpack.c.h.b16 %v270
  %v332 = vunpack.c.l.b16 %v271
  %v333 = vunpack.c.h.b16 %v271
  %v334 = vunpack.c.l.b16 %v272
  %v335 = vunpack.c.h.b16 %v272
  %v336 = vunpack.c.l.b16 %v273
  %v337 = vunpack.c.h.b16 %v273
  %v338 = vunpack.c.l.b16 %v274
  %v339 = vunpack.c.h.b16 %v274
  %v340 = vunpack.c.l.b16 %v275
  %v341 = vunpack.c.h.b16 %v275
  %v342 = vunpack.c.l.b16 %v276
  %v343 = vunpack.c.h.b16 %v276
  %v344 = vpack.c.b16 %v330, %v328
  %v345 = vpack.c.b16 %v331, %v329
  %v346 = vpack.c.b16 %v334, %v332
  %v347 = vpack.c.b16 %v335, %v333
  %v348 = vpack.c.b16 %v338, %v336
  %v349 = vpack.c.b16 %v339, %v337
  %v350 = vpack.c.b16 %v342, %v340
  %v351 = vpack.c.b16 %v343, %v341
  %v361 = vsel %vm134, 0, 0
  %363 = vmatprep.subr.bf16.mxu0 %v345
  %364 = vmatpush1.bf16.msra.mxu0 %v344
  %365 = vmatprep.subr.bf16.mxu0 %v347
  %366 = vmatpush1.bf16.msra.mxu0 %v346
  %367 = vmatprep.subr.bf16.mxu0 %v349
  %368 = vmatpush1.bf16.msra.mxu0 %v348
  %369 = vmatprep.subr.bf16.mxu0 %v351
  %370 = vmatpush1.bf16.msra.mxu0 %v350
  %371 = vmatprep.subr.bf16.mxu0 0
  %372 = vmatpush1.bf16.msra.mxu0 0
  %373 = vmatprep.subr.bf16.mxu0 0
  %374 = vmatpush1.bf16.msra.mxu0 0
  %375 = vmatprep.subr.bf16.mxu0 0
  %376 = vmatpush1.bf16.msra.mxu0 0
  %377 = vmatprep.subr.bf16.mxu0 0
  %378 = vmatpush1.bf16.msra.mxu0 0
  %379 = vmatprep.subr.bf16.mxu0 0
  %380 = vmatpush1.bf16.msra.mxu0 0
  %381 = vmatprep.subr.bf16.mxu0 0
  %382 = vmatpush1.bf16.msra.mxu0 0
  %383 = vmatprep.subr.bf16.mxu0 0
  %384 = vmatpush1.bf16.msra.mxu0 0
  %385 = vmatprep.subr.bf16.mxu0 0
  %386 = vmatpush1.bf16.msra.mxu0 0
  %387 = vmatprep.subr.bf16.mxu0 0
  %388 = vmatpush1.bf16.msra.mxu0 0
  %389 = vmatprep.subr.bf16.mxu0 0
  %390 = vmatpush1.bf16.msra.mxu0 0
  %391 = vmatprep.subr.bf16.mxu0 0
  %392 = vmatpush1.bf16.msra.mxu0 0
  %393 = vmatprep.subr.bf16.mxu0 0
  %394 = vmatpush1.bf16.msra.mxu0 0
  %395 = vmatprep.mubr.bf16.mxu0 0
  %396 = vmatmul.mubr.bf16.gmra.mrb[0].mxu0 %v361
  %v397 = vpop.f32.mrb[0].mxu0
  %v398 = vadd.f32 %v313, %v397
  %v399 = vpop.f32.mrb[0].mxu0
  %v400 = vadd.f32 %v317, %v399
  %v401 = vpop.f32.mrb[0].mxu0
  %v402 = vpop.f32.mrb[0].mxu0
  %403 = vdwg.mxu0
  %v404 = vadd.f32 %v307, %v398
  %v405 = vsub.f32 0.0, %v404
  %v406 = vmul.f32 %v405, 1.442695
  %v407 = vpow.pop %v406
  %v408 = vadd.f32 %v407, 1.0
  %v409 = vrcp.pop %v408
  %v410 = vmul.f32 1.0, %v409
  %v411 = vmul.f32 %v410, %v400
  %v412 = vadd.f32 %v308, %v411
  %v413 = vtanh.pop %v412
  %v414 = vsub.f32 1.0, %v410
  %416 = vrot.lane.b32.xlu0 %v413, 64
  %v417 = vpop.permute.xlu0 %416
  %v419 = vmul.f32 %v414, %v417
  %v420 = vmul.f32 %v410, 0.0
  %v421 = vadd.f32 %v419, %v420
  %423 = vrot.lane.b32.xlu0 %v421, 64
  %v424 = vpop.permute.xlu0 %423
  %vm426 = vcmask 254976
  %427 = vst.msk [vmem:[#allocation3] sm:$0x3] %vm426, %v424
  %428 = vrot.lane.b32.xlu0 %v421, 32
  %v429 = vpop.permute.xlu0 %428
  %s431 = scalar_lea.vmem [#allocation4], 14
  %432 = vst.msk [vmem:[%s431] sm:$0x3] %vm426, %v429
  %s433 = scalar_lea.vmem [#allocation2], 4
  %v434 = vld [vmem:[%s433] sm:$0xf]
  %s435 = scalar_lea.vmem [#allocation2], 24
  %v436 = vld [vmem:[%s435] sm:$0xf]
  %v439 = vunpack.c.l.s4 1983009808
  %v440 = vunpack.c.0.s8 %v439
  %v441 = vlaneseq
  %v442 = vshrl.u32 %v441, 7
  %v443 = vsub.s32 %v440, %v442
  %v444 = vrot.slane %v434, %v443
  %v445 = vcombine.high %v444, %v444
  %v450 = vunpack.c.l.s4 1983009808
  %v451 = vunpack.c.0.s8 %v450
  %v452 = vlaneseq
  %v453 = vshrl.u32 %v452, 7
  %v454 = vsub.s32 %v451, %v453
  %v455 = vrot.slane %v436, %v454
  %v456 = vcombine.high %v455, %v455
  %v459 = vsel %vm283, %v444, %v455
  %v460 = vsel %vm284, %v445, %v456
  %v461 = vpack.c.bf16 %v421, %v421
  %463 = vrot.lane.b32.xlu0 %v461, 64
  %v464 = vpop.permute.xlu0 %463
  %v466 = vsel %vm134, %v464, 0
  %468 = vmatprep.subr.bf16.mxu0 %v345
  %469 = vmatpush1.bf16.msra.mxu0 %v344
  %470 = vmatprep.subr.bf16.mxu0 %v347
  %471 = vmatpush1.bf16.msra.mxu0 %v346
  %472 = vmatprep.subr.bf16.mxu0 %v349
  %473 = vmatpush1.bf16.msra.mxu0 %v348
  %474 = vmatprep.subr.bf16.mxu0 %v351
  %475 = vmatpush1.bf16.msra.mxu0 %v350
  %476 = vmatprep.subr.bf16.mxu0 0
  %477 = vmatpush1.bf16.msra.mxu0 0
  %478 = vmatprep.subr.bf16.mxu0 0
  %479 = vmatpush1.bf16.msra.mxu0 0
  %480 = vmatprep.subr.bf16.mxu0 0
  %481 = vmatpush1.bf16.msra.mxu0 0
  %482 = vmatprep.subr.bf16.mxu0 0
  %483 = vmatpush1.bf16.msra.mxu0 0
  %484 = vmatprep.subr.bf16.mxu0 0
  %485 = vmatpush1.bf16.msra.mxu0 0
  %486 = vmatprep.subr.bf16.mxu0 0
  %487 = vmatpush1.bf16.msra.mxu0 0
  %488 = vmatprep.subr.bf16.mxu0 0
  %489 = vmatpush1.bf16.msra.mxu0 0
  %490 = vmatprep.subr.bf16.mxu0 0
  %491 = vmatpush1.bf16.msra.mxu0 0
  %492 = vmatprep.subr.bf16.mxu0 0
  %493 = vmatpush1.bf16.msra.mxu0 0
  %494 = vmatprep.subr.bf16.mxu0 0
  %495 = vmatpush1.bf16.msra.mxu0 0
  %496 = vmatprep.subr.bf16.mxu0 0
  %497 = vmatpush1.bf16.msra.mxu0 0
  %498 = vmatprep.subr.bf16.mxu0 0
  %499 = vmatpush1.bf16.msra.mxu0 0
  %500 = vmatprep.mubr.bf16.mxu0 0
  %501 = vmatmul.mubr.bf16.gmra.mrb[0].mxu0 %v466
  %v502 = vpop.f32.mrb[0].mxu0
  %v503 = vadd.f32 %v313, %v502
  %v504 = vpop.f32.mrb[0].mxu0
  %v505 = vadd.f32 %v317, %v504
  %v506 = vpop.f32.mrb[0].mxu0
  %v507 = vpop.f32.mrb[0].mxu0
  %508 = vdwg.mxu0
  %v509 = vadd.f32 %v459, %v503
  %v510 = vsub.f32 0.0, %v509
  %v511 = vmul.f32 %v510, 1.442695
  %v512 = vpow.pop %v511
  %v513 = vadd.f32 %v512, 1.0
  %v514 = vrcp.pop %v513
  %v515 = vmul.f32 1.0, %v514
  %v516 = vmul.f32 %v515, %v505
  %v517 = vadd.f32 %v460, %v516
  %v518 = vtanh.pop %v517
  %v519 = vsub.f32 1.0, %v515
  %521 = vrot.lane.b32.xlu0 %v518, 64
  %v522 = vpop.permute.xlu0 %521
  %v524 = vmul.f32 %v519, %v522
  %v525 = vmul.f32 %v515, %v421
  %v526 = vadd.f32 %v524, %v525
  %528 = vrot.lane.b32.xlu0 %v526, 64
  %v529 = vpop.permute.xlu0 %528
  %s531 = scalar_lea.vmem [#allocation3], 2
  %532 = vst.msk [vmem:[%s531] sm:$0x3] %vm426, %v529
  %533 = vrot.lane.b32.xlu0 %v526, 32
  %v534 = vpop.permute.xlu0 %533
  %s536 = scalar_lea.vmem [#allocation4], 12
  %537 = vst.msk [vmem:[%s536] sm:$0x3] %vm426, %v534
  %s538 = scalar_lea.vmem [#allocation2], 8
  %v539 = vld [vmem:[%s538] sm:$0xf]
  %s540 = scalar_lea.vmem [#allocation2], 20
  %v541 = vld [vmem:[%s540] sm:$0xf]
  %v544 = vunpack.c.l.s4 1983009808
  %v545 = vunpack.c.0.s8 %v544
  %v546 = vlaneseq
  %v547 = vshrl.u32 %v546, 7
  %v548 = vsub.s32 %v545, %v547
  %v549 = vrot.slane %v539, %v548
  %v550 = vcombine.high %v549, %v549
  %v555 = vunpack.c.l.s4 1983009808
  %v556 = vunpack.c.0.s8 %v555
  %v557 = vlaneseq
  %v558 = vshrl.u32 %v557, 7
  %v559 = vsub.s32 %v556, %v558
  %v560 = vrot.slane %v541, %v559
  %v561 = vcombine.high %v560, %v560
  %v564 = vsel %vm283, %v549, %v560
  %v565 = vsel %vm284, %v550, %v561
  %v566 = vpack.c.bf16 %v526, %v526
  %568 = vrot.lane.b32.xlu0 %v566, 64
  %v569 = vpop.permute.xlu0 %568
  %v571 = vsel %vm134, %v569, 0
  %573 = vmatprep.subr.bf16.mxu0 %v345
  %574 = vmatpush1.bf16.msra.mxu0 %v344
  %575 = vmatprep.subr.bf16.mxu0 %v347
  %576 = vmatpush1.bf16.msra.mxu0 %v346
  %577 = vmatprep.subr.bf16.mxu0 %v349
  %578 = vmatpush1.bf16.msra.mxu0 %v348
  %579 = vmatprep.subr.bf16.mxu0 %v351
  %580 = vmatpush1.bf16.msra.mxu0 %v350
  %581 = vmatprep.subr.bf16.mxu0 0
  %582 = vmatpush1.bf16.msra.mxu0 0
  %583 = vmatprep.subr.bf16.mxu0 0
  %584 = vmatpush1.bf16.msra.mxu0 0
  %585 = vmatprep.subr.bf16.mxu0 0
  %586 = vmatpush1.bf16.msra.mxu0 0
  %587 = vmatprep.subr.bf16.mxu0 0
  %588 = vmatpush1.bf16.msra.mxu0 0
  %589 = vmatprep.subr.bf16.mxu0 0
  %590 = vmatpush1.bf16.msra.mxu0 0
  %591 = vmatprep.subr.bf16.mxu0 0
  %592 = vmatpush1.bf16.msra.mxu0 0
  %593 = vmatprep.subr.bf16.mxu0 0
  %594 = vmatpush1.bf16.msra.mxu0 0
  %595 = vmatprep.subr.bf16.mxu0 0
  %596 = vmatpush1.bf16.msra.mxu0 0
  %597 = vmatprep.subr.bf16.mxu0 0
  %598 = vmatpush1.bf16.msra.mxu0 0
  %599 = vmatprep.subr.bf16.mxu0 0
  %600 = vmatpush1.bf16.msra.mxu0 0
  %601 = vmatprep.subr.bf16.mxu0 0
  %602 = vmatpush1.bf16.msra.mxu0 0
  %603 = vmatprep.subr.bf16.mxu0 0
  %604 = vmatpush1.bf16.msra.mxu0 0
  %605 = vmatprep.mubr.bf16.mxu0 0
  %606 = vmatmul.mubr.bf16.gmra.mrb[0].mxu0 %v571
  %v607 = vpop.f32.mrb[0].mxu0
  %v608 = vadd.f32 %v313, %v607
  %v609 = vpop.f32.mrb[0].mxu0
  %v610 = vadd.f32 %v317, %v609
  %v611 = vpop.f32.mrb[0].mxu0
  %v612 = vpop.f32.mrb[0].mxu0
  %613 = vdwg.mxu0
  %v614 = vadd.f32 %v564, %v608
  %v615 = vsub.f32 0.0, %v614
  %v616 = vmul.f32 %v615, 1.442695
  %v617 = vpow.pop %v616
  %v618 = vadd.f32 %v617, 1.0
  %v619 = vrcp.pop %v618
  %v620 = vmul.f32 1.0, %v619
  %v621 = vmul.f32 %v620, %v610
  %v622 = vadd.f32 %v565, %v621
  %v623 = vtanh.pop %v622
  %v624 = vsub.f32 1.0, %v620
  %626 = vrot.lane.b32.xlu0 %v623, 64
  %v627 = vpop.permute.xlu0 %626
  %v629 = vmul.f32 %v624, %v627
  %v630 = vmul.f32 %v620, %v526
  %v631 = vadd.f32 %v629, %v630
  %633 = vrot.lane.b32.xlu0 %v631, 64
  %v634 = vpop.permute.xlu0 %633
  %s636 = scalar_lea.vmem [#allocation3], 4
  %637 = vst.msk [vmem:[%s636] sm:$0x3] %vm426, %v634
  %638 = vrot.lane.b32.xlu0 %v631, 32
  %v639 = vpop.permute.xlu0 %638
  %s641 = scalar_lea.vmem [#allocation4], 10
  %642 = vst.msk [vmem:[%s641] sm:$0x3] %vm426, %v639
  %s643 = scalar_lea.vmem [#allocation2], 12
  %v644 = vld [vmem:[%s643] sm:$0xf]
  %s645 = scalar_lea.vmem [#allocation2], 16
  %v646 = vld [vmem:[%s645] sm:$0xf]
  %v649 = vunpack.c.l.s4 1983009808
  %v650 = vunpack.c.0.s8 %v649
  %v651 = vlaneseq
  %v652 = vshrl.u32 %v651, 7
  %v653 = vsub.s32 %v650, %v652
  %v654 = vrot.slane %v644, %v653
  %v655 = vcombine.high %v654, %v654
  %v660 = vunpack.c.l.s4 1983009808
  %v661 = vunpack.c.0.s8 %v660
  %v662 = vlaneseq
  %v663 = vshrl.u32 %v662, 7
  %v664 = vsub.s32 %v661, %v663
  %v665 = vrot.slane %v646, %v664
  %v666 = vcombine.high %v665, %v665
  %v669 = vsel %vm283, %v654, %v665
  %v670 = vsel %vm284, %v655, %v666
  %v671 = vpack.c.bf16 %v631, %v631
  %673 = vrot.lane.b32.xlu0 %v671, 64
  %v674 = vpop.permute.xlu0 %673
  %v676 = vsel %vm134, %v674, 0
  %678 = vmatprep.subr.bf16.mxu0 %v345
  %679 = vmatpush1.bf16.msra.mxu0 %v344
  %680 = vmatprep.subr.bf16.mxu0 %v347
  %681 = vmatpush1.bf16.msra.mxu0 %v346
  %682 = vmatprep.subr.bf16.mxu0 %v349
  %683 = vmatpush1.bf16.msra.mxu0 %v348
  %684 = vmatprep.subr.bf16.mxu0 %v351
  %685 = vmatpush1.bf16.msra.mxu0 %v350
  %686 = vmatprep.subr.bf16.mxu0 0
  %687 = vmatpush1.bf16.msra.mxu0 0
  %688 = vmatprep.subr.bf16.mxu0 0
  %689 = vmatpush1.bf16.msra.mxu0 0
  %690 = vmatprep.subr.bf16.mxu0 0
  %691 = vmatpush1.bf16.msra.mxu0 0
  %692 = vmatprep.subr.bf16.mxu0 0
  %693 = vmatpush1.bf16.msra.mxu0 0
  %694 = vmatprep.subr.bf16.mxu0 0
  %695 = vmatpush1.bf16.msra.mxu0 0
  %696 = vmatprep.subr.bf16.mxu0 0
  %697 = vmatpush1.bf16.msra.mxu0 0
  %698 = vmatprep.subr.bf16.mxu0 0
  %699 = vmatpush1.bf16.msra.mxu0 0
  %700 = vmatprep.subr.bf16.mxu0 0
  %701 = vmatpush1.bf16.msra.mxu0 0
  %702 = vmatprep.subr.bf16.mxu0 0
  %703 = vmatpush1.bf16.msra.mxu0 0
  %704 = vmatprep.subr.bf16.mxu0 0
  %705 = vmatpush1.bf16.msra.mxu0 0
  %706 = vmatprep.subr.bf16.mxu0 0
  %707 = vmatpush1.bf16.msra.mxu0 0
  %708 = vmatprep.subr.bf16.mxu0 0
  %709 = vmatpush1.bf16.msra.mxu0 0
  %710 = vmatprep.mubr.bf16.mxu0 0
  %711 = vmatmul.mubr.bf16.gmra.mrb[0].mxu0 %v676
  %v712 = vpop.f32.mrb[0].mxu0
  %v713 = vadd.f32 %v313, %v712
  %v714 = vpop.f32.mrb[0].mxu0
  %v715 = vadd.f32 %v317, %v714
  %v716 = vpop.f32.mrb[0].mxu0
  %v717 = vpop.f32.mrb[0].mxu0
  %718 = vdwg.mxu0
  %v719 = vadd.f32 %v669, %v713
  %v720 = vsub.f32 0.0, %v719
  %v721 = vmul.f32 %v720, 1.442695
  %v722 = vpow.pop %v721
  %v723 = vadd.f32 %v722, 1.0
  %v724 = vrcp.pop %v723
  %v725 = vmul.f32 1.0, %v724
  %v726 = vmul.f32 %v725, %v715
  %v727 = vadd.f32 %v670, %v726
  %v728 = vtanh.pop %v727
  %v729 = vsub.f32 1.0, %v725
  %731 = vrot.lane.b32.xlu0 %v728, 64
  %v732 = vpop.permute.xlu0 %731
  %v734 = vmul.f32 %v729, %v732
  %v735 = vmul.f32 %v725, %v631
  %v736 = vadd.f32 %v734, %v735
  %738 = vrot.lane.b32.xlu0 %v736, 64
  %v739 = vpop.permute.xlu0 %738
  %s741 = scalar_lea.vmem [#allocation3], 6
  %742 = vst.msk [vmem:[%s741] sm:$0x3] %vm426, %v739
  %743 = vrot.lane.b32.xlu0 %v736, 32
  %v744 = vpop.permute.xlu0 %743
  %s746 = scalar_lea.vmem [#allocation4], 8
  %747 = vst.msk [vmem:[%s746] sm:$0x3] %vm426, %v744
  %v748 = vld [vmem:[%s645] sm:$0xf]
  %v749 = vld [vmem:[%s643] sm:$0xf]
  %v752 = vunpack.c.l.s4 1983009808
  %v753 = vunpack.c.0.s8 %v752
  %v754 = vlaneseq
  %v755 = vshrl.u32 %v754, 7
  %v756 = vsub.s32 %v753, %v755
  %v757 = vrot.slane %v748, %v756
  %v758 = vcombine.high %v757, %v757
  %v763 = vunpack.c.l.s4 1983009808
  %v764 = vunpack.c.0.s8 %v763
  %v765 = vlaneseq
  %v766 = vshrl.u32 %v765, 7
  %v767 = vsub.s32 %v764, %v766
  %v768 = vrot.slane %v749, %v767
  %v769 = vcombine.high %v768, %v768
  %v772 = vsel %vm283, %v757, %v768
  %v773 = vsel %vm284, %v758, %v769
  %v774 = vpack.c.bf16 %v736, %v736
  %776 = vrot.lane.b32.xlu0 %v774, 64
  %v777 = vpop.permute.xlu0 %776
  %v779 = vsel %vm134, %v777, 0
  %781 = vmatprep.subr.bf16.mxu0 %v345
  %782 = vmatpush1.bf16.msra.mxu0 %v344
  %783 = vmatprep.subr.bf16.mxu0 %v347
  %784 = vmatpush1.bf16.msra.mxu0 %v346
  %785 = vmatprep.subr.bf16.mxu0 %v349
  %786 = vmatpush1.bf16.msra.mxu0 %v348
  %787 = vmatprep.subr.bf16.mxu0 %v351
  %788 = vmatpush1.bf16.msra.mxu0 %v350
  %789 = vmatprep.subr.bf16.mxu0 0
  %790 = vmatpush1.bf16.msra.mxu0 0
  %791 = vmatprep.subr.bf16.mxu0 0
  %792 = vmatpush1.bf16.msra.mxu0 0
  %793 = vmatprep.subr.bf16.mxu0 0
  %794 = vmatpush1.bf16.msra.mxu0 0
  %795 = vmatprep.subr.bf16.mxu0 0
  %796 = vmatpush1.bf16.msra.mxu0 0
  %797 = vmatprep.subr.bf16.mxu0 0
  %798 = vmatpush1.bf16.msra.mxu0 0
  %799 = vmatprep.subr.bf16.mxu0 0
  %800 = vmatpush1.bf16.msra.mxu0 0
  %801 = vmatprep.subr.bf16.mxu0 0
  %802 = vmatpush1.bf16.msra.mxu0 0
  %803 = vmatprep.subr.bf16.mxu0 0
  %804 = vmatpush1.bf16.msra.mxu0 0
  %805 = vmatprep.subr.bf16.mxu0 0
  %806 = vmatpush1.bf16.msra.mxu0 0
  %807 = vmatprep.subr.bf16.mxu0 0
  %808 = vmatpush1.bf16.msra.mxu0 0
  %809 = vmatprep.subr.bf16.mxu0 0
  %810 = vmatpush1.bf16.msra.mxu0 0
  %811 = vmatprep.subr.bf16.mxu0 0
  %812 = vmatpush1.bf16.msra.mxu0 0
  %813 = vmatprep.mubr.bf16.mxu0 0
  %814 = vmatmul.mubr.bf16.gmra.mrb[0].mxu0 %v779
  %v815 = vpop.f32.mrb[0].mxu0
  %v816 = vadd.f32 %v313, %v815
  %v817 = vpop.f32.mrb[0].mxu0
  %v818 = vadd.f32 %v317, %v817
  %v819 = vpop.f32.mrb[0].mxu0
  %v820 = vpop.f32.mrb[0].mxu0
  %821 = vdwg.mxu0
  %v822 = vadd.f32 %v772, %v816
  %v823 = vsub.f32 0.0, %v822
  %v824 = vmul.f32 %v823, 1.442695
  %v825 = vpow.pop %v824
  %v826 = vadd.f32 %v825, 1.0
  %v827 = vrcp.pop %v826
  %v828 = vmul.f32 1.0, %v827
  %v829 = vmul.f32 %v828, %v818
  %v830 = vadd.f32 %v773, %v829
  %v831 = vtanh.pop %v830
  %v832 = vsub.f32 1.0, %v828
  %834 = vrot.lane.b32.xlu0 %v831, 64
  %v835 = vpop.permute.xlu0 %834
  %v837 = vmul.f32 %v832, %v835
  %v838 = vmul.f32 %v828, %v736
  %v839 = vadd.f32 %v837, %v838
  %841 = vrot.lane.b32.xlu0 %v839, 64
  %v842 = vpop.permute.xlu0 %841
  %s844 = scalar_lea.vmem [#allocation3], 8
  %845 = vst.msk [vmem:[%s844] sm:$0x3] %vm426, %v842
  %846 = vrot.lane.b32.xlu0 %v839, 32
  %v847 = vpop.permute.xlu0 %846
  %s849 = scalar_lea.vmem [#allocation4], 6
  %850 = vst.msk [vmem:[%s849] sm:$0x3] %vm426, %v847
  %v851 = vld [vmem:[%s540] sm:$0xf]
  %v852 = vld [vmem:[%s538] sm:$0xf]
  %v855 = vunpack.c.l.s4 1983009808
  %v856 = vunpack.c.0.s8 %v855
  %v857 = vlaneseq
  %v858 = vshrl.u32 %v857, 7
  %v859 = vsub.s32 %v856, %v858
  %v860 = vrot.slane %v851, %v859
  %v861 = vcombine.high %v860, %v860
  %v866 = vunpack.c.l.s4 1983009808
  %v867 = vunpack.c.0.s8 %v866
  %v868 = vlaneseq
  %v869 = vshrl.u32 %v868, 7
  %v870 = vsub.s32 %v867, %v869
  %v871 = vrot.slane %v852, %v870
  %v872 = vcombine.high %v871, %v871
  %v875 = vsel %vm283, %v860, %v871
  %v876 = vsel %vm284, %v861, %v872
  %v877 = vpack.c.bf16 %v839, %v839
  %879 = vrot.lane.b32.xlu0 %v877, 64
  %v880 = vpop.permute.xlu0 %879
  %v882 = vsel %vm134, %v880, 0
  %884 = vmatprep.subr.bf16.mxu0 %v345
  %885 = vmatpush1.bf16.msra.mxu0 %v344
  %886 = vmatprep.subr.bf16.mxu0 %v347
  %887 = vmatpush1.bf16.msra.mxu0 %v346
  %888 = vmatprep.subr.bf16.mxu0 %v349
  %889 = vmatpush1.bf16.msra.mxu0 %v348
  %890 = vmatprep.subr.bf16.mxu0 %v351
  %891 = vmatpush1.bf16.msra.mxu0 %v350
  %892 = vmatprep.subr.bf16.mxu0 0
  %893 = vmatpush1.bf16.msra.mxu0 0
  %894 = vmatprep.subr.bf16.mxu0 0
  %895 = vmatpush1.bf16.msra.mxu0 0
  %896 = vmatprep.subr.bf16.mxu0 0
  %897 = vmatpush1.bf16.msra.mxu0 0
  %898 = vmatprep.subr.bf16.mxu0 0
  %899 = vmatpush1.bf16.msra.mxu0 0
  %900 = vmatprep.subr.bf16.mxu0 0
  %901 = vmatpush1.bf16.msra.mxu0 0
  %902 = vmatprep.subr.bf16.mxu0 0
  %903 = vmatpush1.bf16.msra.mxu0 0
  %904 = vmatprep.subr.bf16.mxu0 0
  %905 = vmatpush1.bf16.msra.mxu0 0
  %906 = vmatprep.subr.bf16.mxu0 0
  %907 = vmatpush1.bf16.msra.mxu0 0
  %908 = vmatprep.subr.bf16.mxu0 0
  %909 = vmatpush1.bf16.msra.mxu0 0
  %910 = vmatprep.subr.bf16.mxu0 0
  %911 = vmatpush1.bf16.msra.mxu0 0
  %912 = vmatprep.subr.bf16.mxu0 0
  %913 = vmatpush1.bf16.msra.mxu0 0
  %914 = vmatprep.subr.bf16.mxu0 0
  %915 = vmatpush1.bf16.msra.mxu0 0
  %916 = vmatprep.mubr.bf16.mxu0 0
  %917 = vmatmul.mubr.bf16.gmra.mrb[0].mxu0 %v882
  %v918 = vpop.f32.mrb[0].mxu0
  %v919 = vadd.f32 %v313, %v918
  %v920 = vpop.f32.mrb[0].mxu0
  %v921 = vadd.f32 %v317, %v920
  %v922 = vpop.f32.mrb[0].mxu0
  %v923 = vpop.f32.mrb[0].mxu0
  %924 = vdwg.mxu0
  %v925 = vadd.f32 %v875, %v919
  %v926 = vsub.f32 0.0, %v925
  %v927 = vmul.f32 %v926, 1.442695
  %v928 = vpow.pop %v927
  %v929 = vadd.f32 %v928, 1.0
  %v930 = vrcp.pop %v929
  %v931 = vmul.f32 1.0, %v930
  %v932 = vmul.f32 %v931, %v921
  %v933 = vadd.f32 %v876, %v932
  %v934 = vtanh.pop %v933
  %v935 = vsub.f32 1.0, %v931
  %937 = vrot.lane.b32.xlu0 %v934, 64
  %v938 = vpop.permute.xlu0 %937
  %v940 = vmul.f32 %v935, %v938
  %v941 = vmul.f32 %v931, %v839
  %v942 = vadd.f32 %v940, %v941
  %944 = vrot.lane.b32.xlu0 %v942, 64
  %v945 = vpop.permute.xlu0 %944
  %s947 = scalar_lea.vmem [#allocation3], 10
  %948 = vst.msk [vmem:[%s947] sm:$0x3] %vm426, %v945
  %949 = vrot.lane.b32.xlu0 %v942, 32
  %v950 = vpop.permute.xlu0 %949
  %s952 = scalar_lea.vmem [#allocation4], 4
  %953 = vst.msk [vmem:[%s952] sm:$0x3] %vm426, %v950
  %v954 = vld [vmem:[%s435] sm:$0xf]
  %v955 = vld [vmem:[%s433] sm:$0xf]
  %v958 = vunpack.c.l.s4 1983009808
  %v959 = vunpack.c.0.s8 %v958
  %v960 = vlaneseq
  %v961 = vshrl.u32 %v960, 7
  %v962 = vsub.s32 %v959, %v961
  %v963 = vrot.slane %v954, %v962
  %v964 = vcombine.high %v963, %v963
  %v969 = vunpack.c.l.s4 1983009808
  %v970 = vunpack.c.0.s8 %v969
  %v971 = vlaneseq
  %v972 = vshrl.u32 %v971, 7
  %v973 = vsub.s32 %v970, %v972
  %v974 = vrot.slane %v955, %v973
  %v975 = vcombine.high %v974, %v974
  %v978 = vsel %vm283, %v963, %v974
  %v979 = vsel %vm284, %v964, %v975
  %v980 = vpack.c.bf16 %v942, %v942
  %982 = vrot.lane.b32.xlu0 %v980, 64
  %v983 = vpop.permute.xlu0 %982
  %v985 = vsel %vm134, %v983, 0
  %987 = vmatprep.subr.bf16.mxu0 %v345
  %988 = vmatpush1.bf16.msra.mxu0 %v344
  %989 = vmatprep.subr.bf16.mxu0 %v347
  %990 = vmatpush1.bf16.msra.mxu0 %v346
  %991 = vmatprep.subr.bf16.mxu0 %v349
  %992 = vmatpush1.bf16.msra.mxu0 %v348
  %993 = vmatprep.subr.bf16.mxu0 %v351
  %994 = vmatpush1.bf16.msra.mxu0 %v350
  %995 = vmatprep.subr.bf16.mxu0 0
  %996 = vmatpush1.bf16.msra.mxu0 0
  %997 = vmatprep.subr.bf16.mxu0 0
  %998 = vmatpush1.bf16.msra.mxu0 0
  %999 = vmatprep.subr.bf16.mxu0 0
  %1000 = vmatpush1.bf16.msra.mxu0 0
  %1001 = vmatprep.subr.bf16.mxu0 0
  %1002 = vmatpush1.bf16.msra.mxu0 0
  %1003 = vmatprep.subr.bf16.mxu0 0
  %1004 = vmatpush1.bf16.msra.mxu0 0
  %1005 = vmatprep.subr.bf16.mxu0 0
  %1006 = vmatpush1.bf16.msra.mxu0 0
  %1007 = vmatprep.subr.bf16.mxu0 0
  %1008 = vmatpush1.bf16.msra.mxu0 0
  %1009 = vmatprep.subr.bf16.mxu0 0
  %1010 = vmatpush1.bf16.msra.mxu0 0
  %1011 = vmatprep.subr.bf16.mxu0 0
  %1012 = vmatpush1.bf16.msra.mxu0 0
  %1013 = vmatprep.subr.bf16.mxu0 0
  %1014 = vmatpush1.bf16.msra.mxu0 0
  %1015 = vmatprep.subr.bf16.mxu0 0
  %1016 = vmatpush1.bf16.msra.mxu0 0
  %1017 = vmatprep.subr.bf16.mxu0 0
  %1018 = vmatpush1.bf16.msra.mxu0 0
  %1019 = vmatprep.mubr.bf16.mxu0 0
  %1020 = vmatmul.mubr.bf16.gmra.mrb[0].mxu0 %v985
  %v1021 = vpop.f32.mrb[0].mxu0
  %v1022 = vadd.f32 %v313, %v1021
  %v1023 = vpop.f32.mrb[0].mxu0
  %v1024 = vadd.f32 %v317, %v1023
  %v1025 = vpop.f32.mrb[0].mxu0
  %v1026 = vpop.f32.mrb[0].mxu0
  %1027 = vdwg.mxu0
  %v1028 = vadd.f32 %v978, %v1022
  %v1029 = vsub.f32 0.0, %v1028
  %v1030 = vmul.f32 %v1029, 1.442695
  %v1031 = vpow.pop %v1030
  %v1032 = vadd.f32 %v1031, 1.0
  %v1033 = vrcp.pop %v1032
  %v1034 = vmul.f32 1.0, %v1033
  %v1035 = vmul.f32 %v1034, %v1024
  %v1036 = vadd.f32 %v979, %v1035
  %v1037 = vtanh.pop %v1036
  %v1038 = vsub.f32 1.0, %v1034
  %1040 = vrot.lane.b32.xlu0 %v1037, 64
  %v1041 = vpop.permute.xlu0 %1040
  %v1043 = vmul.f32 %v1038, %v1041
  %v1044 = vmul.f32 %v1034, %v942
  %v1045 = vadd.f32 %v1043, %v1044
  %1047 = vrot.lane.b32.xlu0 %v1045, 64
  %v1048 = vpop.permute.xlu0 %1047
  %s1050 = scalar_lea.vmem [#allocation3], 12
  %1051 = vst.msk [vmem:[%s1050] sm:$0x3] %vm426, %v1048
  %1052 = vrot.lane.b32.xlu0 %v1045, 32
  %v1053 = vpop.permute.xlu0 %1052
  %s1055 = scalar_lea.vmem [#allocation4], 2
  %1056 = vst.msk [vmem:[%s1055] sm:$0x3] %vm426, %v1053
  %v1057 = vld [vmem:[%s279] sm:$0xf]
  %v1058 = vld [vmem:[#allocation2] sm:$0xf]
  %v1061 = vunpack.c.l.s4 1983009808
  %v1062 = vunpack.c.0.s8 %v1061
  %v1063 = vlaneseq
  %v1064 = vshrl.u32 %v1063, 7
  %v1065 = vsub.s32 %v1062, %v1064
  %v1066 = vrot.slane %v1057, %v1065
  %v1067 = vcombine.high %v1066, %v1066
  %v1072 = vunpack.c.l.s4 1983009808
  %v1073 = vunpack.c.0.s8 %v1072
  %v1074 = vlaneseq
  %v1075 = vshrl.u32 %v1074, 7
  %v1076 = vsub.s32 %v1073, %v1075
  %v1077 = vrot.slane %v1058, %v1076
  %v1078 = vcombine.high %v1077, %v1077
  %v1081 = vsel %vm283, %v1066, %v1077
  %v1082 = vsel %vm284, %v1067, %v1078
  %v1083 = vpack.c.bf16 %v1045, %v1045
  %1085 = vrot.lane.b32.xlu0 %v1083, 64
  %v1086 = vpop.permute.xlu0 %1085
  %v1088 = vsel %vm134, %v1086, 0
  %1090 = vmatprep.subr.bf16.mxu0 %v345
  %1091 = vmatpush1.bf16.msra.mxu0 %v344
  %1092 = vmatprep.subr.bf16.mxu0 %v347
  %1093 = vmatpush1.bf16.msra.mxu0 %v346
  %1094 = vmatprep.subr.bf16.mxu0 %v349
  %1095 = vmatpush1.bf16.msra.mxu0 %v348
  %1096 = vmatprep.subr.bf16.mxu0 %v351
  %1097 = vmatpush1.bf16.msra.mxu0 %v350
  %1098 = vmatprep.subr.bf16.mxu0 0
  %1099 = vmatpush1.bf16.msra.mxu0 0
  %1100 = vmatprep.subr.bf16.mxu0 0
  %1101 = vmatpush1.bf16.msra.mxu0 0
  %1102 = vmatprep.subr.bf16.mxu0 0
  %1103 = vmatpush1.bf16.msra.mxu0 0
  %1104 = vmatprep.subr.bf16.mxu0 0
  %1105 = vmatpush1.bf16.msra.mxu0 0
  %1106 = vmatprep.subr.bf16.mxu0 0
  %1107 = vmatpush1.bf16.msra.mxu0 0
  %1108 = vmatprep.subr.bf16.mxu0 0
  %1109 = vmatpush1.bf16.msra.mxu0 0
  %1110 = vmatprep.subr.bf16.mxu0 0
  %1111 = vmatpush1.bf16.msra.mxu0 0
  %1112 = vmatprep.subr.bf16.mxu0 0
  %1113 = vmatpush1.bf16.msra.mxu0 0
  %1114 = vmatprep.subr.bf16.mxu0 0
  %1115 = vmatpush1.bf16.msra.mxu0 0
  %1116 = vmatprep.subr.bf16.mxu0 0
  %1117 = vmatpush1.bf16.msra.mxu0 0
  %1118 = vmatprep.subr.bf16.mxu0 0
  %1119 = vmatpush1.bf16.msra.mxu0 0
  %1120 = vmatprep.subr.bf16.mxu0 0
  %1121 = vmatpush1.bf16.msra.mxu0 0
  %1122 = vmatprep.mubr.bf16.mxu0 0
  %1123 = vmatmul.mubr.bf16.gmra.mrb[0].mxu0 %v1088
  %v1124 = vpop.f32.mrb[0].mxu0
  %v1125 = vadd.f32 %v313, %v1124
  %v1126 = vpop.f32.mrb[0].mxu0
  %v1127 = vadd.f32 %v317, %v1126
  %v1128 = vpop.f32.mrb[0].mxu0
  %v1129 = vpop.f32.mrb[0].mxu0
  %1130 = vdwg.mxu0
  %v1131 = vadd.f32 %v1081, %v1125
  %v1132 = vsub.f32 0.0, %v1131
  %v1133 = vmul.f32 %v1132, 1.442695
  %v1134 = vpow.pop %v1133
  %v1135 = vadd.f32 %v1134, 1.0
  %v1136 = vrcp.pop %v1135
  %v1137 = vmul.f32 1.0, %v1136
  %v1138 = vmul.f32 %v1137, %v1127
  %v1139 = vadd.f32 %v1082, %v1138
  %v1140 = vtanh.pop %v1139
  %v1141 = vsub.f32 1.0, %v1137
  %1143 = vrot.lane.b32.xlu0 %v1140, 64
  %v1144 = vpop.permute.xlu0 %1143
  %v1146 = vmul.f32 %v1141, %v1144
  %v1147 = vmul.f32 %v1137, %v1045
  %v1148 = vadd.f32 %v1146, %v1147
  %1150 = vrot.lane.b32.xlu0 %v1148, 64
  %v1151 = vpop.permute.xlu0 %1150
  %s1153 = scalar_lea.vmem [#allocation3], 14
  %1154 = vst.msk [vmem:[%s1153] sm:$0x3] %vm426, %v1151
  %1155 = vrot.lane.b32.xlu0 %v1148, 32
  %v1156 = vpop.permute.xlu0 %1155
  %1158 = vst.msk [vmem:[#allocation4] sm:$0x3] %vm426, %v1156
  %v1159 = vld [vmem:[#allocation3] sm:$0x3]
  %v1160 = vld [vmem:[#allocation3 + $0x2] sm:$0x3]
  %v1161 = vld [vmem:[#allocation3 + $0x4] sm:$0x3]
  %v1162 = vld [vmem:[#allocation3 + $0x6] sm:$0x3]
  %v1163 = vld [vmem:[#allocation3 + $0x8] sm:$0x3]
  %v1164 = vld [vmem:[#allocation3 + $0xa] sm:$0x3]
  %v1165 = vld [vmem:[#allocation3 + $0xc] sm:$0x3]
  %v1166 = vld [vmem:[#allocation3 + $0xe] sm:$0x3]
  %v1167 = vld [vmem:[#allocation4] sm:$0x3]
  %v1168 = vld [vmem:[#allocation4 + $0x2] sm:$0x3]
  %v1169 = vld [vmem:[#allocation4 + $0x4] sm:$0x3]
  %v1170 = vld [vmem:[#allocation4 + $0x6] sm:$0x3]
  %v1171 = vld [vmem:[#allocation4 + $0x8] sm:$0x3]
  %v1172 = vld [vmem:[#allocation4 + $0xa] sm:$0x3]
  %v1173 = vld [vmem:[#allocation4 + $0xc] sm:$0x3]
  %v1174 = vld [vmem:[#allocation4 + $0xe] sm:$0x3]
  %v1183 = vrot.slane %v1160, 7
  %vm1184 = vcmask 1041409
  %v1185 = vsel %vm1184, %v1183, %v1159
  %v1186 = vrot.slane %v1161, 6
  %vm1187 = vcmask 1042434
  %v1188 = vsel %vm1187, %v1186, %v1185
  %v1189 = vrot.slane %v1162, 5
  %vm1190 = vcmask 1043459
  %v1191 = vsel %vm1190, %v1189, %v1188
  %v1192 = vrot.slane %v1163, 4
  %vm1193 = vcmask 1044484
  %v1194 = vsel %vm1193, %v1192, %v1191
  %v1195 = vrot.slane %v1164, 3
  %vm1196 = vcmask 1045509
  %v1197 = vsel %vm1196, %v1195, %v1194
  %v1198 = vrot.slane %v1165, 2
  %vm1199 = vcmask 1046534
  %v1200 = vsel %vm1199, %v1198, %v1197
  %v1201 = vrot.slane %v1166, 1
  %vm1202 = vcmask 1047559
  %v1203 = vsel %vm1202, %v1201, %v1200
  %v1213 = vrot.slane %v1168, 7
  %v1214 = vsel %vm1184, %v1213, %v1167
  %v1215 = vrot.slane %v1169, 6
  %v1216 = vsel %vm1187, %v1215, %v1214
  %v1217 = vrot.slane %v1170, 5
  %v1218 = vsel %vm1190, %v1217, %v1216
  %v1219 = vrot.slane %v1171, 4
  %v1220 = vsel %vm1193, %v1219, %v1218
  %v1221 = vrot.slane %v1172, 3
  %v1222 = vsel %vm1196, %v1221, %v1220
  %v1223 = vrot.slane %v1173, 2
  %v1224 = vsel %vm1199, %v1223, %v1222
  %v1225 = vrot.slane %v1174, 1
  %v1226 = vsel %vm1202, %v1225, %v1224
  %1227 = vrot.lane.b32.xlu0 %v1226, 32
  %v1228 = vpop.permute.xlu0 %1227
  %vm1230 = vcmask 261120
  %v1231 = vsel %vm1230, %v1203, %v1228
  %1232 = vst.msk [vmem:[%s5] sm:$0xff] %vm134, %v1231
  %v1233 = vsel %vm1187, %v1183, %v1159
  %v1234 = vsel %vm1190, %v1186, %v1233
  %v1235 = vsel %vm1193, %v1189, %v1234
  %v1236 = vsel %vm1196, %v1192, %v1235
  %v1237 = vsel %vm1199, %v1195, %v1236
  %v1238 = vsel %vm1202, %v1198, %v1237
  %v1241 = vsel %vm1187, %v1213, %v1167
  %v1242 = vsel %vm1190, %v1215, %v1241
  %v1243 = vsel %vm1193, %v1217, %v1242
  %v1244 = vsel %vm1196, %v1219, %v1243
  %v1245 = vsel %vm1199, %v1221, %v1244
  %v1246 = vsel %vm1202, %v1223, %v1245
  %1247 = vrot.lane.b32.xlu0 %v1246, 32
  %v1248 = vpop.permute.xlu0 %1247
  %1249 = vrot.lane.b32.xlu0 %v1225, 32
  %v1250 = vpop.permute.xlu0 %1249
  %v1253 = vsel %vm1230, %v1238, %v1248
  %v1254 = vsel %vm1230, %v1201, %v1250
  %s1255 = scalar_lea.vmem %s5, 8
  %vm1256 = vcmask 523265
  %1257 = vst.msk [vmem:[%s1255 - $0x1] sm:$0xfe] %vm1256, %v1253
  %vm1258 = vcmask 516096
  %1259 = vst.msk [vmem:[%s1255 + $0x7] sm:$0x1] %vm1258, %v1254
  // Predicated region
  $region22: #{grulob_forward.7} parent=0 // pred_check
    _
  $region23: #{grulob_forward.7} parent=0 // pred_check_branch
    %1261 = sbr.rel (0) target = $region25
  $region24: #{grulob_forward.7} parent=0 // pred_region
    _
  $region25: #{grulob_forward.7} parent=0 // pred_fallthru
    _
  // Predicated region
  $region26: #{grulob_forward.7} parent=0 // pred_check
    _
  $region27: #{grulob_forward.7} parent=0 // pred_check_branch
    %1263 = sbr.rel (0) target = $region29
  $region28: #{grulob_forward.7} parent=0 // pred_region
    _
  $region29: #{grulob_forward.7} parent=0 // pred_fallthru
    _

// kernel: grulob_forward.8
$region0: #{grulob_forward.8}
  #allocation0 [shape = 'u32[]', space=smem, size = 0x4, offset = 0x4, fixed_abs, tag = 'smem constant byte address 0x4 - core index']
  #allocation1 [shape = 'u32[144,128]{1,0:T(1,128)}', space=vmem, size = 0x12000, scoped, tag = 'internal scratch']
  #allocation2 [shape = 'f32[2,128]{1,0:T(2,128)}', space=vmem, size = 0x400, scoped, tag = 'scratch operand']
  %s0 = inlined_call_operand.vmem [shape: bf16[2,512], index: 0, kind: input, shape index: {}]
  %s1 = inlined_call_operand.vmem [shape: bf16[512,128], index: 1, kind: input, shape index: {}]
  %s2 = inlined_call_operand.hbm [shape: f32[1,128], index: 2, kind: input, shape index: {}]
  %s3 = inlined_call_operand.vmem [shape: f32[2,128], index: 3, kind: output, shape index: {}]
  %s4 = sld [smem:[#allocation0]]
  $region34: #{grulob_forward.8} parent=0
    _
  %s6 = ssub.s32 1, %s4
  %s7 = scalar_select 0, %s6, %s4
  $region1: #{grulob_forward.8} parent=0
    #allocation3 [shape = 'u8[512]{0}', space=vmem, size = 0x400, scoped, tag = 'input window, operand 2, single buffered']
    #allocation4 [shape = 's32[1]{0}', space=sflag, size = 0x4, scoped, tag = 'scoped memory for grulob_forward.8']
    %8 = vsyncpa [#allocation4], 0
    // Predicated region
    $region2: #{grulob_forward.8} parent=1 // pred_check
      _
    $region3: #{grulob_forward.8} parent=1 // pred_check_branch
      %10 = sbr.rel (0) target = $region5
    $region4: #{grulob_forward.8} parent=1 // pred_region
      _
    $region5: #{grulob_forward.8} parent=1 // pred_fallthru
      _
    // Predicated region
    $region6: #{grulob_forward.8} parent=1 // pred_check
      _
    $region7: #{grulob_forward.8} parent=1 // pred_check_branch
      %12 = sbr.rel (0) target = $region9
    $region8: #{grulob_forward.8} parent=1 // pred_region
      _
    $region9: #{grulob_forward.8} parent=1 // pred_fallthru
      _
    // Predicated region
    $region10: #{grulob_forward.8} parent=1 // pred_check
      _
    $region11: #{grulob_forward.8} parent=1 // pred_check_branch
      %14 = sbr.rel (0) target = $region13
    $region12: #{grulob_forward.8} parent=1 // pred_region
      %s16 = ssub.s32 16, 16
      %17 = vsyncadd [#allocation4], %s16
      %s19 = sshll.u32 [#allocation3], 4
      %s20 = int_to_ptr.vmem [resolvable:$true] %s19
      %22 = dma.hbm_to_vmem [thread:$0]  %s2, 16, %s20, [#allocation4]
    $region13: #{grulob_forward.8} parent=1 // pred_fallthru
      _
    // Predicated region
    $region14: #{grulob_forward.8} parent=1 // pred_check
      _
    $region15: #{grulob_forward.8} parent=1 // pred_check_branch
      %24 = sbr.rel (0) target = $region17
    $region16: #{grulob_forward.8} parent=1 // pred_region
      %25 = dma.done [#allocation4], 16
    $region17: #{grulob_forward.8} parent=1 // pred_fallthru
      _
    %p27 = scmp.eq.s32.totalorder 0, 0
    // Predicated region
    $region18: #{grulob_forward.8} parent=1 // pred_check
      %p28 = pneg %p27
    $region19: #{grulob_forward.8} parent=1 // pred_check_branch
      %30 = sbr.rel (%p28) target = $region21
    $region20: #{grulob_forward.8} parent=1 // pred_region
      %31 = vst [vmem:[#allocation2] sm:$0x3] 0.0
    $region21: #{grulob_forward.8} parent=1 // pred_fallthru
      _
    %v32 = vld [vmem:[#allocation2] sm:$0x3]
    %v33 = vld [vmem:[%s0] sm:$0xf]
    %v34 = vld [vmem:[%s1] sm:$0xf]
    %v35 = vld [vmem:[%s1 + $0x4] sm:$0xf]
    %v36 = vld [vmem:[%s1 + $0x8] sm:$0xf]
    %v37 = vld [vmem:[%s1 + $0xc] sm:$0xf]
    %v38 = vld [vmem:[%s1 + $0x10] sm:$0xf]
    %v39 = vld [vmem:[%s1 + $0x14] sm:$0xf]
    %v40 = vld [vmem:[%s1 + $0x18] sm:$0xf]
    %v41 = vld [vmem:[%s1 + $0x1c] sm:$0xf]
    %v42 = vld [vmem:[%s1 + $0x20] sm:$0xf]
    %v43 = vld [vmem:[%s1 + $0x24] sm:$0xf]
    %v44 = vld [vmem:[%s1 + $0x28] sm:$0xf]
    %v45 = vld [vmem:[%s1 + $0x2c] sm:$0xf]
    %v46 = vld [vmem:[%s1 + $0x30] sm:$0xf]
    %v47 = vld [vmem:[%s1 + $0x34] sm:$0xf]
    %v48 = vld [vmem:[%s1 + $0x38] sm:$0xf]
    %v49 = vld [vmem:[%s1 + $0x3c] sm:$0xf]
    %v50 = vld [vmem:[%s1 + $0x40] sm:$0xf]
    %v51 = vld [vmem:[%s1 + $0x44] sm:$0xf]
    %v52 = vld [vmem:[%s1 + $0x48] sm:$0xf]
    %v53 = vld [vmem:[%s1 + $0x4c] sm:$0xf]
    %v54 = vld [vmem:[%s1 + $0x50] sm:$0xf]
    %v55 = vld [vmem:[%s1 + $0x54] sm:$0xf]
    %v56 = vld [vmem:[%s1 + $0x58] sm:$0xf]
    %v57 = vld [vmem:[%s1 + $0x5c] sm:$0xf]
    %v58 = vld [vmem:[%s1 + $0x60] sm:$0xf]
    %v59 = vld [vmem:[%s1 + $0x64] sm:$0xf]
    %v60 = vld [vmem:[%s1 + $0x68] sm:$0xf]
    %v61 = vld [vmem:[%s1 + $0x6c] sm:$0xf]
    %v62 = vld [vmem:[%s1 + $0x70] sm:$0xf]
    %v63 = vld [vmem:[%s1 + $0x74] sm:$0xf]
    %v64 = vld [vmem:[%s1 + $0x78] sm:$0xf]
    %v65 = vld [vmem:[%s1 + $0x7c] sm:$0xf]
    %v66 = vld [vmem:[%s1 + $0x80] sm:$0xf]
    %v67 = vld [vmem:[%s1 + $0x84] sm:$0xf]
    %v68 = vld [vmem:[%s1 + $0x88] sm:$0xf]
    %v69 = vld [vmem:[%s1 + $0x8c] sm:$0xf]
    %v70 = vld [vmem:[%s1 + $0x90] sm:$0xf]
    %v71 = vld [vmem:[%s1 + $0x94] sm:$0xf]
    %v72 = vld [vmem:[%s1 + $0x98] sm:$0xf]
    %v73 = vld [vmem:[%s1 + $0x9c] sm:$0xf]
    %v74 = vld [vmem:[%s1 + $0xa0] sm:$0xf]
    %v75 = vld [vmem:[%s1 + $0xa4] sm:$0xf]
    %v76 = vld [vmem:[%s1 + $0xa8] sm:$0xf]
    %v77 = vld [vmem:[%s1 + $0xac] sm:$0xf]
    %v78 = vld [vmem:[%s1 + $0xb0] sm:$0xf]
    %v79 = vld [vmem:[%s1 + $0xb4] sm:$0xf]
    %v80 = vld [vmem:[%s1 + $0xb8] sm:$0xf]
    %v81 = vld [vmem:[%s1 + $0xbc] sm:$0xf]
    %v82 = vld [vmem:[%s1 + $0xc0] sm:$0xf]
    %v83 = vld [vmem:[%s1 + $0xc4] sm:$0xf]
    %v84 = vld [vmem:[%s1 + $0xc8] sm:$0xf]
    %v85 = vld [vmem:[%s1 + $0xcc] sm:$0xf]
    %v86 = vld [vmem:[%s1 + $0xd0] sm:$0xf]
    %v87 = vld [vmem:[%s1 + $0xd4] sm:$0xf]
    %v88 = vld [vmem:[%s1 + $0xd8] sm:$0xf]
    %v89 = vld [vmem:[%s1 + $0xdc] sm:$0xf]
    %v90 = vld [vmem:[%s1 + $0xe0] sm:$0xf]
    %v91 = vld [vmem:[%s1 + $0xe4] sm:$0xf]
    %v92 = vld [vmem:[%s1 + $0xe8] sm:$0xf]
    %v93 = vld [vmem:[%s1 + $0xec] sm:$0xf]
    %v94 = vld [vmem:[%s1 + $0xf0] sm:$0xf]
    %v95 = vld [vmem:[%s1 + $0xf4] sm:$0xf]
    %v96 = vld [vmem:[%s1 + $0xf8] sm:$0xf]
    %v97 = vld [vmem:[%s1 + $0xfc] sm:$0xf]
    %v100 = vunpack.c.l.s4 1966171168
    %v101 = vunpack.c.0.s8 %v100
    %v102 = vlaneseq
    %v103 = vshrl.u32 %v102, 7
    %v104 = vsub.s32 %v101, %v103
    %v105 = vrot.slane %v33, %v104
    %v106 = vcombine.high %v105, %v105
    %v108 = vunpack.c.l.s4 1966171168
    %v109 = vunpack.c.0.s8 %v108
    %v110 = vlaneseq
    %v111 = vshrl.u32 %v110, 7
    %v112 = vsub.s32 %v109, %v111
    %v113 = vrot.slane %v105, %v112
    %v115 = vunpack.c.l.s4 1966171168
    %v116 = vunpack.c.0.s8 %v115
    %v117 = vlaneseq
    %v118 = vshrl.u32 %v117, 7
    %v119 = vsub.s32 %v116, %v118
    %v120 = vrot.slane %v106, %v119
    %v121 = vcombine.high %v113, %v113
    %v122 = vcombine.high %v120, %v120
    %v191 = vunpack.c.l.b16 %v34
    %v192 = vunpack.c.l.b16 %v35
    %v193 = vunpack.c.l.b16 %v36
    %v194 = vunpack.c.l.b16 %v37
    %v195 = vunpack.c.l.b16 %v38
    %v196 = vunpack.c.l.b16 %v39
    %v197 = vunpack.c.l.b16 %v40
    %v198 = vunpack.c.l.b16 %v41
    %v199 = vunpack.c.l.b16 %v42
    %v200 = vunpack.c.l.b16 %v43
    %v201 = vunpack.c.l.b16 %v44
    %v202 = vunpack.c.l.b16 %v45
    %v203 = vunpack.c.l.b16 %v46
    %v204 = vunpack.c.l.b16 %v47
    %v205 = vunpack.c.l.b16 %v48
    %v206 = vunpack.c.l.b16 %v49
    %v207 = vunpack.c.l.b16 %v50
    %v208 = vunpack.c.l.b16 %v51
    %v209 = vunpack.c.l.b16 %v52
    %v210 = vunpack.c.l.b16 %v53
    %v211 = vunpack.c.l.b16 %v54
    %v212 = vunpack.c.l.b16 %v55
    %v213 = vunpack.c.l.b16 %v56
    %v214 = vunpack.c.l.b16 %v57
    %v215 = vunpack.c.l.b16 %v58
    %v216 = vunpack.c.l.b16 %v59
    %v217 = vunpack.c.l.b16 %v60
    %v218 = vunpack.c.l.b16 %v61
    %v219 = vunpack.c.l.b16 %v62
    %v220 = vunpack.c.l.b16 %v63
    %v221 = vunpack.c.l.b16 %v64
    %v222 = vunpack.c.l.b16 %v65
    %v223 = vunpack.c.l.b16 %v66
    %v224 = vunpack.c.l.b16 %v67
    %v225 = vunpack.c.l.b16 %v68
    %v226 = vunpack.c.l.b16 %v69
    %v227 = vunpack.c.l.b16 %v70
    %v228 = vunpack.c.l.b16 %v71
    %v229 = vunpack.c.l.b16 %v72
    %v230 = vunpack.c.l.b16 %v73
    %v231 = vunpack.c.l.b16 %v74
    %v232 = vunpack.c.l.b16 %v75
    %v233 = vunpack.c.l.b16 %v76
    %v234 = vunpack.c.l.b16 %v77
    %v235 = vunpack.c.l.b16 %v78
    %v236 = vunpack.c.l.b16 %v79
    %v237 = vunpack.c.l.b16 %v80
    %v238 = vunpack.c.l.b16 %v81
    %v239 = vunpack.c.l.b16 %v82
    %v240 = vunpack.c.l.b16 %v83
    %v241 = vunpack.c.l.b16 %v84
    %v242 = vunpack.c.l.b16 %v85
    %v243 = vunpack.c.l.b16 %v86
    %v244 = vunpack.c.l.b16 %v87
    %v245 = vunpack.c.l.b16 %v88
    %v246 = vunpack.c.l.b16 %v89
    %v247 = vunpack.c.l.b16 %v90
    %v248 = vunpack.c.l.b16 %v91
    %v249 = vunpack.c.l.b16 %v92
    %v250 = vunpack.c.l.b16 %v93
    %v251 = vunpack.c.l.b16 %v94
    %v252 = vunpack.c.l.b16 %v95
    %v253 = vunpack.c.l.b16 %v96
    %v254 = vunpack.c.l.b16 %v97
    %v255 = vpack.c.b16 %v192, %v191
    %v256 = vpack.c.b16 %v194, %v193
    %v257 = vpack.c.b16 %v196, %v195
    %v258 = vpack.c.b16 %v198, %v197
    %v259 = vpack.c.b16 %v200, %v199
    %v260 = vpack.c.b16 %v202, %v201
    %v261 = vpack.c.b16 %v204, %v203
    %v262 = vpack.c.b16 %v206, %v205
    %v263 = vpack.c.b16 %v208, %v207
    %v264 = vpack.c.b16 %v210, %v209
    %v265 = vpack.c.b16 %v212, %v211
    %v266 = vpack.c.b16 %v214, %v213
    %v267 = vpack.c.b16 %v216, %v215
    %v268 = vpack.c.b16 %v218, %v217
    %v269 = vpack.c.b16 %v220, %v219
    %v270 = vpack.c.b16 %v222, %v221
    %v271 = vpack.c.b16 %v224, %v223
    %v272 = vpack.c.b16 %v226, %v225
    %v273 = vpack.c.b16 %v228, %v227
    %v274 = vpack.c.b16 %v230, %v229
    %v275 = vpack.c.b16 %v232, %v231
    %v276 = vpack.c.b16 %v234, %v233
    %v277 = vpack.c.b16 %v236, %v235
    %v278 = vpack.c.b16 %v238, %v237
    %v279 = vpack.c.b16 %v240, %v239
    %v280 = vpack.c.b16 %v242, %v241
    %v281 = vpack.c.b16 %v244, %v243
    %v282 = vpack.c.b16 %v246, %v245
    %v283 = vpack.c.b16 %v248, %v247
    %v284 = vpack.c.b16 %v250, %v249
    %v285 = vpack.c.b16 %v252, %v251
    %v286 = vpack.c.b16 %v254, %v253
    %319 = vmatprep.subr.bf16.mxu0 0
    %320 = vmatpush1.bf16.msra.mxu0 %v255
    %321 = vmatprep.subr.bf16.mxu0 0
    %322 = vmatpush1.bf16.msra.mxu0 %v256
    %323 = vmatprep.subr.bf16.mxu0 0
    %324 = vmatpush1.bf16.msra.mxu0 %v257
    %325 = vmatprep.subr.bf16.mxu0 0
    %326 = vmatpush1.bf16.msra.mxu0 %v258
    %327 = vmatprep.subr.bf16.mxu0 0
    %328 = vmatpush1.bf16.msra.mxu0 %v259
    %329 = vmatprep.subr.bf16.mxu0 0
    %330 = vmatpush1.bf16.msra.mxu0 %v260
    %331 = vmatprep.subr.bf16.mxu0 0
    %332 = vmatpush1.bf16.msra.mxu0 %v261
    %333 = vmatprep.subr.bf16.mxu0 0
    %334 = vmatpush1.bf16.msra.mxu0 %v262
    %335 = vmatprep.subr.bf16.mxu0 0
    %336 = vmatpush1.bf16.msra.mxu0 %v263
    %337 = vmatprep.subr.bf16.mxu0 0
    %338 = vmatpush1.bf16.msra.mxu0 %v264
    %339 = vmatprep.subr.bf16.mxu0 0
    %340 = vmatpush1.bf16.msra.mxu0 %v265
    %341 = vmatprep.subr.bf16.mxu0 0
    %342 = vmatpush1.bf16.msra.mxu0 %v266
    %343 = vmatprep.subr.bf16.mxu0 0
    %344 = vmatpush1.bf16.msra.mxu0 %v267
    %345 = vmatprep.subr.bf16.mxu0 0
    %346 = vmatpush1.bf16.msra.mxu0 %v268
    %347 = vmatprep.subr.bf16.mxu0 0
    %348 = vmatpush1.bf16.msra.mxu0 %v269
    %349 = vmatprep.subr.bf16.mxu0 0
    %350 = vmatpush1.bf16.msra.mxu0 %v270
    %351 = vmatprep.mubr.bf16.mxu0 %v120
    %352 = vmatmul.mubr.bf16.gmra.mrb[0].mxu0 %v113
    %v353 = vpop.f32.mrb[0].mxu0
    %v354 = vadd.f32 0.0, %v353
    %v355 = vpop.f32.mrb[0].mxu0
    %v356 = vpop.f32.mrb[0].mxu0
    %v357 = vpop.f32.mrb[0].mxu0
    %358 = vdwg.mxu0
    %359 = vmatprep.subr.bf16.mxu0 0
    %360 = vmatpush1.bf16.msra.mxu0 %v271
    %361 = vmatprep.subr.bf16.mxu0 0
    %362 = vmatpush1.bf16.msra.mxu0 %v272
    %363 = vmatprep.subr.bf16.mxu0 0
    %364 = vmatpush1.bf16.msra.mxu0 %v273
    %365 = vmatprep.subr.bf16.mxu0 0
    %366 = vmatpush1.bf16.msra.mxu0 %v274
    %367 = vmatprep.subr.bf16.mxu0 0
    %368 = vmatpush1.bf16.msra.mxu0 %v275
    %369 = vmatprep.subr.bf16.mxu0 0
    %370 = vmatpush1.bf16.msra.mxu0 %v276
    %371 = vmatprep.subr.bf16.mxu0 0
    %372 = vmatpush1.bf16.msra.mxu0 %v277
    %373 = vmatprep.subr.bf16.mxu0 0
    %374 = vmatpush1.bf16.msra.mxu0 %v278
    %375 = vmatprep.subr.bf16.mxu0 0
    %376 = vmatpush1.bf16.msra.mxu0 %v279
    %377 = vmatprep.subr.bf16.mxu0 0
    %378 = vmatpush1.bf16.msra.mxu0 %v280
    %379 = vmatprep.subr.bf16.mxu0 0
    %380 = vmatpush1.bf16.msra.mxu0 %v281
    %381 = vmatprep.subr.bf16.mxu0 0
    %382 = vmatpush1.bf16.msra.mxu0 %v282
    %383 = vmatprep.subr.bf16.mxu0 0
    %384 = vmatpush1.bf16.msra.mxu0 %v283
    %385 = vmatprep.subr.bf16.mxu0 0
    %386 = vmatpush1.bf16.msra.mxu0 %v284
    %387 = vmatprep.subr.bf16.mxu0 0
    %388 = vmatpush1.bf16.msra.mxu0 %v285
    %389 = vmatprep.subr.bf16.mxu0 0
    %390 = vmatpush1.bf16.msra.mxu0 %v286
    %391 = vmatprep.mubr.bf16.mxu0 %v122
    %392 = vmatmul.mubr.bf16.gmra.mrb[0].mxu0 %v121
    %v393 = vpop.f32.mrb[0].mxu0
    %v394 = vadd.f32 %v354, %v393
    %v395 = vpop.f32.mrb[0].mxu0
    %v396 = vpop.f32.mrb[0].mxu0
    %v397 = vpop.f32.mrb[0].mxu0
    %398 = vdwg.mxu0
    %v399 = vadd.f32 %v32, %v394
    %400 = vst [vmem:[#allocation2] sm:$0x3] %v399
    // Predicated region
    $region22: #{grulob_forward.8} parent=1 // pred_check
      %p401 = pneg %p27
    $region23: #{grulob_forward.8} parent=1 // pred_check_branch
      %403 = sbr.rel (%p401) target = $region25
    $region24: #{grulob_forward.8} parent=1 // pred_region
      %v404 = vld [vmem:[#allocation2] sm:$0x3]
      %v405 = vld [vmem:[#allocation3] sm:$0x1]
      %v407 = vlaneseq
      %v408 = vshrl.u32 %v407, 7
      %v409 = vsub.s32 0, %v408
      %v410 = vrot.slane %v405, %v409
      %v412 = vadd.f32 %v404, %v410
      %v413 = vmul.f32 %v412, 0.70710677
      %v414 = vand.u32 2147483647, %v413
      %v415 = vmul.f32 %v414, 0.3275911
      %v416 = vadd.f32 %v415, 1.0
      %v417 = vrcp.pop %v416
      %v418 = vmul.f32 1.0, %v417
      %v419 = vmul.f32 %v418, 1.0614054
      %v420 = vadd.f32 %v419, -1.4531521
      %v421 = vmul.f32 %v418, %v420
      %v422 = vadd.f32 %v421, 1.4214138
      %v423 = vmul.f32 %v418, %v422
      %v424 = vadd.f32 %v423, -0.28449672
      %v425 = vmul.f32 %v418, %v424
      %v426 = vadd.f32 %v425, 0.2548296
      %v427 = vmul.f32 %v418, %v426
      %v428 = vsub.f32 0.0, %v414
      %v429 = vmul.f32 %v428, %v414
      %v430 = vmul.f32 %v429, 1.442695
      %v431 = vpow.pop %v430
      %v432 = vmul.f32 %v427, %v431
      %v433 = vsub.f32 1.0, %v432
      %vm434 = vcmp.ge.f32.partialorder %v413, 0.0
      %v435 = vsub.f32 0.0, %v433
      %v436 = vsel %vm434, %v433, %v435
      %v437 = vmul.f32 %v412, 0.5
      %v438 = vadd.f32 %v436, 1.0
      %v439 = vmul.f32 %v437, %v438
      %440 = vst [vmem:[%s3] sm:$0x3] %v439
    $region25: #{grulob_forward.8} parent=1 // pred_fallthru
      _
    // Predicated region
    $region26: #{grulob_forward.8} parent=1 // pred_check
      _
    $region27: #{grulob_forward.8} parent=1 // pred_check_branch
      %442 = sbr.rel (0) target = $region29
    $region28: #{grulob_forward.8} parent=1 // pred_region
      _
    $region29: #{grulob_forward.8} parent=1 // pred_fallthru
      _
    // Predicated region
    $region30: #{grulob_forward.8} parent=1 // pred_check
      _
    $region31: #{grulob_forward.8} parent=1 // pred_check_branch
      %444 = sbr.rel (0) target = $region33
    $region32: #{grulob_forward.8} parent=1 // pred_region
      _
    $region33: #{grulob_forward.8} parent=1 // pred_fallthru
      _
    %445 = vsyncpa [#allocation4], 1

// kernel: grulob_forward.6
$region0: #{grulob_forward.6}
  #allocation0 [shape = 'u32[]', space=smem, size = 0x4, offset = 0x4, fixed_abs, tag = 'smem constant byte address 0x4 - core index']
  #allocation1 [shape = 'u32[144,128]{1,0:T(1,128)}', space=vmem, size = 0x12000, scoped, tag = 'internal scratch']
  #allocation2 [shape = 'f32[8,2,192]{2,1,0:T(2,128)}', space=vmem, size = 0x4000, scoped, tag = 'scratch operand']
  #allocation3 [shape = 'f32[8,2,32]{2,1,0:T(2,128)}', space=vmem, size = 0x2000, scoped, tag = 'scratch operand']
  #allocation4 [shape = 'f32[8,2,32]{2,1,0:T(2,128)}', space=vmem, size = 0x2000, scoped, tag = 'scratch operand']
  %s0 = inlined_call_operand.vmem [shape: f32[8,2,32], index: 0, kind: input, shape index: {}]
  %s1 = inlined_call_operand.vmem [shape: bf16[32,192], index: 1, kind: input, shape index: {}]
  %s2 = inlined_call_operand.vmem [shape: f32[1,192], index: 2, kind: input, shape index: {}]
  %s3 = inlined_call_operand.vmem [shape: bf16[64,192], index: 3, kind: input, shape index: {}]
  %s4 = inlined_call_operand.vmem [shape: f32[1,192], index: 4, kind: input, shape index: {}]
  %s5 = inlined_call_operand.vmem [shape: f32[8,2,64], index: 5, kind: output, shape index: {}]
  %s6 = sld [smem:[#allocation0]]
  $region30: #{grulob_forward.6} parent=0
    _
  %s8 = ssub.s32 1, %s6
  %s9 = scalar_select 0, %s8, %s6
  // Predicated region
  $region2: #{grulob_forward.6} parent=0 // pred_check
    _
  $region3: #{grulob_forward.6} parent=0 // pred_check_branch
    %11 = sbr.rel (0) target = $region5
  $region4: #{grulob_forward.6} parent=0 // pred_region
    _
  $region5: #{grulob_forward.6} parent=0 // pred_fallthru
    _
  // Predicated region
  $region6: #{grulob_forward.6} parent=0 // pred_check
    _
  $region7: #{grulob_forward.6} parent=0 // pred_check_branch
    %13 = sbr.rel (0) target = $region9
  $region8: #{grulob_forward.6} parent=0 // pred_region
    _
  $region9: #{grulob_forward.6} parent=0 // pred_fallthru
    _
  // Predicated region
  $region10: #{grulob_forward.6} parent=0 // pred_check
    _
  $region11: #{grulob_forward.6} parent=0 // pred_check_branch
    %15 = sbr.rel (0) target = $region13
  $region12: #{grulob_forward.6} parent=0 // pred_region
    _
  $region13: #{grulob_forward.6} parent=0 // pred_fallthru
    _
  // Predicated region
  $region14: #{grulob_forward.6} parent=0 // pred_check
    _
  $region15: #{grulob_forward.6} parent=0 // pred_check_branch
    %17 = sbr.rel (0) target = $region17
  $region16: #{grulob_forward.6} parent=0 // pred_region
    _
  $region17: #{grulob_forward.6} parent=0 // pred_fallthru
    _
  // Predicated region
  $region18: #{grulob_forward.6} parent=0 // pred_check
    _
  $region19: #{grulob_forward.6} parent=0 // pred_check_branch
    %19 = sbr.rel (0) target = $region21
  $region20: #{grulob_forward.6} parent=0 // pred_region
    _
  $region21: #{grulob_forward.6} parent=0 // pred_fallthru
    _
  %v21 = vld [vmem:[%s2] sm:$0x3]
  %v22 = vld [vmem:[%s0] sm:$0x3]
  %v23 = vld [vmem:[%s0 + $0x2] sm:$0x3]
  %v24 = vld [vmem:[%s0 + $0x4] sm:$0x3]
  %v25 = vld [vmem:[%s0 + $0x6] sm:$0x3]
  %v26 = vld [vmem:[%s0 + $0x8] sm:$0x3]
  %v27 = vld [vmem:[%s0 + $0xa] sm:$0x3]
  %v28 = vld [vmem:[%s0 + $0xc] sm:$0x3]
  %v29 = vld [vmem:[%s0 + $0xe] sm:$0x3]
  %v38 = vcombine.low %v22, %v23
  %v39 = vcombine.low %v24, %v25
  %v41 = vunpack.c.l.s4 1983009808
  %v42 = vunpack.c.0.s8 %v41
  %v43 = vlaneseq
  %v44 = vshrl.u32 %v43, 7
  %v45 = vsub.s32 %v42, %v44
  %v46 = vrot.slane %v38, %v45
  %v48 = vunpack.c.l.s4 1983009808
  %v49 = vunpack.c.0.s8 %v48
  %v50 = vlaneseq
  %v51 = vshrl.u32 %v50, 7
  %v52 = vsub.s32 %v49, %v51
  %v53 = vrot.slane %v39, %v52
  %v54 = vcombine.low %v46, %v53
  %v55 = vcombine.low %v26, %v27
  %v56 = vcombine.low %v28, %v29
  %v58 = vunpack.c.l.s4 1983009808
  %v59 = vunpack.c.0.s8 %v58
  %v60 = vlaneseq
  %v61 = vshrl.u32 %v60, 7
  %v62 = vsub.s32 %v59, %v61
  %v63 = vrot.slane %v55, %v62
  %v65 = vunpack.c.l.s4 1983009808
  %v66 = vunpack.c.0.s8 %v65
  %v67 = vlaneseq
  %v68 = vshrl.u32 %v67, 7
  %v69 = vsub.s32 %v66, %v68
  %v70 = vrot.slane %v56, %v69
  %v71 = vcombine.low %v63, %v70
  %v74 = vpack.c.bf16 %v71, %v54
  %v75 = vld [vmem:[%s1] sm:$0xff]
  %v76 = vld [vmem:[%s1 + $0x8] sm:$0xff]
  %v77 = vld [vmem:[%s1 + $0x10] sm:$0xff]
  %v78 = vld [vmem:[%s1 + $0x18] sm:$0xff]
  %v80 = vlaneseq
  %v81 = vshrl.u32 %v80, 7
  %v82 = vsub.s32 0, %v81
  %v83 = vrot.slane %v21, %v82
  %v84 = vlaneseq
  %v85 = vshrl.u32 %v84, 7
  %v86 = vsub.s32 1, %v85
  %v87 = vrot.slane %v21, %v86
  %v94 = vunpack.c.l.b16 %v75
  %v95 = vunpack.c.h.b16 %v75
  %v96 = vunpack.c.l.b16 %v76
  %v97 = vunpack.c.h.b16 %v76
  %v98 = vunpack.c.l.b16 %v77
  %v99 = vunpack.c.h.b16 %v77
  %v100 = vunpack.c.l.b16 %v78
  %v101 = vunpack.c.h.b16 %v78
  %v102 = vpack.c.b16 %v96, %v94
  %v103 = vpack.c.b16 %v97, %v95
  %v104 = vpack.c.b16 %v100, %v98
  %v105 = vpack.c.b16 %v101, %v99
  %vm110 = vcmask 261120
  %v112 = vsel %vm110, %v74, 0
  %114 = vmatprep.subr.bf16.mxu0 %v103
  %115 = vmatpush1.bf16.msra.mxu0 %v102
  %116 = vmatprep.subr.bf16.mxu0 %v105
  %117 = vmatpush1.bf16.msra.mxu0 %v104
  %118 = vmatprep.subr.bf16.mxu0 0
  %119 = vmatpush1.bf16.msra.mxu0 0
  %120 = vmatprep.subr.bf16.mxu0 0
  %121 = vmatpush1.bf16.msra.mxu0 0
  %122 = vmatprep.subr.bf16.mxu0 0
  %123 = vmatpush1.bf16.msra.mxu0 0
  %124 = vmatprep.subr.bf16.mxu0 0
  %125 = vmatpush1.bf16.msra.mxu0 0
  %126 = vmatprep.subr.bf16.mxu0 0
  %127 = vmatpush1.bf16.msra.mxu0 0
  %128 = vmatprep.subr.bf16.mxu0 0
  %129 = vmatpush1.bf16.msra.mxu0 0
  %130 = vmatprep.subr.bf16.mxu0 0
  %131 = vmatpush1.bf16.msra.mxu0 0
  %132 = vmatprep.subr.bf16.mxu0 0
  %133 = vmatpush1.bf16.msra.mxu0 0
  %134 = vmatprep.subr.bf16.mxu0 0
  %135 = vmatpush1.bf16.msra.mxu0 0
  %136 = vmatprep.subr.bf16.mxu0 0
  %137 = vmatpush1.bf16.msra.mxu0 0
  %138 = vmatprep.subr.bf16.mxu0 0
  %139 = vmatpush1.bf16.msra.mxu0 0
  %140 = vmatprep.subr.bf16.mxu0 0
  %141 = vmatpush1.bf16.msra.mxu0 0
  %142 = vmatprep.subr.bf16.mxu0 0
  %143 = vmatpush1.bf16.msra.mxu0 0
  %144 = vmatprep.subr.bf16.mxu0 0
  %145 = vmatpush1.bf16.msra.mxu0 0
  %146 = vmatprep.mubr.bf16.mxu0 0
  %147 = vmatmul.mubr.bf16.gmra.mrb[0].mxu0 %v112
  %v148 = vpop.f32.mrb[0].mxu0
  %v149 = vadd.f32 %v83, %v148
  %v150 = vpop.f32.mrb[0].mxu0
  %v151 = vadd.f32 %v87, %v150
  %v152 = vpop.f32.mrb[0].mxu0
  %v153 = vadd.f32 %v83, %v152
  %v154 = vpop.f32.mrb[0].mxu0
  %v155 = vadd.f32 %v87, %v154
  %156 = vdwg.mxu0
  %v161 = vcombine.low %v149, %v151
  %v162 = vcombine.high %v149, %v151
  %v164 = vunpack.c.l.s4 1983009808
  %v165 = vunpack.c.0.s8 %v164
  %v166 = vlaneseq
  %v167 = vshrl.u32 %v166, 7
  %v168 = vsub.s32 %v165, %v167
  %v169 = vrot.slane %v161, %v168
  %v171 = vunpack.c.l.s4 1983009808
  %v172 = vunpack.c.0.s8 %v171
  %v173 = vlaneseq
  %v174 = vshrl.u32 %v173, 7
  %v175 = vsub.s32 %v172, %v174
  %v176 = vrot.slane %v162, %v175
  %v177 = vcombine.high %v169, %v169
  %v178 = vcombine.high %v176, %v176
  %v179 = vcombine.low %v153, %v155
  %v180 = vcombine.high %v153, %v155
  %v182 = vunpack.c.l.s4 1983009808
  %v183 = vunpack.c.0.s8 %v182
  %v184 = vlaneseq
  %v185 = vshrl.u32 %v184, 7
  %v186 = vsub.s32 %v183, %v185
  %v187 = vrot.slane %v179, %v186
  %v189 = vunpack.c.l.s4 1983009808
  %v190 = vunpack.c.0.s8 %v189
  %v191 = vlaneseq
  %v192 = vshrl.u32 %v191, 7
  %v193 = vsub.s32 %v190, %v192
  %v194 = vrot.slane %v180, %v193
  %v195 = vcombine.high %v187, %v187
  %v196 = vcombine.high %v194, %v194
  %vm205 = vcmask 1041408
  %vm206 = vcmask 519170
  %vm207 = vmor %vm206, %vm205
  %208 = vst.msk [vmem:[#allocation2] sm:$0xf] %vm207, %v169
  %209 = vst.msk [vmem:[#allocation2 + $0x4] sm:$0xf] %vm207, %v177
  %210 = vst.msk [vmem:[#allocation2 + $0x8] sm:$0xf] %vm207, %v176
  %211 = vst.msk [vmem:[#allocation2 + $0xc] sm:$0xf] %vm207, %v178
  %212 = vst.msk [vmem:[#allocation2 + $0x10] sm:$0xf] %vm207, %v187
  %213 = vst.msk [vmem:[#allocation2 + $0x14] sm:$0xf] %vm207, %v195
  %214 = vst.msk [vmem:[#allocation2 + $0x18] sm:$0xf] %vm207, %v194
  %215 = vst.msk [vmem:[#allocation2 + $0x1c] sm:$0xf] %vm207, %v196
  %v216 = vlaneseq
  %v217 = vand.u32 %v216, 127
  %v218 = vadd.s32 %v217, 128
  %vm219 = vcmp.lt.s32.totalorder %v217, 0
  %v220 = vsub.s32 0, %v217
  %v221 = vsel %vm219, %v220, %v217
  %v222 = vshrl.u32 %v221, 6
  %v223 = vand.u32 %v221, 63
  %v224 = vsub.s32 0, %v223
  %v225 = vsel %vm219, %v224, %v223
  %vm226 = vcmp.lt.s32.totalorder %v218, 0
  %v227 = vsub.s32 0, %v218
  %v228 = vsel %vm226, %v227, %v218
  %v229 = vshrl.u32 %v228, 6
  %v230 = vand.u32 %v228, 63
  %v231 = vsub.s32 0, %v230
  %v232 = vsel %vm226, %v231, %v230
  %vm233 = vcmp.ne.s32.totalorder %v225, 0
  %vm234 = vcmp.ne.s32.totalorder %v232, 0
  %vm235 = vcmp.lt.s32.totalorder %v225, 0
  %vm236 = vcmp.lt.s32.totalorder %v232, 0
  %vm237 = vmand %vm235, %vm233
  %vm238 = vmand %vm236, %vm234
  %v239 = vadd.s32 %v225, 64
  %v240 = vadd.s32 %v232, 64
  %v241 = vsel %vm237, %v239, %v225
  %v242 = vsel %vm238, %v240, %v232
  %vm243 = vcmp.lt.s32.totalorder %v241, 32
  %vm244 = vcmp.lt.s32.totalorder %v242, 32
  %v245 = vld [vmem:[%s3] sm:$0xff]
  %v246 = vld [vmem:[%s3 + $0x8] sm:$0xff]
  %v247 = vld [vmem:[%s3 + $0x10] sm:$0xff]
  %v248 = vld [vmem:[%s3 + $0x18] sm:$0xff]
  %v249 = vld [vmem:[%s3 + $0x20] sm:$0xff]
  %v250 = vld [vmem:[%s3 + $0x28] sm:$0xff]
  %v251 = vld [vmem:[%s3 + $0x30] sm:$0xff]
  %v252 = vld [vmem:[%s3 + $0x38] sm:$0xff]
  %v253 = vld [vmem:[%s4] sm:$0x3]
  %v254 = vld [vmem:[#allocation2] sm:$0xf]
  %s255 = scalar_lea.vmem [#allocation2], 28
  %v256 = vld [vmem:[%s255] sm:$0xf]
  %v257 = vsel %vm243, 1, 0
  %v258 = vsel %vm244, 1, 0
  %vm259 = vcmp.eq.s32.totalorder %v257, 1
  %vm260 = vcmp.eq.s32.totalorder %v258, 1
  %v263 = vunpack.c.l.s4 1983009808
  %v264 = vunpack.c.0.s8 %v263
  %v265 = vlaneseq
  %v266 = vshrl.u32 %v265, 7
  %v267 = vsub.s32 %v264, %v266
  %v268 = vrot.slane %v254, %v267
  %v269 = vcombine.high %v268, %v268
  %v274 = vunpack.c.l.s4 1983009808
  %v275 = vunpack.c.0.s8 %v274
  %v276 = vlaneseq
  %v277 = vshrl.u32 %v276, 7
  %v278 = vsub.s32 %v275, %v277
  %v279 = vrot.slane %v256, %v278
  %v280 = vcombine.high %v279, %v279
  %v283 = vsel %vm259, %v268, %v279
  %v284 = vsel %vm260, %v269, %v280
  %v286 = vlaneseq
  %v287 = vshrl.u32 %v286, 7
  %v288 = vsub.s32 0, %v287
  %v289 = vrot.slane %v253, %v288
  %v290 = vlaneseq
  %v291 = vshrl.u32 %v290, 7
  %v292 = vsub.s32 1, %v291
  %v293 = vrot.slane %v253, %v292
  %v304 = vunpack.c.l.b16 %v245
  %v305 = vunpack.c.h.b16 %v245
  %v306 = vunpack.c.l.b16 %v246
  %v307 = vunpack.c.h.b16 %v246
  %v308 = vunpack.c.l.b16 %v247
  %v309 = vunpack.c.h.b16 %v247
  %v310 = vunpack.c.l.b16 %v248
  %v311 = vunpack.c.h.b16 %v248
  %v312 = vunpack.c.l.b16 %v249
  %v313 = vunpack.c.h.b16 %v249
  %v314 = vunpack.c.l.b16 %v250
  %v315 = vunpack.c.h.b16 %v250
  %v316 = vunpack.c.l.b16 %v251
  %v317 = vunpack.c.h.b16 %v251
  %v318 = vunpack.c.l.b16 %v252
  %v319 = vunpack.c.h.b16 %v252
  %v320 = vpack.c.b16 %v306, %v304
  %v321 = vpack.c.b16 %v307, %v305
  %v322 = vpack.c.b16 %v310, %v308
  %v323 = vpack.c.b16 %v311, %v309
  %v324 = vpack.c.b16 %v314, %v312
  %v325 = vpack.c.b16 %v315, %v313
  %v326 = vpack.c.b16 %v318, %v316
  %v327 = vpack.c.b16 %v319, %v317
  %vm336 = vcmask 523264
  %v338 = vsel %vm336, 0, 0
  %340 = vmatprep.subr.bf16.mxu0 %v321
  %341 = vmatpush1.bf16.msra.mxu0 %v320
  %342 = vmatprep.subr.bf16.mxu0 %v323
  %343 = vmatpush1.bf16.msra.mxu0 %v322
  %344 = vmatprep.subr.bf16.mxu0 %v325
  %345 = vmatpush1.bf16.msra.mxu0 %v324
  %346 = vmatprep.subr.bf16.mxu0 %v327
  %347 = vmatpush1.bf16.msra.mxu0 %v326
  %348 = vmatprep.subr.bf16.mxu0 0
  %349 = vmatpush1.bf16.msra.mxu0 0
  %350 = vmatprep.subr.bf16.mxu0 0
  %351 = vmatpush1.bf16.msra.mxu0 0
  %352 = vmatprep.subr.bf16.mxu0 0
  %353 = vmatpush1.bf16.msra.mxu0 0
  %354 = vmatprep.subr.bf16.mxu0 0
  %355 = vmatpush1.bf16.msra.mxu0 0
  %356 = vmatprep.subr.bf16.mxu0 0
  %357 = vmatpush1.bf16.msra.mxu0 0
  %358 = vmatprep.subr.bf16.mxu0 0
  %359 = vmatpush1.bf16.msra.mxu0 0
  %360 = vmatprep.subr.bf16.mxu0 0
  %361 = vmatpush1.bf16.msra.mxu0 0
  %362 = vmatprep.subr.bf16.mxu0 0
  %363 = vmatpush1.bf16.msra.mxu0 0
  %364 = vmatprep.subr.bf16.mxu0 0
  %365 = vmatpush1.bf16.msra.mxu0 0
  %366 = vmatprep.subr.bf16.mxu0 0
  %367 = vmatpush1.bf16.msra.mxu0 0
  %368 = vmatprep.subr.bf16.mxu0 0
  %369 = vmatpush1.bf16.msra.mxu0 0
  %370 = vmatprep.subr.bf16.mxu0 0
  %371 = vmatpush1.bf16.msra.mxu0 0
  %372 = vmatprep.mubr.bf16.mxu0 0
  %373 = vmatmul.mubr.bf16.gmra.mrb[0].mxu0 %v338
  %v374 = vpop.f32.mrb[0].mxu0
  %v375 = vadd.f32 %v289, %v374
  %v376 = vpop.f32.mrb[0].mxu0
  %v377 = vadd.f32 %v293, %v376
  %v378 = vpop.f32.mrb[0].mxu0
  %v379 = vpop.f32.mrb[0].mxu0
  %380 = vdwg.mxu0
  %v381 = vadd.f32 %v283, %v375
  %v382 = vsub.f32 0.0, %v381
  %v383 = vmul.f32 %v382, 1.442695
  %v384 = vpow.pop %v383
  %v385 = vadd.f32 %v384, 1.0
  %v386 = vrcp.pop %v385
  %v387 = vmul.f32 1.0, %v386
  %v388 = vmul.f32 %v387, %v377
  %v389 = vadd.f32 %v284, %v388
  %v390 = vtanh.pop %v389
  %v391 = vsub.f32 1.0, %v387
  %393 = vrot.lane.b32.xlu0 %v390, 64
  %v394 = vpop.permute.xlu0 %393
  %v396 = vmul.f32 %v391, %v394
  %v397 = vmul.f32 %v387, 0.0
  %v398 = vadd.f32 %v396, %v397
  %400 = vrot.lane.b32.xlu0 %v398, 64
  %v401 = vpop.permute.xlu0 %400
  %vm403 = vcmask 254976
  %404 = vst.msk [vmem:[#allocation3] sm:$0x3] %vm403, %v401
  %405 = vrot.lane.b32.xlu0 %v398, 32
  %v406 = vpop.permute.xlu0 %405
  %s408 = scalar_lea.vmem [#allocation4], 14
  %409 = vst.msk [vmem:[%s408] sm:$0x3] %vm403, %v406
  %s410 = scalar_lea.vmem [#allocation2], 4
  %v411 = vld [vmem:[%s410] sm:$0xf]
  %s412 = scalar_lea.vmem [#allocation2], 24
  %v413 = vld [vmem:[%s412] sm:$0xf]
  %v416 = vunpack.c.l.s4 1983009808
  %v417 = vunpack.c.0.s8 %v416
  %v418 = vlaneseq
  %v419 = vshrl.u32 %v418, 7
  %v420 = vsub.s32 %v417, %v419
  %v421 = vrot.slane %v411, %v420
  %v422 = vcombine.high %v421, %v421
  %v427 = vunpack.c.l.s4 1983009808
  %v428 = vunpack.c.0.s8 %v427
  %v429 = vlaneseq
  %v430 = vshrl.u32 %v429, 7
  %v431 = vsub.s32 %v428, %v430
  %v432 = vrot.slane %v413, %v431
  %v433 = vcombine.high %v432, %v432
  %v436 = vsel %vm259, %v421, %v432
  %v437 = vsel %vm260, %v422, %v433
  %v438 = vpack.c.bf16 %v398, %v398
  %440 = vrot.lane.b32.xlu0 %v438, 64
  %v441 = vpop.permute.xlu0 %440
  %v443 = vsel %vm336, %v441, 0
  %445 = vmatprep.subr.bf16.mxu0 %v321
  %446 = vmatpush1.bf16.msra.mxu0 %v320
  %447 = vmatprep.subr.bf16.mxu0 %v323
  %448 = vmatpush1.bf16.msra.mxu0 %v322
  %449 = vmatprep.subr.bf16.mxu0 %v325
  %450 = vmatpush1.bf16.msra.mxu0 %v324
  %451 = vmatprep.subr.bf16.mxu0 %v327
  %452 = vmatpush1.bf16.msra.mxu0 %v326
  %453 = vmatprep.subr.bf16.mxu0 0
  %454 = vmatpush1.bf16.msra.mxu0 0
  %455 = vmatprep.subr.bf16.mxu0 0
  %456 = vmatpush1.bf16.msra.mxu0 0
  %457 = vmatprep.subr.bf16.mxu0 0
  %458 = vmatpush1.bf16.msra.mxu0 0
  %459 = vmatprep.subr.bf16.mxu0 0
  %460 = vmatpush1.bf16.msra.mxu0 0
  %461 = vmatprep.subr.bf16.mxu0 0
  %462 = vmatpush1.bf16.msra.mxu0 0
  %463 = vmatprep.subr.bf16.mxu0 0
  %464 = vmatpush1.bf16.msra.mxu0 0
  %465 = vmatprep.subr.bf16.mxu0 0
  %466 = vmatpush1.bf16.msra.mxu0 0
  %467 = vmatprep.subr.bf16.mxu0 0
  %468 = vmatpush1.bf16.msra.mxu0 0
  %469 = vmatprep.subr.bf16.mxu0 0
  %470 = vmatpush1.bf16.msra.mxu0 0
  %471 = vmatprep.subr.bf16.mxu0 0
  %472 = vmatpush1.bf16.msra.mxu0 0
  %473 = vmatprep.subr.bf16.mxu0 0
  %474 = vmatpush1.bf16.msra.mxu0 0
  %475 = vmatprep.subr.bf16.mxu0 0
  %476 = vmatpush1.bf16.msra.mxu0 0
  %477 = vmatprep.mubr.bf16.mxu0 0
  %478 = vmatmul.mubr.bf16.gmra.mrb[0].mxu0 %v443
  %v479 = vpop.f32.mrb[0].mxu0
  %v480 = vadd.f32 %v289, %v479
  %v481 = vpop.f32.mrb[0].mxu0
  %v482 = vadd.f32 %v293, %v481
  %v483 = vpop.f32.mrb[0].mxu0
  %v484 = vpop.f32.mrb[0].mxu0
  %485 = vdwg.mxu0
  %v486 = vadd.f32 %v436, %v480
  %v487 = vsub.f32 0.0, %v486
  %v488 = vmul.f32 %v487, 1.442695
  %v489 = vpow.pop %v488
  %v490 = vadd.f32 %v489, 1.0
  %v491 = vrcp.pop %v490
  %v492 = vmul.f32 1.0, %v491
  %v493 = vmul.f32 %v492, %v482
  %v494 = vadd.f32 %v437, %v493
  %v495 = vtanh.pop %v494
  %v496 = vsub.f32 1.0, %v492
  %498 = vrot.lane.b32.xlu0 %v495, 64
  %v499 = vpop.permute.xlu0 %498
  %v501 = vmul.f32 %v496, %v499
  %v502 = vmul.f32 %v492, %v398
  %v503 = vadd.f32 %v501, %v502
  %505 = vrot.lane.b32.xlu0 %v503, 64
  %v506 = vpop.permute.xlu0 %505
  %s508 = scalar_lea.vmem [#allocation3], 2
  %509 = vst.msk [vmem:[%s508] sm:$0x3] %vm403, %v506
  %510 = vrot.lane.b32.xlu0 %v503, 32
  %v511 = vpop.permute.xlu0 %510
  %s513 = scalar_lea.vmem [#allocation4], 12
  %514 = vst.msk [vmem:[%s513] sm:$0x3] %vm403, %v511
  %s515 = scalar_lea.vmem [#allocation2], 8
  %v516 = vld [vmem:[%s515] sm:$0xf]
  %s517 = scalar_lea.vmem [#allocation2], 20
  %v518 = vld [vmem:[%s517] sm:$0xf]
  %v521 = vunpack.c.l.s4 1983009808
  %v522 = vunpack.c.0.s8 %v521
  %v523 = vlaneseq
  %v524 = vshrl.u32 %v523, 7
  %v525 = vsub.s32 %v522, %v524
  %v526 = vrot.slane %v516, %v525
  %v527 = vcombine.high %v526, %v526
  %v532 = vunpack.c.l.s4 1983009808
  %v533 = vunpack.c.0.s8 %v532
  %v534 = vlaneseq
  %v535 = vshrl.u32 %v534, 7
  %v536 = vsub.s32 %v533, %v535
  %v537 = vrot.slane %v518, %v536
  %v538 = vcombine.high %v537, %v537
  %v541 = vsel %vm259, %v526, %v537
  %v542 = vsel %vm260, %v527, %v538
  %v543 = vpack.c.bf16 %v503, %v503
  %545 = vrot.lane.b32.xlu0 %v543, 64
  %v546 = vpop.permute.xlu0 %545
  %v548 = vsel %vm336, %v546, 0
  %550 = vmatprep.subr.bf16.mxu0 %v321
  %551 = vmatpush1.bf16.msra.mxu0 %v320
  %552 = vmatprep.subr.bf16.mxu0 %v323
  %553 = vmatpush1.bf16.msra.mxu0 %v322
  %554 = vmatprep.subr.bf16.mxu0 %v325
  %555 = vmatpush1.bf16.msra.mxu0 %v324
  %556 = vmatprep.subr.bf16.mxu0 %v327
  %557 = vmatpush1.bf16.msra.mxu0 %v326
  %558 = vmatprep.subr.bf16.mxu0 0
  %559 = vmatpush1.bf16.msra.mxu0 0
  %560 = vmatprep.subr.bf16.mxu0 0
  %561 = vmatpush1.bf16.msra.mxu0 0
  %562 = vmatprep.subr.bf16.mxu0 0
  %563 = vmatpush1.bf16.msra.mxu0 0
  %564 = vmatprep.subr.bf16.mxu0 0
  %565 = vmatpush1.bf16.msra.mxu0 0
  %566 = vmatprep.subr.bf16.mxu0 0
  %567 = vmatpush1.bf16.msra.mxu0 0
  %568 = vmatprep.subr.bf16.mxu0 0
  %569 = vmatpush1.bf16.msra.mxu0 0
  %570 = vmatprep.subr.bf16.mxu0 0
  %571 = vmatpush1.bf16.msra.mxu0 0
  %572 = vmatprep.subr.bf16.mxu0 0
  %573 = vmatpush1.bf16.msra.mxu0 0
  %574 = vmatprep.subr.bf16.mxu0 0
  %575 = vmatpush1.bf16.msra.mxu0 0
  %576 = vmatprep.subr.bf16.mxu0 0
  %577 = vmatpush1.bf16.msra.mxu0 0
  %578 = vmatprep.subr.bf16.mxu0 0
  %579 = vmatpush1.bf16.msra.mxu0 0
  %580 = vmatprep.subr.bf16.mxu0 0
  %581 = vmatpush1.bf16.msra.mxu0 0
  %582 = vmatprep.mubr.bf16.mxu0 0
  %583 = vmatmul.mubr.bf16.gmra.mrb[0].mxu0 %v548
  %v584 = vpop.f32.mrb[0].mxu0
  %v585 = vadd.f32 %v289, %v584
  %v586 = vpop.f32.mrb[0].mxu0
  %v587 = vadd.f32 %v293, %v586
  %v588 = vpop.f32.mrb[0].mxu0
  %v589 = vpop.f32.mrb[0].mxu0
  %590 = vdwg.mxu0
  %v591 = vadd.f32 %v541, %v585
  %v592 = vsub.f32 0.0, %v591
  %v593 = vmul.f32 %v592, 1.442695
  %v594 = vpow.pop %v593
  %v595 = vadd.f32 %v594, 1.0
  %v596 = vrcp.pop %v595
  %v597 = vmul.f32 1.0, %v596
  %v598 = vmul.f32 %v597, %v587
  %v599 = vadd.f32 %v542, %v598
  %v600 = vtanh.pop %v599
  %v601 = vsub.f32 1.0, %v597
  %603 = vrot.lane.b32.xlu0 %v600, 64
  %v604 = vpop.permute.xlu0 %603
  %v606 = vmul.f32 %v601, %v604
  %v607 = vmul.f32 %v597, %v503
  %v608 = vadd.f32 %v606, %v607
  %610 = vrot.lane.b32.xlu0 %v608, 64
  %v611 = vpop.permute.xlu0 %610
  %s613 = scalar_lea.vmem [#allocation3], 4
  %614 = vst.msk [vmem:[%s613] sm:$0x3] %vm403, %v611
  %615 = vrot.lane.b32.xlu0 %v608, 32
  %v616 = vpop.permute.xlu0 %615
  %s618 = scalar_lea.vmem [#allocation4], 10
  %619 = vst.msk [vmem:[%s618] sm:$0x3] %vm403, %v616
  %s620 = scalar_lea.vmem [#allocation2], 12
  %v621 = vld [vmem:[%s620] sm:$0xf]
  %s622 = scalar_lea.vmem [#allocation2], 16
  %v623 = vld [vmem:[%s622] sm:$0xf]
  %v626 = vunpack.c.l.s4 1983009808
  %v627 = vunpack.c.0.s8 %v626
  %v628 = vlaneseq
  %v629 = vshrl.u32 %v628, 7
  %v630 = vsub.s32 %v627, %v629
  %v631 = vrot.slane %v621, %v630
  %v632 = vcombine.high %v631, %v631
  %v637 = vunpack.c.l.s4 1983009808
  %v638 = vunpack.c.0.s8 %v637
  %v639 = vlaneseq
  %v640 = vshrl.u32 %v639, 7
  %v641 = vsub.s32 %v638, %v640
  %v642 = vrot.slane %v623, %v641
  %v643 = vcombine.high %v642, %v642
  %v646 = vsel %vm259, %v631, %v642
  %v647 = vsel %vm260, %v632, %v643
  %v648 = vpack.c.bf16 %v608, %v608
  %650 = vrot.lane.b32.xlu0 %v648, 64
  %v651 = vpop.permute.xlu0 %650
  %v653 = vsel %vm336, %v651, 0
  %655 = vmatprep.subr.bf16.mxu0 %v321
  %656 = vmatpush1.bf16.msra.mxu0 %v320
  %657 = vmatprep.subr.bf16.mxu0 %v323
  %658 = vmatpush1.bf16.msra.mxu0 %v322
  %659 = vmatprep.subr.bf16.mxu0 %v325
  %660 = vmatpush1.bf16.msra.mxu0 %v324
  %661 = vmatprep.subr.bf16.mxu0 %v327
  %662 = vmatpush1.bf16.msra.mxu0 %v326
  %663 = vmatprep.subr.bf16.mxu0 0
  %664 = vmatpush1.bf16.msra.mxu0 0
  %665 = vmatprep.subr.bf16.mxu0 0
  %666 = vmatpush1.bf16.msra.mxu0 0
  %667 = vmatprep.subr.bf16.mxu0 0
  %668 = vmatpush1.bf16.msra.mxu0 0
  %669 = vmatprep.subr.bf16.mxu0 0
  %670 = vmatpush1.bf16.msra.mxu0 0
  %671 = vmatprep.subr.bf16.mxu0 0
  %672 = vmatpush1.bf16.msra.mxu0 0
  %673 = vmatprep.subr.bf16.mxu0 0
  %674 = vmatpush1.bf16.msra.mxu0 0
  %675 = vmatprep.subr.bf16.mxu0 0
  %676 = vmatpush1.bf16.msra.mxu0 0
  %677 = vmatprep.subr.bf16.mxu0 0
  %678 = vmatpush1.bf16.msra.mxu0 0
  %679 = vmatprep.subr.bf16.mxu0 0
  %680 = vmatpush1.bf16.msra.mxu0 0
  %681 = vmatprep.subr.bf16.mxu0 0
  %682 = vmatpush1.bf16.msra.mxu0 0
  %683 = vmatprep.subr.bf16.mxu0 0
  %684 = vmatpush1.bf16.msra.mxu0 0
  %685 = vmatprep.subr.bf16.mxu0 0
  %686 = vmatpush1.bf16.msra.mxu0 0
  %687 = vmatprep.mubr.bf16.mxu0 0
  %688 = vmatmul.mubr.bf16.gmra.mrb[0].mxu0 %v653
  %v689 = vpop.f32.mrb[0].mxu0
  %v690 = vadd.f32 %v289, %v689
  %v691 = vpop.f32.mrb[0].mxu0
  %v692 = vadd.f32 %v293, %v691
  %v693 = vpop.f32.mrb[0].mxu0
  %v694 = vpop.f32.mrb[0].mxu0
  %695 = vdwg.mxu0
  %v696 = vadd.f32 %v646, %v690
  %v697 = vsub.f32 0.0, %v696
  %v698 = vmul.f32 %v697, 1.442695
  %v699 = vpow.pop %v698
  %v700 = vadd.f32 %v699, 1.0
  %v701 = vrcp.pop %v700
  %v702 = vmul.f32 1.0, %v701
  %v703 = vmul.f32 %v702, %v692
  %v704 = vadd.f32 %v647, %v703
  %v705 = vtanh.pop %v704
  %v706 = vsub.f32 1.0, %v702
  %708 = vrot.lane.b32.xlu0 %v705, 64
  %v709 = vpop.permute.xlu0 %708
  %v711 = vmul.f32 %v706, %v709
  %v712 = vmul.f32 %v702, %v608
  %v713 = vadd.f32 %v711, %v712
  %715 = vrot.lane.b32.xlu0 %v713, 64
  %v716 = vpop.permute.xlu0 %715
  %s718 = scalar_lea.vmem [#allocation3], 6
  %719 = vst.msk [vmem:[%s718] sm:$0x3] %vm403, %v716
  %720 = vrot.lane.b32.xlu0 %v713, 32
  %v721 = vpop.permute.xlu0 %720
  %s723 = scalar_lea.vmem [#allocation4], 8
  %724 = vst.msk [vmem:[%s723] sm:$0x3] %vm403, %v721
  %v725 = vld [vmem:[%s622] sm:$0xf]
  %v726 = vld [vmem:[%s620] sm:$0xf]
  %v729 = vunpack.c.l.s4 1983009808
  %v730 = vunpack.c.0.s8 %v729
  %v731 = vlaneseq
  %v732 = vshrl.u32 %v731, 7
  %v733 = vsub.s32 %v730, %v732
  %v734 = vrot.slane %v725, %v733
  %v735 = vcombine.high %v734, %v734
  %v740 = vunpack.c.l.s4 1983009808
  %v741 = vunpack.c.0.s8 %v740
  %v742 = vlaneseq
  %v743 = vshrl.u32 %v742, 7
  %v744 = vsub.s32 %v741, %v743
  %v745 = vrot.slane %v726, %v744
  %v746 = vcombine.high %v745, %v745
  %v749 = vsel %vm259, %v734, %v745
  %v750 = vsel %vm260, %v735, %v746
  %v751 = vpack.c.bf16 %v713, %v713
  %753 = vrot.lane.b32.xlu0 %v751, 64
  %v754 = vpop.permute.xlu0 %753
  %v756 = vsel %vm336, %v754, 0
  %758 = vmatprep.subr.bf16.mxu0 %v321
  %759 = vmatpush1.bf16.msra.mxu0 %v320
  %760 = vmatprep.subr.bf16.mxu0 %v323
  %761 = vmatpush1.bf16.msra.mxu0 %v322
  %762 = vmatprep.subr.bf16.mxu0 %v325
  %763 = vmatpush1.bf16.msra.mxu0 %v324
  %764 = vmatprep.subr.bf16.mxu0 %v327
  %765 = vmatpush1.bf16.msra.mxu0 %v326
  %766 = vmatprep.subr.bf16.mxu0 0
  %767 = vmatpush1.bf16.msra.mxu0 0
  %768 = vmatprep.subr.bf16.mxu0 0
  %769 = vmatpush1.bf16.msra.mxu0 0
  %770 = vmatprep.subr.bf16.mxu0 0
  %771 = vmatpush1.bf16.msra.mxu0 0
  %772 = vmatprep.subr.bf16.mxu0 0
  %773 = vmatpush1.bf16.msra.mxu0 0
  %774 = vmatprep.subr.bf16.mxu0 0
  %775 = vmatpush1.bf16.msra.mxu0 0
  %776 = vmatprep.subr.bf16.mxu0 0
  %777 = vmatpush1.bf16.msra.mxu0 0
  %778 = vmatprep.subr.bf16.mxu0 0
  %779 = vmatpush1.bf16.msra.mxu0 0
  %780 = vmatprep.subr.bf16.mxu0 0
  %781 = vmatpush1.bf16.msra.mxu0 0
  %782 = vmatprep.subr.bf16.mxu0 0
  %783 = vmatpush1.bf16.msra.mxu0 0
  %784 = vmatprep.subr.bf16.mxu0 0
  %785 = vmatpush1.bf16.msra.mxu0 0
  %786 = vmatprep.subr.bf16.mxu0 0
  %787 = vmatpush1.bf16.msra.mxu0 0
  %788 = vmatprep.subr.bf16.mxu0 0
  %789 = vmatpush1.bf16.msra.mxu0 0
  %790 = vmatprep.mubr.bf16.mxu0 0
  %791 = vmatmul.mubr.bf16.gmra.mrb[0].mxu0 %v756
  %v792 = vpop.f32.mrb[0].mxu0
  %v793 = vadd.f32 %v289, %v792
  %v794 = vpop.f32.mrb[0].mxu0
  %v795 = vadd.f32 %v293, %v794
  %v796 = vpop.f32.mrb[0].mxu0
  %v797 = vpop.f32.mrb[0].mxu0
  %798 = vdwg.mxu0
  %v799 = vadd.f32 %v749, %v793
  %v800 = vsub.f32 0.0, %v799
  %v801 = vmul.f32 %v800, 1.442695
  %v802 = vpow.pop %v801
  %v803 = vadd.f32 %v802, 1.0
  %v804 = vrcp.pop %v803
  %v805 = vmul.f32 1.0, %v804
  %v806 = vmul.f32 %v805, %v795
  %v807 = vadd.f32 %v750, %v806
  %v808 = vtanh.pop %v807
  %v809 = vsub.f32 1.0, %v805
  %811 = vrot.lane.b32.xlu0 %v808, 64
  %v812 = vpop.permute.xlu0 %811
  %v814 = vmul.f32 %v809, %v812
  %v815 = vmul.f32 %v805, %v713
  %v816 = vadd.f32 %v814, %v815
  %818 = vrot.lane.b32.xlu0 %v816, 64
  %v819 = vpop.permute.xlu0 %818
  %s821 = scalar_lea.vmem [#allocation3], 8
  %822 = vst.msk [vmem:[%s821] sm:$0x3] %vm403, %v819
  %823 = vrot.lane.b32.xlu0 %v816, 32
  %v824 = vpop.permute.xlu0 %823
  %s826 = scalar_lea.vmem [#allocation4], 6
  %827 = vst.msk [vmem:[%s826] sm:$0x3] %vm403, %v824
  %v828 = vld [vmem:[%s517] sm:$0xf]
  %v829 = vld [vmem:[%s515] sm:$0xf]
  %v832 = vunpack.c.l.s4 1983009808
  %v833 = vunpack.c.0.s8 %v832
  %v834 = vlaneseq
  %v835 = vshrl.u32 %v834, 7
  %v836 = vsub.s32 %v833, %v835
  %v837 = vrot.slane %v828, %v836
  %v838 = vcombine.high %v837, %v837
  %v843 = vunpack.c.l.s4 1983009808
  %v844 = vunpack.c.0.s8 %v843
  %v845 = vlaneseq
  %v846 = vshrl.u32 %v845, 7
  %v847 = vsub.s32 %v844, %v846
  %v848 = vrot.slane %v829, %v847
  %v849 = vcombine.high %v848, %v848
  %v852 = vsel %vm259, %v837, %v848
  %v853 = vsel %vm260, %v838, %v849
  %v854 = vpack.c.bf16 %v816, %v816
  %856 = vrot.lane.b32.xlu0 %v854, 64
  %v857 = vpop.permute.xlu0 %856
  %v859 = vsel %vm336, %v857, 0
  %861 = vmatprep.subr.bf16.mxu0 %v321
  %862 = vmatpush1.bf16.msra.mxu0 %v320
  %863 = vmatprep.subr.bf16.mxu0 %v323
  %864 = vmatpush1.bf16.msra.mxu0 %v322
  %865 = vmatprep.subr.bf16.mxu0 %v325
  %866 = vmatpush1.bf16.msra.mxu0 %v324
  %867 = vmatprep.subr.bf16.mxu0 %v327
  %868 = vmatpush1.bf16.msra.mxu0 %v326
  %869 = vmatprep.subr.bf16.mxu0 0
  %870 = vmatpush1.bf16.msra.mxu0 0
  %871 = vmatprep.subr.bf16.mxu0 0
  %872 = vmatpush1.bf16.msra.mxu0 0
  %873 = vmatprep.subr.bf16.mxu0 0
  %874 = vmatpush1.bf16.msra.mxu0 0
  %875 = vmatprep.subr.bf16.mxu0 0
  %876 = vmatpush1.bf16.msra.mxu0 0
  %877 = vmatprep.subr.bf16.mxu0 0
  %878 = vmatpush1.bf16.msra.mxu0 0
  %879 = vmatprep.subr.bf16.mxu0 0
  %880 = vmatpush1.bf16.msra.mxu0 0
  %881 = vmatprep.subr.bf16.mxu0 0
  %882 = vmatpush1.bf16.msra.mxu0 0
  %883 = vmatprep.subr.bf16.mxu0 0
  %884 = vmatpush1.bf16.msra.mxu0 0
  %885 = vmatprep.subr.bf16.mxu0 0
  %886 = vmatpush1.bf16.msra.mxu0 0
  %887 = vmatprep.subr.bf16.mxu0 0
  %888 = vmatpush1.bf16.msra.mxu0 0
  %889 = vmatprep.subr.bf16.mxu0 0
  %890 = vmatpush1.bf16.msra.mxu0 0
  %891 = vmatprep.subr.bf16.mxu0 0
  %892 = vmatpush1.bf16.msra.mxu0 0
  %893 = vmatprep.mubr.bf16.mxu0 0
  %894 = vmatmul.mubr.bf16.gmra.mrb[0].mxu0 %v859
  %v895 = vpop.f32.mrb[0].mxu0
  %v896 = vadd.f32 %v289, %v895
  %v897 = vpop.f32.mrb[0].mxu0
  %v898 = vadd.f32 %v293, %v897
  %v899 = vpop.f32.mrb[0].mxu0
  %v900 = vpop.f32.mrb[0].mxu0
  %901 = vdwg.mxu0
  %v902 = vadd.f32 %v852, %v896
  %v903 = vsub.f32 0.0, %v902
  %v904 = vmul.f32 %v903, 1.442695
  %v905 = vpow.pop %v904
  %v906 = vadd.f32 %v905, 1.0
  %v907 = vrcp.pop %v906
  %v908 = vmul.f32 1.0, %v907
  %v909 = vmul.f32 %v908, %v898
  %v910 = vadd.f32 %v853, %v909
  %v911 = vtanh.pop %v910
  %v912 = vsub.f32 1.0, %v908
  %914 = vrot.lane.b32.xlu0 %v911, 64
  %v915 = vpop.permute.xlu0 %914
  %v917 = vmul.f32 %v912, %v915
  %v918 = vmul.f32 %v908, %v816
  %v919 = vadd.f32 %v917, %v918
  %921 = vrot.lane.b32.xlu0 %v919, 64
  %v922 = vpop.permute.xlu0 %921
  %s924 = scalar_lea.vmem [#allocation3], 10
  %925 = vst.msk [vmem:[%s924] sm:$0x3] %vm403, %v922
  %926 = vrot.lane.b32.xlu0 %v919, 32
  %v927 = vpop.permute.xlu0 %926
  %s929 = scalar_lea.vmem [#allocation4], 4
  %930 = vst.msk [vmem:[%s929] sm:$0x3] %vm403, %v927
  %v931 = vld [vmem:[%s412] sm:$0xf]
  %v932 = vld [vmem:[%s410] sm:$0xf]
  %v935 = vunpack.c.l.s4 1983009808
  %v936 = vunpack.c.0.s8 %v935
  %v937 = vlaneseq
  %v938 = vshrl.u32 %v937, 7
  %v939 = vsub.s32 %v936, %v938
  %v940 = vrot.slane %v931, %v939
  %v941 = vcombine.high %v940, %v940
  %v946 = vunpack.c.l.s4 1983009808
  %v947 = vunpack.c.0.s8 %v946
  %v948 = vlaneseq
  %v949 = vshrl.u32 %v948, 7
  %v950 = vsub.s32 %v947, %v949
  %v951 = vrot.slane %v932, %v950
  %v952 = vcombine.high %v951, %v951
  %v955 = vsel %vm259, %v940, %v951
  %v956 = vsel %vm260, %v941, %v952
  %v957 = vpack.c.bf16 %v919, %v919
  %959 = vrot.lane.b32.xlu0 %v957, 64
  %v960 = vpop.permute.xlu0 %959
  %v962 = vsel %vm336, %v960, 0
  %964 = vmatprep.subr.bf16.mxu0 %v321
  %965 = vmatpush1.bf16.msra.mxu0 %v320
  %966 = vmatprep.subr.bf16.mxu0 %v323
  %967 = vmatpush1.bf16.msra.mxu0 %v322
  %968 = vmatprep.subr.bf16.mxu0 %v325
  %969 = vmatpush1.bf16.msra.mxu0 %v324
  %970 = vmatprep.subr.bf16.mxu0 %v327
  %971 = vmatpush1.bf16.msra.mxu0 %v326
  %972 = vmatprep.subr.bf16.mxu0 0
  %973 = vmatpush1.bf16.msra.mxu0 0
  %974 = vmatprep.subr.bf16.mxu0 0
  %975 = vmatpush1.bf16.msra.mxu0 0
  %976 = vmatprep.subr.bf16.mxu0 0
  %977 = vmatpush1.bf16.msra.mxu0 0
  %978 = vmatprep.subr.bf16.mxu0 0
  %979 = vmatpush1.bf16.msra.mxu0 0
  %980 = vmatprep.subr.bf16.mxu0 0
  %981 = vmatpush1.bf16.msra.mxu0 0
  %982 = vmatprep.subr.bf16.mxu0 0
  %983 = vmatpush1.bf16.msra.mxu0 0
  %984 = vmatprep.subr.bf16.mxu0 0
  %985 = vmatpush1.bf16.msra.mxu0 0
  %986 = vmatprep.subr.bf16.mxu0 0
  %987 = vmatpush1.bf16.msra.mxu0 0
  %988 = vmatprep.subr.bf16.mxu0 0
  %989 = vmatpush1.bf16.msra.mxu0 0
  %990 = vmatprep.subr.bf16.mxu0 0
  %991 = vmatpush1.bf16.msra.mxu0 0
  %992 = vmatprep.subr.bf16.mxu0 0
  %993 = vmatpush1.bf16.msra.mxu0 0
  %994 = vmatprep.subr.bf16.mxu0 0
  %995 = vmatpush1.bf16.msra.mxu0 0
  %996 = vmatprep.mubr.bf16.mxu0 0
  %997 = vmatmul.mubr.bf16.gmra.mrb[0].mxu0 %v962
  %v998 = vpop.f32.mrb[0].mxu0
  %v999 = vadd.f32 %v289, %v998
  %v1000 = vpop.f32.mrb[0].mxu0
  %v1001 = vadd.f32 %v293, %v1000
  %v1002 = vpop.f32.mrb[0].mxu0
  %v1003 = vpop.f32.mrb[0].mxu0
  %1004 = vdwg.mxu0
  %v1005 = vadd.f32 %v955, %v999
  %v1006 = vsub.f32 0.0, %v1005
  %v1007 = vmul.f32 %v1006, 1.442695
  %v1008 = vpow.pop %v1007
  %v1009 = vadd.f32 %v1008, 1.0
  %v1010 = vrcp.pop %v1009
  %v1011 = vmul.f32 1.0, %v1010
  %v1012 = vmul.f32 %v1011, %v1001
  %v1013 = vadd.f32 %v956, %v1012
  %v1014 = vtanh.pop %v1013
  %v1015 = vsub.f32 1.0, %v1011
  %1017 = vrot.lane.b32.xlu0 %v1014, 64
  %v1018 = vpop.permute.xlu0 %1017
  %v1020 = vmul.f32 %v1015, %v1018
  %v1021 = vmul.f32 %v1011, %v919
  %v1022 = vadd.f32 %v1020, %v1021
  %1024 = vrot.lane.b32.xlu0 %v1022, 64
  %v1025 = vpop.permute.xlu0 %1024
  %s1027 = scalar_lea.vmem [#allocation3], 12
  %1028 = vst.msk [vmem:[%s1027] sm:$0x3] %vm403, %v1025
  %1029 = vrot.lane.b32.xlu0 %v1022, 32
  %v1030 = vpop.permute.xlu0 %1029
  %s1032 = scalar_lea.vmem [#allocation4], 2
  %1033 = vst.msk [vmem:[%s1032] sm:$0x3] %vm403, %v1030
  %v1034 = vld [vmem:[%s255] sm:$0xf]
  %v1035 = vld [vmem:[#allocation2] sm:$0xf]
  %v1038 = vunpack.c.l.s4 1983009808
  %v1039 = vunpack.c.0.s8 %v1038
  %v1040 = vlaneseq
  %v1041 = vshrl.u32 %v1040, 7
  %v1042 = vsub.s32 %v1039, %v1041
  %v1043 = vrot.slane %v1034, %v1042
  %v1044 = vcombine.high %v1043, %v1043
  %v1049 = vunpack.c.l.s4 1983009808
  %v1050 = vunpack.c.0.s8 %v1049
  %v1051 = vlaneseq
  %v1052 = vshrl.u32 %v1051, 7
  %v1053 = vsub.s32 %v1050, %v1052
  %v1054 = vrot.slane %v1035, %v1053
  %v1055 = vcombine.high %v1054, %v1054
  %v1058 = vsel %vm259, %v1043, %v1054
  %v1059 = vsel %vm260, %v1044, %v1055
  %v1060 = vpack.c.bf16 %v1022, %v1022
  %1062 = vrot.lane.b32.xlu0 %v1060, 64
  %v1063 = vpop.permute.xlu0 %1062
  %v1065 = vsel %vm336, %v1063, 0
  %1067 = vmatprep.subr.bf16.mxu0 %v321
  %1068 = vmatpush1.bf16.msra.mxu0 %v320
  %1069 = vmatprep.subr.bf16.mxu0 %v323
  %1070 = vmatpush1.bf16.msra.mxu0 %v322
  %1071 = vmatprep.subr.bf16.mxu0 %v325
  %1072 = vmatpush1.bf16.msra.mxu0 %v324
  %1073 = vmatprep.subr.bf16.mxu0 %v327
  %1074 = vmatpush1.bf16.msra.mxu0 %v326
  %1075 = vmatprep.subr.bf16.mxu0 0
  %1076 = vmatpush1.bf16.msra.mxu0 0
  %1077 = vmatprep.subr.bf16.mxu0 0
  %1078 = vmatpush1.bf16.msra.mxu0 0
  %1079 = vmatprep.subr.bf16.mxu0 0
  %1080 = vmatpush1.bf16.msra.mxu0 0
  %1081 = vmatprep.subr.bf16.mxu0 0
  %1082 = vmatpush1.bf16.msra.mxu0 0
  %1083 = vmatprep.subr.bf16.mxu0 0
  %1084 = vmatpush1.bf16.msra.mxu0 0
  %1085 = vmatprep.subr.bf16.mxu0 0
  %1086 = vmatpush1.bf16.msra.mxu0 0
  %1087 = vmatprep.subr.bf16.mxu0 0
  %1088 = vmatpush1.bf16.msra.mxu0 0
  %1089 = vmatprep.subr.bf16.mxu0 0
  %1090 = vmatpush1.bf16.msra.mxu0 0
  %1091 = vmatprep.subr.bf16.mxu0 0
  %1092 = vmatpush1.bf16.msra.mxu0 0
  %1093 = vmatprep.subr.bf16.mxu0 0
  %1094 = vmatpush1.bf16.msra.mxu0 0
  %1095 = vmatprep.subr.bf16.mxu0 0
  %1096 = vmatpush1.bf16.msra.mxu0 0
  %1097 = vmatprep.subr.bf16.mxu0 0
  %1098 = vmatpush1.bf16.msra.mxu0 0
  %1099 = vmatprep.mubr.bf16.mxu0 0
  %1100 = vmatmul.mubr.bf16.gmra.mrb[0].mxu0 %v1065
  %v1101 = vpop.f32.mrb[0].mxu0
  %v1102 = vadd.f32 %v289, %v1101
  %v1103 = vpop.f32.mrb[0].mxu0
  %v1104 = vadd.f32 %v293, %v1103
  %v1105 = vpop.f32.mrb[0].mxu0
  %v1106 = vpop.f32.mrb[0].mxu0
  %1107 = vdwg.mxu0
  %v1108 = vadd.f32 %v1058, %v1102
  %v1109 = vsub.f32 0.0, %v1108
  %v1110 = vmul.f32 %v1109, 1.442695
  %v1111 = vpow.pop %v1110
  %v1112 = vadd.f32 %v1111, 1.0
  %v1113 = vrcp.pop %v1112
  %v1114 = vmul.f32 1.0, %v1113
  %v1115 = vmul.f32 %v1114, %v1104
  %v1116 = vadd.f32 %v1059, %v1115
  %v1117 = vtanh.pop %v1116
  %v1118 = vsub.f32 1.0, %v1114
  %1120 = vrot.lane.b32.xlu0 %v1117, 64
  %v1121 = vpop.permute.xlu0 %1120
  %v1123 = vmul.f32 %v1118, %v1121
  %v1124 = vmul.f32 %v1114, %v1022
  %v1125 = vadd.f32 %v1123, %v1124
  %1127 = vrot.lane.b32.xlu0 %v1125, 64
  %v1128 = vpop.permute.xlu0 %1127
  %s1130 = scalar_lea.vmem [#allocation3], 14
  %1131 = vst.msk [vmem:[%s1130] sm:$0x3] %vm403, %v1128
  %1132 = vrot.lane.b32.xlu0 %v1125, 32
  %v1133 = vpop.permute.xlu0 %1132
  %1135 = vst.msk [vmem:[#allocation4] sm:$0x3] %vm403, %v1133
  %v1136 = vld [vmem:[#allocation3] sm:$0x3]
  %v1137 = vld [vmem:[#allocation3 + $0x2] sm:$0x3]
  %v1138 = vld [vmem:[#allocation3 + $0x4] sm:$0x3]
  %v1139 = vld [vmem:[#allocation3 + $0x6] sm:$0x3]
  %v1140 = vld [vmem:[#allocation3 + $0x8] sm:$0x3]
  %v1141 = vld [vmem:[#allocation3 + $0xa] sm:$0x3]
  %v1142 = vld [vmem:[#allocation3 + $0xc] sm:$0x3]
  %v1143 = vld [vmem:[#allocation3 + $0xe] sm:$0x3]
  %v1144 = vld [vmem:[#allocation4] sm:$0x3]
  %v1145 = vld [vmem:[#allocation4 + $0x2] sm:$0x3]
  %v1146 = vld [vmem:[#allocation4 + $0x4] sm:$0x3]
  %v1147 = vld [vmem:[#allocation4 + $0x6] sm:$0x3]
  %v1148 = vld [vmem:[#allocation4 + $0x8] sm:$0x3]
  %v1149 = vld [vmem:[#allocation4 + $0xa] sm:$0x3]
  %v1150 = vld [vmem:[#allocation4 + $0xc] sm:$0x3]
  %v1151 = vld [vmem:[#allocation4 + $0xe] sm:$0x3]
  %1160 = vrot.lane.b32.xlu0 %v1144, 32
  %v1161 = vpop.permute.xlu0 %1160
  %1162 = vrot.lane.b32.xlu0 %v1145, 32
  %v1163 = vpop.permute.xlu0 %1162
  %1164 = vrot.lane.b32.xlu0 %v1146, 32
  %v1165 = vpop.permute.xlu0 %1164
  %1166 = vrot.lane.b32.xlu0 %v1147, 32
  %v1167 = vpop.permute.xlu0 %1166
  %1168 = vrot.lane.b32.xlu0 %v1148, 32
  %v1169 = vpop.permute.xlu0 %1168
  %1170 = vrot.lane.b32.xlu0 %v1149, 32
  %v1171 = vpop.permute.xlu0 %1170
  %1172 = vrot.lane.b32.xlu0 %v1150, 32
  %v1173 = vpop.permute.xlu0 %1172
  %1174 = vrot.lane.b32.xlu0 %v1151, 32
  %v1175 = vpop.permute.xlu0 %1174
  %v1184 = vsel %vm110, %v1136, %v1161
  %v1185 = vsel %vm110, %v1137, %v1163
  %v1186 = vsel %vm110, %v1138, %v1165
  %v1187 = vsel %vm110, %v1139, %v1167
  %v1188 = vsel %vm110, %v1140, %v1169
  %v1189 = vsel %vm110, %v1141, %v1171
  %v1190 = vsel %vm110, %v1142, %v1173
  %v1191 = vsel %vm110, %v1143, %v1175
  %vm1192 = vcmask 517120
  %1193 = vst.msk [vmem:[%s5] sm:$0x3] %vm1192, %v1184
  %1194 = vst.msk [vmem:[%s5 + $0x2] sm:$0x3] %vm1192, %v1185
  %1195 = vst.msk [vmem:[%s5 + $0x4] sm:$0x3] %vm1192, %v1186
  %1196 = vst.msk [vmem:[%s5 + $0x6] sm:$0x3] %vm1192, %v1187
  %1197 = vst.msk [vmem:[%s5 + $0x8] sm:$0x3] %vm1192, %v1188
  %1198 = vst.msk [vmem:[%s5 + $0xa] sm:$0x3] %vm1192, %v1189
  %1199 = vst.msk [vmem:[%s5 + $0xc] sm:$0x3] %vm1192, %v1190
  %1200 = vst.msk [vmem:[%s5 + $0xe] sm:$0x3] %vm1192, %v1191
  // Predicated region
  $region22: #{grulob_forward.6} parent=0 // pred_check
    _
  $region23: #{grulob_forward.6} parent=0 // pred_check_branch
    %1202 = sbr.rel (0) target = $region25
  $region24: #{grulob_forward.6} parent=0 // pred_region
    _
  $region25: #{grulob_forward.6} parent=0 // pred_fallthru
    _
  // Predicated region
  $region26: #{grulob_forward.6} parent=0 // pred_check
    _
  $region27: #{grulob_forward.6} parent=0 // pred_check_branch
    %1204 = sbr.rel (0) target = $region29
  $region28: #{grulob_forward.6} parent=0 // pred_region
    _
  $region29: #{grulob_forward.6} parent=0 // pred_fallthru
    _

// kernel: grulob_forward.9
$region0: #{grulob_forward.9}
  #allocation0 [shape = 'u32[]', space=smem, size = 0x4, offset = 0x4, fixed_abs, tag = 'smem constant byte address 0x4 - core index']
  #allocation1 [shape = 'u32[144,128]{1,0:T(1,128)}', space=vmem, size = 0x12000, scoped, tag = 'internal scratch']
  %s0 = inlined_call_operand.vmem [shape: bf16[2,128], index: 0, kind: input, shape index: {}]
  %s1 = inlined_call_operand.vmem [shape: bf16[128,3], index: 1, kind: input, shape index: {}]
  %s2 = inlined_call_operand.vmem [shape: f32[1,3], index: 2, kind: input, shape index: {}]
  %s3 = inlined_call_operand.hbm [shape: f32[2,3], index: 3, kind: output, shape index: {}]
  %s4 = sld [smem:[#allocation0]]
  $region22: #{grulob_forward.9} parent=0
    _
  %s6 = ssub.s32 1, %s4
  %s7 = scalar_select 0, %s6, %s4
  $region1: #{grulob_forward.9} parent=0
    #allocation2 [shape = 'u8[1024]{0}', space=vmem, size = 0x400, scoped, tag = 'output window, operand 0, single buffered']
    #allocation3 [shape = 's32[1]{0}', space=sflag, size = 0x4, scoped, tag = 'scoped memory for grulob_forward.9']
    %8 = vsyncpa [#allocation3], 0
    // Predicated region
    $region2: #{grulob_forward.9} parent=1 // pred_check
      _
    $region3: #{grulob_forward.9} parent=1 // pred_check_branch
      %10 = sbr.rel (0) target = $region5
    $region4: #{grulob_forward.9} parent=1 // pred_region
      _
    $region5: #{grulob_forward.9} parent=1 // pred_fallthru
      _
    // Predicated region
    $region6: #{grulob_forward.9} parent=1 // pred_check
      _
    $region7: #{grulob_forward.9} parent=1 // pred_check_branch
      %12 = sbr.rel (0) target = $region9
    $region8: #{grulob_forward.9} parent=1 // pred_region
      _
    $region9: #{grulob_forward.9} parent=1 // pred_fallthru
      _
    // Predicated region
    $region10: #{grulob_forward.9} parent=1 // pred_check
      _
    $region11: #{grulob_forward.9} parent=1 // pred_check_branch
      %14 = sbr.rel (0) target = $region13
    $region12: #{grulob_forward.9} parent=1 // pred_region
      _
    $region13: #{grulob_forward.9} parent=1 // pred_fallthru
      _
    %v16 = vld [vmem:[%s0] sm:$0x1]
    %v17 = vld [vmem:[%s1] sm:$0xf]
    %v18 = vld [vmem:[%s1 + $0x4] sm:$0xf]
    %v19 = vld [vmem:[%s1 + $0x8] sm:$0xf]
    %v20 = vld [vmem:[%s1 + $0xc] sm:$0xf]
    %v21 = vld [vmem:[%s1 + $0x10] sm:$0xf]
    %v22 = vld [vmem:[%s1 + $0x14] sm:$0xf]
    %v23 = vld [vmem:[%s1 + $0x18] sm:$0xf]
    %v24 = vld [vmem:[%s1 + $0x1c] sm:$0xf]
    %v25 = vld [vmem:[%s1 + $0x20] sm:$0xf]
    %v26 = vld [vmem:[%s1 + $0x24] sm:$0xf]
    %v27 = vld [vmem:[%s1 + $0x28] sm:$0xf]
    %v28 = vld [vmem:[%s1 + $0x2c] sm:$0xf]
    %v29 = vld [vmem:[%s1 + $0x30] sm:$0xf]
    %v30 = vld [vmem:[%s1 + $0x34] sm:$0xf]
    %v31 = vld [vmem:[%s1 + $0x38] sm:$0xf]
    %v32 = vld [vmem:[%s1 + $0x3c] sm:$0xf]
    %v33 = vld [vmem:[%s2] sm:$0x1]
    %v35 = vlaneseq
    %v36 = vshrl.u32 %v35, 7
    %v37 = vsub.s32 0, %v36
    %v38 = vrot.slane %v33, %v37
    %v56 = vunpack.c.l.b16 %v17
    %v57 = vunpack.c.l.b16 %v18
    %v58 = vunpack.c.l.b16 %v19
    %v59 = vunpack.c.l.b16 %v20
    %v60 = vunpack.c.l.b16 %v21
    %v61 = vunpack.c.l.b16 %v22
    %v62 = vunpack.c.l.b16 %v23
    %v63 = vunpack.c.l.b16 %v24
    %v64 = vunpack.c.l.b16 %v25
    %v65 = vunpack.c.l.b16 %v26
    %v66 = vunpack.c.l.b16 %v27
    %v67 = vunpack.c.l.b16 %v28
    %v68 = vunpack.c.l.b16 %v29
    %v69 = vunpack.c.l.b16 %v30
    %v70 = vunpack.c.l.b16 %v31
    %v71 = vunpack.c.l.b16 %v32
    %v72 = vpack.c.b16 %v57, %v56
    %v73 = vpack.c.b16 %v59, %v58
    %v74 = vpack.c.b16 %v61, %v60
    %v75 = vpack.c.b16 %v63, %v62
    %v76 = vpack.c.b16 %v65, %v64
    %v77 = vpack.c.b16 %v67, %v66
    %v78 = vpack.c.b16 %v69, %v68
    %v79 = vpack.c.b16 %v71, %v70
    %88 = vmatprep.subr.bf16.mxu0 0
    %89 = vmatpush1.bf16.msra.mxu0 %v72
    %90 = vmatprep.subr.bf16.mxu0 0
    %91 = vmatpush1.bf16.msra.mxu0 %v73
    %92 = vmatprep.subr.bf16.mxu0 0
    %93 = vmatpush1.bf16.msra.mxu0 %v74
    %94 = vmatprep.subr.bf16.mxu0 0
    %95 = vmatpush1.bf16.msra.mxu0 %v75
    %96 = vmatprep.subr.bf16.mxu0 0
    %97 = vmatpush1.bf16.msra.mxu0 %v76
    %98 = vmatprep.subr.bf16.mxu0 0
    %99 = vmatpush1.bf16.msra.mxu0 %v77
    %100 = vmatprep.subr.bf16.mxu0 0
    %101 = vmatpush1.bf16.msra.mxu0 %v78
    %102 = vmatprep.subr.bf16.mxu0 0
    %103 = vmatpush1.bf16.msra.mxu0 %v79
    %104 = vmatprep.subr.bf16.mxu0 0
    %105 = vmatpush1.bf16.msra.mxu0 0
    %106 = vmatprep.subr.bf16.mxu0 0
    %107 = vmatpush1.bf16.msra.mxu0 0
    %108 = vmatprep.subr.bf16.mxu0 0
    %109 = vmatpush1.bf16.msra.mxu0 0
    %110 = vmatprep.subr.bf16.mxu0 0
    %111 = vmatpush1.bf16.msra.mxu0 0
    %112 = vmatprep.subr.bf16.mxu0 0
    %113 = vmatpush1.bf16.msra.mxu0 0
    %114 = vmatprep.subr.bf16.mxu0 0
    %115 = vmatpush1.bf16.msra.mxu0 0
    %116 = vmatprep.subr.bf16.mxu0 0
    %117 = vmatpush1.bf16.msra.mxu0 0
    %118 = vmatprep.subr.bf16.mxu0 0
    %119 = vmatpush1.bf16.msra.mxu0 0
    %120 = vmatprep.mubr.bf16.mxu0 0
    %121 = vmatmul.mubr.bf16.gmra.mrb[0].mxu0 %v16
    %v122 = vpop.f32.mrb[0].mxu0
    %v123 = vadd.f32 %v38, %v122
    %v124 = vpop.f32.mrb[0].mxu0
    %v125 = vpop.f32.mrb[0].mxu0
    %v126 = vpop.f32.mrb[0].mxu0
    %127 = vdwg.mxu0
    %vm128 = vcmask 17408
    %129 = vst.msk [vmem:[#allocation2] sm:$0x3] %vm128, %v123
    // Predicated region
    $region14: #{grulob_forward.9} parent=1 // pred_check
      _
    $region15: #{grulob_forward.9} parent=1 // pred_check_branch
      %131 = sbr.rel (0) target = $region17
    $region16: #{grulob_forward.9} parent=1 // pred_region
      %s133 = ssub.s32 32, 32
      %134 = vsyncadd [#allocation3], %s133
      %s136 = sshll.u32 [#allocation2], 4
      %s137 = int_to_ptr.vmem [resolvable:$true] %s136
      %139 = dma.vmem_to_hbm [thread:$0]  %s137, 32, %s3, [#allocation3]
    $region17: #{grulob_forward.9} parent=1 // pred_fallthru
      _
    // Predicated region
    $region18: #{grulob_forward.9} parent=1 // pred_check
      _
    $region19: #{grulob_forward.9} parent=1 // pred_check_branch
      %141 = sbr.rel (0) target = $region21
    $region20: #{grulob_forward.9} parent=1 // pred_region
      %142 = dma.done [#allocation3], 32
    $region21: #{grulob_forward.9} parent=1 // pred_fallthru
      _
    %143 = vsyncpa [#allocation3], 1

</llo_original>
